<compile_context>
chip_gen: v5e
topology: v5e:2x2
jax: 0.10.0
libtpu: 0.0.40
codegen_flags: <defaults>
</compile_context>

<pallas_src>
import functools

import numpy as np
import jax
import jax.numpy as jnp
from jax.experimental import pallas as pl
from jax.experimental.pallas import tpu as pltpu

LANES = 128   # vreg lane width; G column slots * CH channels == LANES
TAPS = 9      # 3x3 kernel taps


def _round_up(x, m):
    return (x + m - 1) // m * m


# ----------------------------------------------------------------------------
# Fused Pallas kernel: 4 chained 3x3 convs, bf16 VMEM-resident activations
# ----------------------------------------------------------------------------
def _fused_unet_conv_kernel(x_ref, w_ref, b_ref, o_ref, act_ref, *,
                            n_rows, Wgp, Wg, n_layers):
    """One batch element.

    Slab layout: row index r enumerates (padded image row, column-group); each
    128-lane row packs G adjacent image columns x CH channels (G*CH == 128).

    x_ref:   (p2, 128)            bf16  zero-padded input slab
    w_ref:   (L, 9*128, 128)      bf16  packed im2col weights
    b_ref:   (L, 1, 128)          f32   packed biases (replicated per col slot)
    o_ref:   (n_rows, 128)        bf16  lane-dense output slab
    act_ref: (p2, 128)            bf16  VMEM scratch for the running activation
    """
    p2 = act_ref.shape[0]
    lanes = act_ref.shape[1]
    offsets = tuple(dy * Wgp + d for dy in range(3) for d in range(3))

    # Rows whose column-group index lands in the halo are garbage after the
    # matmul; intermediate layers must zero them (the g == Wg+1 garbage row
    # wraps into the next padded row's LEFT-halo group on write-back).
    row_ids = jax.lax.broadcasted_iota(jnp.int32, (n_rows, 1), 0)
    valid = (row_ids % Wgp) < Wg

    # Zero only the rows the per-layer write-back never touches
    # (top-halo prefix [0, Wgp+1) and tail [Wgp+1+n_rows, p2)).
    act_ref[0:Wgp + 1, :] = jnp.zeros((Wgp + 1, lanes), act_ref.dtype)
    tail = Wgp + 1 + n_rows
    if p2 > tail:
        act_ref[tail:p2, :] = jnp.zeros((p2 - tail, lanes), act_ref.dtype)

    def conv_layer(src_ref, l, mask):
        # im2col: 9 sublane-shifted, lane-aligned bf16 slices -> (n_rows, 9*128)
        patches = jnp.concatenate(
            [src_ref[off:off + n_rows, :] for off in offsets], axis=1)
        y = jnp.dot(patches, w_ref[l], preferred_element_type=jnp.float32)  # MXU
        y = y + b_ref[l]                                                    # (1,128)
        if mask:
            y = jnp.where(valid, y, 0.0)
        return y

    # Layer 0 reads the (already padded, bf16) input slab directly.
    y = conv_layer(x_ref, 0, mask=n_layers > 1)
    for l in range(1, n_layers):
        # Write previous result into the interior of the padded frame
        # (offset Wgp+1 = one halo row + one halo column-group).
        act_ref[Wgp + 1:Wgp + 1 + n_rows, :] = y.astype(act_ref.dtype)
        y = conv_layer(act_ref, l, mask=l < n_layers - 1)   # final layer: no mask

    o_ref[...] = y.astype(o_ref.dtype)


# ----------------------------------------------------------------------------
# Weight packing (host-side numpy, done once per layout)
# ----------------------------------------------------------------------------
def pack_conv_weights(layers, group_cols):
    """layers: list of (w_hwio (3,3,cin,cout) f32, bias (cout,) f32).

    Packs into (L, 9*128, 128) bf16 weights and (L, 1, 128) f32 biases for the
    column-group layout: K index = (dy, group-delta, col-in-group, cin),
    N index = (out-col-in-group, cout).  Zero entries for taps that fall
    outside the 3x3 window or for padded channels.
    """
    G = group_cols
    CH = LANES // G
    L = len(layers)
    wp = np.zeros((L, TAPS * LANES, LANES), np.float32)
    bp = np.zeros((L, 1, LANES), np.float32)
    for l, (w, b) in enumerate(layers):
        w = np.asarray(w, np.float32)
        b = np.asarray(b, np.float32)
        cin, cout = w.shape[2], w.shape[3]
        assert cin <= CH and cout <= CH
        for dy in range(3):
            for dlt in range(3):              # which of the 3 adjacent col-groups
                for ci in range(G):           # input column within that group
                    for co in range(G):       # output column within the group
                        dx = G * (dlt - 1) + ci - co + 1
                        if 0 <= dx <= 2:
                            k0 = (dy * 3 + dlt) * LANES + ci * CH
                            n0 = co * CH
                            wp[l, k0:k0 + cin, n0:n0 + cout] = w[dy, dx]
        for co in range(G):
            bp[l, 0, co * CH:co * CH + cout] = b
    return jnp.asarray(wp, jnp.bfloat16), jnp.asarray(bp, jnp.float32)


# ----------------------------------------------------------------------------
# Wrapper: NCHW in -> fused Pallas conv chain -> NCHW out
# ----------------------------------------------------------------------------
@functools.partial(jax.jit, static_argnums=(3, 4))
def fused_conv_chain(x_nchw, w_packed, b_packed, c_out_final, group_cols):
    B, c_in, H, W = x_nchw.shape
    G = group_cols
    CH = LANES // G
    assert W % G == 0 and c_in <= CH
    Wg = W // G
    Wgp = Wg + 2                       # + left/right halo column-group
    n_rows = H * Wgp
    p2 = _round_up(n_rows + 2 * Wgp + 2, 8)     # slab rows cover all tap reads
    L = w_packed.shape[0]

    # --- prologue (one fused XLA op): NCHW -> padded, column-packed bf16 slab ---
    xh = jnp.transpose(x_nchw, (0, 2, 3, 1)).astype(jnp.bfloat16)     # NHWC
    xh = jnp.pad(xh, ((0, 0), (0, 0), (0, 0), (0, CH - c_in)))        # channel pad
    xh = xh.reshape(B, H, Wg, G * CH)                                 # G cols per row
    xh = jnp.pad(xh, ((0, 0), (1, 1), (1, 1), (0, 0)))                # halo rows/groups
    slab = xh.reshape(B, (H + 2) * Wgp, LANES)
    slab = jnp.pad(slab, ((0, 0), (0, p2 - (H + 2) * Wgp), (0, 0)))   # tail rows

    kernel = functools.partial(_fused_unet_conv_kernel,
                               n_rows=n_rows, Wgp=Wgp, Wg=Wg, n_layers=L)

    flops = int(2 * B * L * n_rows * (TAPS * LANES) * LANES)
    bytes_accessed = int(slab.size * 2 + w_packed.size * 2
                         + b_packed.size * 4 + B * n_rows * LANES * 2)

    out_slab = pl.pallas_call(
        kernel,
        out_shape=jax.ShapeDtypeStruct((B, n_rows, LANES), jnp.bfloat16),
        grid=(B,),
        in_specs=[
            pl.BlockSpec((None, p2, LANES), lambda b: (b, 0, 0)),
            pl.BlockSpec((L, TAPS * LANES, LANES), lambda b: (0, 0, 0)),
            pl.BlockSpec((L, 1, LANES), lambda b: (0, 0, 0)),
        ],
        out_specs=pl.BlockSpec((None, n_rows, LANES), lambda b: (b, 0, 0)),
        scratch_shapes=[pltpu.VMEM((p2, LANES), jnp.bfloat16)],
        compiler_params=pltpu.CompilerParams(
            dimension_semantics=("parallel",)),
        cost_estimate=pl.CostEstimate(flops=flops, transcendentals=0,
                                      bytes_accessed=bytes_accessed),
    )(slab, w_packed, b_packed)

    # --- epilogue: unpack col-groups, drop halo groups / pad channels, to f32 NCHW ---
    out = out_slab.reshape(B, H, Wgp, G, CH)[:, :, :Wg, :, :c_out_final]
    out = out.reshape(B, H, W, c_out_final)
    return jnp.transpose(out, (0, 3, 1, 2)).astype(jnp.float32)


# ----------------------------------------------------------------------------
# Free_UNetModel in JAX/Pallas
# ----------------------------------------------------------------------------
class FreeUNetModelPallas:
    def __init__(self, b1, b2, s1, s2, model_channels, num_classes=None,
                 key=jax.random.PRNGKey(42)):
        self.b1, self.b2, self.s1, self.s2 = b1, b2, s1, s2
        self.model_channels = model_channels
        self.num_classes = num_classes
        assert max(3, model_channels) <= LANES, "model_channels > 128 needs K/N tiling"

        C = model_channels
        keys = jax.random.split(key, 12)

        def conv_params(k1, k2, cin, cout):
            # stored as (kh, kw, Cin, Cout)
            w = jax.random.normal(k1, (3, 3, cin, cout), jnp.float32) * 0.1
            b = jax.random.normal(k2, (cout,), jnp.float32) * 0.1
            return w, b

        self.w_in, self.b_in = conv_params(keys[0], keys[1], 3, C)
        self.w_mid, self.b_mid = conv_params(keys[2], keys[3], C, C)
        self.w_out, self.b_out = conv_params(keys[4], keys[5], C, C)
        self.w_fin, self.b_fin = conv_params(keys[6], keys[7], C, 3)
        self.final_out_channels = 3

        self._layers = [(self.w_in, self.b_in), (self.w_mid, self.b_mid),
                        (self.w_out, self.b_out), (self.w_fin, self.b_fin)]
        self._pack_cache = {}

        # time_embed: nn.Linear(C, C) — plain JAX, its result is not consumed
        # by the reference forward output.
        self.te_w = jax.random.normal(keys[8], (C, C), jnp.float32) * 0.1
        self.te_b = jax.random.normal(keys[9], (C,), jnp.float32) * 0.1

        if num_classes is not None:
            self.label_emb = (
                jax.random.normal(keys[10], (num_classes, C), jnp.float32) * 0.1)

        self._temb_key = keys[11]

    # ---- layout selection / lazy packing -------------------------------------
    def _choose_group_cols(self, W):
        max_ch = max(3, self.model_channels)
        for G in (4, 2, 1):
            if max_ch <= LANES // G and W % G == 0:
                return G
        return 1

    def _get_packed(self, G):
        if G not in self._pack_cache:
            self._pack_cache[G] = pack_conv_weights(self._layers, G)
        return self._pack_cache[G]

    # ---- reference-matching pieces --------------------------------------------
    def timestep_embedding(self, timesteps, dim):
        # Reference returns torch.randn((B, dim)); here a deterministic draw.
        return jax.random.normal(self._temb_key, (timesteps.shape[0], dim),
                                 jnp.float32)

    def __call__(self, x, timesteps=None, context=None, y=None):
        assert (y is not None) == (self.num_classes is not None), (
            "must specify y if and only if the model is class-conditional")

        # time / label embedding: computed (plain JAX) but, as in the reference
        # forward, unused by the conv path.
        t_emb = self.timestep_embedding(timesteps, self.model_channels)
        emb = t_emb @ self.te_w + self.te_b
        if self.num_classes is not None:
            emb = emb + self.label_emb[y]
        del emb

        G = self._choose_group_cols(x.shape[3])
        w_packed, b_packed = self._get_packed(G)
        return fused_conv_chain(x, w_packed, b_packed,
                                self.final_out_channels, G)


# ----------------------------------------------------------------------------
# main
# ----------------------------------------------------------------------------
if __name__ == "__main__":
    key = jax.random.PRNGKey(0)
    kx, kmodel = jax.random.split(key)

    B, C_IN, H, W = 2, 3, 16, 16
    MODEL_CHANNELS = 32

    x = jax.random.normal(kx, (B, C_IN, H, W), jnp.float32)
    timesteps = jnp.arange(B, dtype=jnp.int32)

    model = FreeUNetModelPallas(
        b1=1.2, b2=1.4, s1=0.9, s2=0.2,
        model_channels=MODEL_CHANNELS, num_classes=None, key=kmodel)

    out = model(x, timesteps=timesteps)
    out = jax.block_until_ready(out)

    assert out.shape == (B, 3, H, W), out.shape
    assert bool(jnp.all(jnp.isfinite(out)))

    # sanity check vs f32 lax conv reference (kernel uses bf16 MXU operands and
    # a bf16 output slab, so compare with a scale-relative tolerance).
    def ref_conv(x_nchw, w_hwio, b):
        w_oihw = jnp.transpose(w_hwio, (3, 2, 0, 1))
        yr = jax.lax.conv_general_dilated(
            x_nchw, w_oihw, window_strides=(1, 1), padding="SAME",
            dimension_numbers=("NCHW", "OIHW", "NCHW"))
        return yr + b.reshape(1, -1, 1, 1)

    r = x
    for (w_, b_) in model._layers:
        r = ref_conv(r, w_, b_)

    err = float(jnp.max(jnp.abs(out - r)))
    scale = float(jnp.max(jnp.abs(r))) + 1e-6
    assert err <= 0.05 * scale, (err, scale)

    print("KERNEL_OK")
</pallas_src>

<mosaic_0001>
module attributes {stable_mosaic.version = 11 : i64} {
  func.func @_fused_unet_conv_kernel(%arg0: i32, %arg1: memref<1x112x128xbf16, #tpu.memory_space<vmem>>, %arg2: memref<4x1152x128xbf16, #tpu.memory_space<vmem>>, %arg3: memref<4x1x128xf32, #tpu.memory_space<vmem>>, %arg4: memref<1x96x128xbf16, #tpu.memory_space<vmem>>, %arg5: memref<112x128xbf16, #tpu.memory_space<vmem>>) attributes {dimension_semantics = [#tpu.dimension_semantics<parallel>], iteration_bounds = array<i64: 2>, scalar_prefetch = 0 : i64, scratch_operands = 1 : i64, tpu.core_type = #tpu.core_type<tc>, window_params = [{transform_indices = @transform_0, window_bounds = array<i64: 1, 112, 128>}, {pipeline_mode = #tpu.pipeline_mode<synchronous>, transform_indices = @transform_1, window_bounds = array<i64: 4, 1152, 128>}, {pipeline_mode = #tpu.pipeline_mode<synchronous>, transform_indices = @transform_2, window_bounds = array<i64: 4, 1, 128>}, {transform_indices = @transform_3, window_bounds = array<i64: 1, 96, 128>}]} {
    %0 = tpu.iota {dimensions = array<i32: 0>} : vector<96x1xi32>
    %c6_i32 = arith.constant 6 : i32
    %c0_i32 = arith.constant 0 : i32
    %1 = arith.cmpi eq, %c6_i32, %c0_i32 : i32
    %c1_i32 = arith.constant 1 : i32
    %2 = arith.select %1, %c1_i32, %c6_i32 : i32
    %3 = vector.broadcast %2 : i32 to vector<96x1xi32>
    %4 = arith.remsi %0, %3 : vector<96x1xi32>
    %c0_i32_0 = arith.constant 0 : i32
    %5 = vector.broadcast %c0_i32_0 : i32 to vector<96x1xi32>
    %6 = arith.cmpi ne, %4, %5 : vector<96x1xi32>
    %c0_i32_1 = arith.constant 0 : i32
    %7 = vector.broadcast %c0_i32_1 : i32 to vector<96x1xi32>
    %8 = arith.cmpi slt, %4, %7 : vector<96x1xi32>
    %c0_i32_2 = arith.constant 0 : i32
    %9 = arith.cmpi slt, %2, %c0_i32_2 : i32
    %10 = vector.broadcast %9 : i1 to vector<96x1xi1>
    %11 = vector.broadcast %10 : vector<96x1xi1> to vector<96x1xi1>
    %12 = arith.xori %8, %11 : vector<96x1xi1>
    %13 = arith.andi %12, %6 : vector<96x1xi1>
    %14 = vector.broadcast %2 : i32 to vector<96x1xi32>
    %15 = arith.addi %4, %14 : vector<96x1xi32>
    %16 = arith.select %13, %15, %4 : vector<96x1xi1>, vector<96x1xi32>
    %c4_i32 = arith.constant 4 : i32
    %17 = vector.broadcast %c4_i32 : i32 to vector<96x1xi32>
    %18 = arith.cmpi slt, %16, %17 : vector<96x1xi32>
    %cst = arith.constant 0.000000e+00 : bf16
    %19 = vector.broadcast %cst : bf16 to vector<7x128xbf16>
    %c0 = arith.constant 0 : index
    %c0_3 = arith.constant 0 : index
    %20 = vector.load %arg5[%c0, %c0_3] : memref<112x128xbf16, #tpu.memory_space<vmem>>, vector<7x128xbf16>
    tpu.vector_store %arg5[%c0, %c0_3], %19 {strides = array<i32>} : memref<112x128xbf16, #tpu.memory_space<vmem>>, vector<7x128xbf16>,
    %cst_4 = arith.constant 0.000000e+00 : bf16
    %21 = vector.broadcast %cst_4 : bf16 to vector<9x128xbf16>
    %c103 = arith.constant 103 : index
    %c0_5 = arith.constant 0 : index
    %22 = vector.load %arg5[%c103, %c0_5] : memref<112x128xbf16, #tpu.memory_space<vmem>>, vector<9x128xbf16>
    tpu.vector_store %arg5[%c103, %c0_5], %21 {strides = array<i32>} : memref<112x128xbf16, #tpu.memory_space<vmem>>, vector<9x128xbf16>,
    %c0_6 = arith.constant 0 : index
    %c0_7 = arith.constant 0 : index
    %c0_8 = arith.constant 0 : index
    %23 = vector.load %arg1[%c0_6, %c0_7, %c0_8] : memref<1x112x128xbf16, #tpu.memory_space<vmem>>, vector<1x96x128xbf16>
    %24 = vector.shape_cast %23 : vector<1x96x128xbf16> to vector<96x128xbf16>
    %c0_9 = arith.constant 0 : index
    %c1 = arith.constant 1 : index
    %c0_10 = arith.constant 0 : index
    %25 = vector.load %arg1[%c0_9, %c1, %c0_10] : memref<1x112x128xbf16, #tpu.memory_space<vmem>>, vector<1x96x128xbf16>
    %26 = vector.shape_cast %25 : vector<1x96x128xbf16> to vector<96x128xbf16>
    %c0_11 = arith.constant 0 : index
    %c2 = arith.constant 2 : index
    %c0_12 = arith.constant 0 : index
    %27 = vector.load %arg1[%c0_11, %c2, %c0_12] : memref<1x112x128xbf16, #tpu.memory_space<vmem>>, vector<1x96x128xbf16>
    %28 = vector.shape_cast %27 : vector<1x96x128xbf16> to vector<96x128xbf16>
    %c0_13 = arith.constant 0 : index
    %c6 = arith.constant 6 : index
    %c0_14 = arith.constant 0 : index
    %29 = vector.load %arg1[%c0_13, %c6, %c0_14] : memref<1x112x128xbf16, #tpu.memory_space<vmem>>, vector<1x96x128xbf16>
    %30 = vector.shape_cast %29 : vector<1x96x128xbf16> to vector<96x128xbf16>
    %c0_15 = arith.constant 0 : index
    %c7 = arith.constant 7 : index
    %c0_16 = arith.constant 0 : index
    %31 = vector.load %arg1[%c0_15, %c7, %c0_16] : memref<1x112x128xbf16, #tpu.memory_space<vmem>>, vector<1x96x128xbf16>
    %32 = vector.shape_cast %31 : vector<1x96x128xbf16> to vector<96x128xbf16>
    %c0_17 = arith.constant 0 : index
    %c8 = arith.constant 8 : index
    %c0_18 = arith.constant 0 : index
    %33 = vector.load %arg1[%c0_17, %c8, %c0_18] : memref<1x112x128xbf16, #tpu.memory_space<vmem>>, vector<1x96x128xbf16>
    %34 = vector.shape_cast %33 : vector<1x96x128xbf16> to vector<96x128xbf16>
    %c0_19 = arith.constant 0 : index
    %c12 = arith.constant 12 : index
    %c0_20 = arith.constant 0 : index
    %35 = vector.load %arg1[%c0_19, %c12, %c0_20] : memref<1x112x128xbf16, #tpu.memory_space<vmem>>, vector<1x96x128xbf16>
    %36 = vector.shape_cast %35 : vector<1x96x128xbf16> to vector<96x128xbf16>
    %c0_21 = arith.constant 0 : index
    %c13 = arith.constant 13 : index
    %c0_22 = arith.constant 0 : index
    %37 = vector.load %arg1[%c0_21, %c13, %c0_22] : memref<1x112x128xbf16, #tpu.memory_space<vmem>>, vector<1x96x128xbf16>
    %38 = vector.shape_cast %37 : vector<1x96x128xbf16> to vector<96x128xbf16>
    %c0_23 = arith.constant 0 : index
    %c14 = arith.constant 14 : index
    %c0_24 = arith.constant 0 : index
    %39 = vector.load %arg1[%c0_23, %c14, %c0_24] : memref<1x112x128xbf16, #tpu.memory_space<vmem>>, vector<1x96x128xbf16>
    %40 = vector.shape_cast %39 : vector<1x96x128xbf16> to vector<96x128xbf16>
    %41 = tpu.concatenate %24, %26, %28, %30, %32, %34, %36, %38, %40 in 1 : vector<96x128xbf16>, vector<96x128xbf16>, vector<96x128xbf16>, vector<96x128xbf16>, vector<96x128xbf16>, vector<96x128xbf16>, vector<96x128xbf16>, vector<96x128xbf16>, vector<96x128xbf16> -> vector<96x1152xbf16>
    %c0_25 = arith.constant 0 : index
    %c0_26 = arith.constant 0 : index
    %c0_27 = arith.constant 0 : index
    %42 = vector.load %arg2[%c0_25, %c0_26, %c0_27] : memref<4x1152x128xbf16, #tpu.memory_space<vmem>>, vector<1x1152x128xbf16>
    %43 = vector.shape_cast %42 : vector<1x1152x128xbf16> to vector<1152x128xbf16>
    %cst_28 = arith.constant dense<0.000000e+00> : vector<96x128xf32>
    %44 = tpu.matmul %41, %43, %cst_28 {dimension_numbers = #tpu.dot_dimension_numbers<[1], [0], [0], [1], [0, 0, 1, 1], [], []>} : vector<96x1152xbf16>, vector<1152x128xbf16>, vector<96x128xf32> -> vector<96x128xf32>
    %c0_29 = arith.constant 0 : index
    %c0_30 = arith.constant 0 : index
    %c0_31 = arith.constant 0 : index
    %45 = vector.load %arg3[%c0_29, %c0_30, %c0_31] : memref<4x1x128xf32, #tpu.memory_space<vmem>>, vector<1x1x128xf32>
    %46 = vector.shape_cast %45 : vector<1x1x128xf32> to vector<1x128xf32>
    %47 = vector.broadcast %46 : vector<1x128xf32> to vector<96x128xf32>
    %48 = arith.addf %44, %47 : vector<96x128xf32>
    %cst_32 = arith.constant 0.000000e+00 : f32
    %49 = vector.shape_cast %18 : vector<96x1xi1> to vector<96x1xi1>
    %50 = vector.broadcast %49 : vector<96x1xi1> to vector<96x128xi1>
    %51 = vector.broadcast %cst_32 : f32 to vector<96x128xf32>
    %52 = arith.select %50, %48, %51 : vector<96x128xi1>, vector<96x128xf32>
    %53 = arith.truncf %52 : vector<96x128xf32> to vector<96x128xbf16>
    %c7_33 = arith.constant 7 : index
    %c0_34 = arith.constant 0 : index
    %54 = vector.load %arg5[%c7_33, %c0_34] : memref<112x128xbf16, #tpu.memory_space<vmem>>, vector<96x128xbf16>
    tpu.vector_store %arg5[%c7_33, %c0_34], %53 {strides = array<i32>} : memref<112x128xbf16, #tpu.memory_space<vmem>>, vector<96x128xbf16>,
    %c0_35 = arith.constant 0 : index
    %c0_36 = arith.constant 0 : index
    %55 = vector.load %arg5[%c0_35, %c0_36] : memref<112x128xbf16, #tpu.memory_space<vmem>>, vector<96x128xbf16>
    %c1_37 = arith.constant 1 : index
    %c0_38 = arith.constant 0 : index
    %56 = vector.load %arg5[%c1_37, %c0_38] : memref<112x128xbf16, #tpu.memory_space<vmem>>, vector<96x128xbf16>
    %c2_39 = arith.constant 2 : index
    %c0_40 = arith.constant 0 : index
    %57 = vector.load %arg5[%c2_39, %c0_40] : memref<112x128xbf16, #tpu.memory_space<vmem>>, vector<96x128xbf16>
    %c6_41 = arith.constant 6 : index
    %c0_42 = arith.constant 0 : index
    %58 = vector.load %arg5[%c6_41, %c0_42] : memref<112x128xbf16, #tpu.memory_space<vmem>>, vector<96x128xbf16>
    %c7_43 = arith.constant 7 : index
    %c0_44 = arith.constant 0 : index
    %59 = vector.load %arg5[%c7_43, %c0_44] : memref<112x128xbf16, #tpu.memory_space<vmem>>, vector<96x128xbf16>
    %c8_45 = arith.constant 8 : index
    %c0_46 = arith.constant 0 : index
    %60 = vector.load %arg5[%c8_45, %c0_46] : memref<112x128xbf16, #tpu.memory_space<vmem>>, vector<96x128xbf16>
    %c12_47 = arith.constant 12 : index
    %c0_48 = arith.constant 0 : index
    %61 = vector.load %arg5[%c12_47, %c0_48] : memref<112x128xbf16, #tpu.memory_space<vmem>>, vector<96x128xbf16>
    %c13_49 = arith.constant 13 : index
    %c0_50 = arith.constant 0 : index
    %62 = vector.load %arg5[%c13_49, %c0_50] : memref<112x128xbf16, #tpu.memory_space<vmem>>, vector<96x128xbf16>
    %c14_51 = arith.constant 14 : index
    %c0_52 = arith.constant 0 : index
    %63 = vector.load %arg5[%c14_51, %c0_52] : memref<112x128xbf16, #tpu.memory_space<vmem>>, vector<96x128xbf16>
    %64 = tpu.concatenate %55, %56, %57, %58, %59, %60, %61, %62, %63 in 1 : vector<96x128xbf16>, vector<96x128xbf16>, vector<96x128xbf16>, vector<96x128xbf16>, vector<96x128xbf16>, vector<96x128xbf16>, vector<96x128xbf16>, vector<96x128xbf16>, vector<96x128xbf16> -> vector<96x1152xbf16>
    %c1_53 = arith.constant 1 : index
    %c0_54 = arith.constant 0 : index
    %c0_55 = arith.constant 0 : index
    %65 = vector.load %arg2[%c1_53, %c0_54, %c0_55] : memref<4x1152x128xbf16, #tpu.memory_space<vmem>>, vector<1x1152x128xbf16>
    %66 = vector.shape_cast %65 : vector<1x1152x128xbf16> to vector<1152x128xbf16>
    %cst_56 = arith.constant dense<0.000000e+00> : vector<96x128xf32>
    %67 = tpu.matmul %64, %66, %cst_56 {dimension_numbers = #tpu.dot_dimension_numbers<[1], [0], [0], [1], [0, 0, 1, 1], [], []>} : vector<96x1152xbf16>, vector<1152x128xbf16>, vector<96x128xf32> -> vector<96x128xf32>
    %c1_57 = arith.constant 1 : index
    %c0_58 = arith.constant 0 : index
    %c0_59 = arith.constant 0 : index
    %68 = vector.load %arg3[%c1_57, %c0_58, %c0_59] : memref<4x1x128xf32, #tpu.memory_space<vmem>>, vector<1x1x128xf32>
    %69 = vector.shape_cast %68 : vector<1x1x128xf32> to vector<1x128xf32>
    %70 = vector.broadcast %69 : vector<1x128xf32> to vector<96x128xf32>
    %71 = arith.addf %67, %70 : vector<96x128xf32>
    %cst_60 = arith.constant 0.000000e+00 : f32
    %72 = vector.shape_cast %18 : vector<96x1xi1> to vector<96x1xi1>
    %73 = vector.broadcast %72 : vector<96x1xi1> to vector<96x128xi1>
    %74 = vector.broadcast %cst_60 : f32 to vector<96x128xf32>
    %75 = arith.select %73, %71, %74 : vector<96x128xi1>, vector<96x128xf32>
    %76 = arith.truncf %75 : vector<96x128xf32> to vector<96x128xbf16>
    %c7_61 = arith.constant 7 : index
    %c0_62 = arith.constant 0 : index
    %77 = vector.load %arg5[%c7_61, %c0_62] : memref<112x128xbf16, #tpu.memory_space<vmem>>, vector<96x128xbf16>
    tpu.vector_store %arg5[%c7_61, %c0_62], %76 {strides = array<i32>} : memref<112x128xbf16, #tpu.memory_space<vmem>>, vector<96x128xbf16>,
    %c0_63 = arith.constant 0 : index
    %c0_64 = arith.constant 0 : index
    %78 = vector.load %arg5[%c0_63, %c0_64] : memref<112x128xbf16, #tpu.memory_space<vmem>>, vector<96x128xbf16>
    %c1_65 = arith.constant 1 : index
    %c0_66 = arith.constant 0 : index
    %79 = vector.load %arg5[%c1_65, %c0_66] : memref<112x128xbf16, #tpu.memory_space<vmem>>, vector<96x128xbf16>
    %c2_67 = arith.constant 2 : index
    %c0_68 = arith.constant 0 : index
    %80 = vector.load %arg5[%c2_67, %c0_68] : memref<112x128xbf16, #tpu.memory_space<vmem>>, vector<96x128xbf16>
    %c6_69 = arith.constant 6 : index
    %c0_70 = arith.constant 0 : index
    %81 = vector.load %arg5[%c6_69, %c0_70] : memref<112x128xbf16, #tpu.memory_space<vmem>>, vector<96x128xbf16>
    %c7_71 = arith.constant 7 : index
    %c0_72 = arith.constant 0 : index
    %82 = vector.load %arg5[%c7_71, %c0_72] : memref<112x128xbf16, #tpu.memory_space<vmem>>, vector<96x128xbf16>
    %c8_73 = arith.constant 8 : index
    %c0_74 = arith.constant 0 : index
    %83 = vector.load %arg5[%c8_73, %c0_74] : memref<112x128xbf16, #tpu.memory_space<vmem>>, vector<96x128xbf16>
    %c12_75 = arith.constant 12 : index
    %c0_76 = arith.constant 0 : index
    %84 = vector.load %arg5[%c12_75, %c0_76] : memref<112x128xbf16, #tpu.memory_space<vmem>>, vector<96x128xbf16>
    %c13_77 = arith.constant 13 : index
    %c0_78 = arith.constant 0 : index
    %85 = vector.load %arg5[%c13_77, %c0_78] : memref<112x128xbf16, #tpu.memory_space<vmem>>, vector<96x128xbf16>
    %c14_79 = arith.constant 14 : index
    %c0_80 = arith.constant 0 : index
    %86 = vector.load %arg5[%c14_79, %c0_80] : memref<112x128xbf16, #tpu.memory_space<vmem>>, vector<96x128xbf16>
    %87 = tpu.concatenate %78, %79, %80, %81, %82, %83, %84, %85, %86 in 1 : vector<96x128xbf16>, vector<96x128xbf16>, vector<96x128xbf16>, vector<96x128xbf16>, vector<96x128xbf16>, vector<96x128xbf16>, vector<96x128xbf16>, vector<96x128xbf16>, vector<96x128xbf16> -> vector<96x1152xbf16>
    %c2_81 = arith.constant 2 : index
    %c0_82 = arith.constant 0 : index
    %c0_83 = arith.constant 0 : index
    %88 = vector.load %arg2[%c2_81, %c0_82, %c0_83] : memref<4x1152x128xbf16, #tpu.memory_space<vmem>>, vector<1x1152x128xbf16>
    %89 = vector.shape_cast %88 : vector<1x1152x128xbf16> to vector<1152x128xbf16>
    %cst_84 = arith.constant dense<0.000000e+00> : vector<96x128xf32>
    %90 = tpu.matmul %87, %89, %cst_84 {dimension_numbers = #tpu.dot_dimension_numbers<[1], [0], [0], [1], [0, 0, 1, 1], [], []>} : vector<96x1152xbf16>, vector<1152x128xbf16>, vector<96x128xf32> -> vector<96x128xf32>
    %c2_85 = arith.constant 2 : index
    %c0_86 = arith.constant 0 : index
    %c0_87 = arith.constant 0 : index
    %91 = vector.load %arg3[%c2_85, %c0_86, %c0_87] : memref<4x1x128xf32, #tpu.memory_space<vmem>>, vector<1x1x128xf32>
    %92 = vector.shape_cast %91 : vector<1x1x128xf32> to vector<1x128xf32>
    %93 = vector.broadcast %92 : vector<1x128xf32> to vector<96x128xf32>
    %94 = arith.addf %90, %93 : vector<96x128xf32>
    %cst_88 = arith.constant 0.000000e+00 : f32
    %95 = vector.shape_cast %18 : vector<96x1xi1> to vector<96x1xi1>
    %96 = vector.broadcast %95 : vector<96x1xi1> to vector<96x128xi1>
    %97 = vector.broadcast %cst_88 : f32 to vector<96x128xf32>
    %98 = arith.select %96, %94, %97 : vector<96x128xi1>, vector<96x128xf32>
    %99 = arith.truncf %98 : vector<96x128xf32> to vector<96x128xbf16>
    %c7_89 = arith.constant 7 : index
    %c0_90 = arith.constant 0 : index
    %100 = vector.load %arg5[%c7_89, %c0_90] : memref<112x128xbf16, #tpu.memory_space<vmem>>, vector<96x128xbf16>
    tpu.vector_store %arg5[%c7_89, %c0_90], %99 {strides = array<i32>} : memref<112x128xbf16, #tpu.memory_space<vmem>>, vector<96x128xbf16>,
    %c0_91 = arith.constant 0 : index
    %c0_92 = arith.constant 0 : index
    %101 = vector.load %arg5[%c0_91, %c0_92] : memref<112x128xbf16, #tpu.memory_space<vmem>>, vector<96x128xbf16>
    %c1_93 = arith.constant 1 : index
    %c0_94 = arith.constant 0 : index
    %102 = vector.load %arg5[%c1_93, %c0_94] : memref<112x128xbf16, #tpu.memory_space<vmem>>, vector<96x128xbf16>
    %c2_95 = arith.constant 2 : index
    %c0_96 = arith.constant 0 : index
    %103 = vector.load %arg5[%c2_95, %c0_96] : memref<112x128xbf16, #tpu.memory_space<vmem>>, vector<96x128xbf16>
    %c6_97 = arith.constant 6 : index
    %c0_98 = arith.constant 0 : index
    %104 = vector.load %arg5[%c6_97, %c0_98] : memref<112x128xbf16, #tpu.memory_space<vmem>>, vector<96x128xbf16>
    %c7_99 = arith.constant 7 : index
    %c0_100 = arith.constant 0 : index
    %105 = vector.load %arg5[%c7_99, %c0_100] : memref<112x128xbf16, #tpu.memory_space<vmem>>, vector<96x128xbf16>
    %c8_101 = arith.constant 8 : index
    %c0_102 = arith.constant 0 : index
    %106 = vector.load %arg5[%c8_101, %c0_102] : memref<112x128xbf16, #tpu.memory_space<vmem>>, vector<96x128xbf16>
    %c12_103 = arith.constant 12 : index
    %c0_104 = arith.constant 0 : index
    %107 = vector.load %arg5[%c12_103, %c0_104] : memref<112x128xbf16, #tpu.memory_space<vmem>>, vector<96x128xbf16>
    %c13_105 = arith.constant 13 : index
    %c0_106 = arith.constant 0 : index
    %108 = vector.load %arg5[%c13_105, %c0_106] : memref<112x128xbf16, #tpu.memory_space<vmem>>, vector<96x128xbf16>
    %c14_107 = arith.constant 14 : index
    %c0_108 = arith.constant 0 : index
    %109 = vector.load %arg5[%c14_107, %c0_108] : memref<112x128xbf16, #tpu.memory_space<vmem>>, vector<96x128xbf16>
    %110 = tpu.concatenate %101, %102, %103, %104, %105, %106, %107, %108, %109 in 1 : vector<96x128xbf16>, vector<96x128xbf16>, vector<96x128xbf16>, vector<96x128xbf16>, vector<96x128xbf16>, vector<96x128xbf16>, vector<96x128xbf16>, vector<96x128xbf16>, vector<96x128xbf16> -> vector<96x1152xbf16>
    %c3 = arith.constant 3 : index
    %c0_109 = arith.constant 0 : index
    %c0_110 = arith.constant 0 : index
    %111 = vector.load %arg2[%c3, %c0_109, %c0_110] : memref<4x1152x128xbf16, #tpu.memory_space<vmem>>, vector<1x1152x128xbf16>
    %112 = vector.shape_cast %111 : vector<1x1152x128xbf16> to vector<1152x128xbf16>
    %cst_111 = arith.constant dense<0.000000e+00> : vector<96x128xf32>
    %113 = tpu.matmul %110, %112, %cst_111 {dimension_numbers = #tpu.dot_dimension_numbers<[1], [0], [0], [1], [0, 0, 1, 1], [], []>} : vector<96x1152xbf16>, vector<1152x128xbf16>, vector<96x128xf32> -> vector<96x128xf32>
    %c3_112 = arith.constant 3 : index
    %c0_113 = arith.constant 0 : index
    %c0_114 = arith.constant 0 : index
    %114 = vector.load %arg3[%c3_112, %c0_113, %c0_114] : memref<4x1x128xf32, #tpu.memory_space<vmem>>, vector<1x1x128xf32>
    %115 = vector.shape_cast %114 : vector<1x1x128xf32> to vector<1x128xf32>
    %116 = vector.broadcast %115 : vector<1x128xf32> to vector<96x128xf32>
    %117 = arith.addf %113, %116 : vector<96x128xf32>
    %118 = arith.truncf %117 : vector<96x128xf32> to vector<96x128xbf16>
    %c0_115 = arith.constant 0 : index
    %c0_116 = arith.constant 0 : index
    %c0_117 = arith.constant 0 : index
    %119 = vector.load %arg4[%c0_115, %c0_116, %c0_117] : memref<1x96x128xbf16, #tpu.memory_space<vmem>>, vector<1x96x128xbf16>
    %120 = vector.shape_cast %119 : vector<1x96x128xbf16> to vector<96x128xbf16>
    %121 = vector.shape_cast %118 : vector<96x128xbf16> to vector<1x96x128xbf16>
    tpu.vector_store %arg4[%c0_115, %c0_116, %c0_117], %121 {strides = array<i32>} : memref<1x96x128xbf16, #tpu.memory_space<vmem>>, vector<1x96x128xbf16>,
    return
  }
  func.func @transform_0(%arg0: i32) -> (i32, i32, i32) {
    %c0_i32 = arith.constant 0 : i32
    %c0_i32_0 = arith.constant 0 : i32
    %c0_i32_1 = arith.constant 0 : i32
    return %arg0, %c0_i32, %c0_i32_0 : i32, i32, i32
  }
  func.func @transform_1(%arg0: i32) -> (i32, i32, i32) {
    %c0_i32 = arith.constant 0 : i32
    %c0_i32_0 = arith.constant 0 : i32
    %c0_i32_1 = arith.constant 0 : i32
    %c0_i32_2 = arith.constant 0 : i32
    return %c0_i32, %c0_i32_0, %c0_i32_1 : i32, i32, i32
  }
  func.func @transform_2(%arg0: i32) -> (i32, i32, i32) {
    %c0_i32 = arith.constant 0 : i32
    %c0_i32_0 = arith.constant 0 : i32
    %c0_i32_1 = arith.constant 0 : i32
    %c0_i32_2 = arith.constant 0 : i32
    return %c0_i32, %c0_i32_0, %c0_i32_1 : i32, i32, i32
  }
  func.func @transform_3(%arg0: i32) -> (i32, i32, i32) {
    %c0_i32 = arith.constant 0 : i32
    %c0_i32_0 = arith.constant 0 : i32
    %c0_i32_1 = arith.constant 0 : i32
    return %arg0, %c0_i32, %c0_i32_0 : i32, i32, i32
  }
}

</mosaic_0001>

<llo_original>
// kernel: fused_conv_chain.1
$region0: #{fused_conv_chain.1}
  #allocation0 [shape = 'u32[]', space=smem, size = 0x4, offset = 0x4, fixed_abs, tag = 'smem constant byte address 0x4 - core index']
  #allocation1 [shape = 'u32[72,128]{1,0:T(1,128)}', space=vmem, size = 0x9000, scoped, tag = 'internal scratch']
  #allocation2 [shape = 'bf16[112,128]{1,0:T(8,128)(2,1)}', space=vmem, size = 0x7000, scoped, tag = 'scratch operand']
  %s0 = inlined_call_operand.vmem [shape: bf16[2,112,128], index: 0, kind: input, shape index: {}]
  %s1 = inlined_call_operand.hbm [shape: bf16[4,1152,128], index: 1, kind: input, shape index: {}]
  %s2 = inlined_call_operand.hbm [shape: f32[4,1,128], index: 2, kind: input, shape index: {}]
  %s3 = inlined_call_operand.vmem [shape: bf16[2,96,128], index: 3, kind: output, shape index: {}]
  %s4 = sld [smem:[#allocation0]]
  $region53: #{fused_conv_chain.1} parent=0
    _
  %s6 = ssub.s32 1, %s4
  %s7 = scalar_select 0, %s6, %s4
  $region1: #{fused_conv_chain.1} parent=0
    #allocation3 [shape = 'u8[1179648]{0}', space=vmem, size = 0x120000, scoped, tag = 'input window, operand 1, single buffered']
    #allocation4 [shape = 's32[2]{0}', space=sflag, size = 0x8, scoped, tag = 'scoped memory for fused_conv_chain.1']
    #allocation5 [shape = 'u8[2048]{0}', space=vmem, size = 0x800, scoped, tag = 'input window, operand 2, single buffered']
    #allocation6 [shape = 's32[1]{0}', space=sflag, size = 0x4, scoped, tag = 'scoped memory for fused_conv_chain.1']
    %8 = vsyncpa [#allocation4], 0
    %9 = vsyncpa [#allocation6], 0
    loop: start=0, step=1, limit=4
    $region2: #{fused_conv_chain.1} parent=1 // loop_pre_header
      _
    $region3: #{fused_conv_chain.1} parent=1 // loop_header
      %s11 = sphi 0, %s15
      %p12 = scmp.ge.s32.totalorder %s11, 4
      %s21 = sphi 0, %s23
      %s24 = sphi 0, %s21
      %s25 = sphi 0, %s24
      %s41 = sphi 0, %s25
      %s45 = sphi 0, %s45
      %s47 = sphi 0, %s45
      %s48 = sphi 0, %s47
      %s62 = sphi 0, %s48
      %s66 = sphi 0, %s66
      %s68 = sphi 0, %s66
      %s69 = sphi 0, %s68
      %s83 = sphi 0, %s69
      %s89 = sphi 0, %s91
      %s92 = sphi 0, %s89
      %s93 = sphi 0, %s92
      %s109 = sphi 0, %s93
    $region4: #{fused_conv_chain.1} parent=1 // loop_header_branch
      %14 = sbr.rel (%p12) target = $region8
    $region5: #{fused_conv_chain.1} parent=1 // loop_body
      %s16 = ssub.s32 %s11, 1
      %s17 = ssub.s32 %s11, 2
      %s18 = sadd.s32 %s11, 1
      %s19 = ssub.s32 %s11, %s18
      %p20 = scmp.eq.s32.totalorder %s19, 0
      %s22 = sadd.s32 %s21, 1
      %s23 = scalar_select %p20, %s21, %s22
      %p26 = pneg %p20
      %p27 = scmp.eq.s32.totalorder %s11, 1
      %p28 = por %p26, %p27
      %p29 = scmp.ne.s32.totalorder %s21, %s24
      %p30 = scmp.eq.s32.totalorder %s11, 0
      %p31 = por %p29, %p30
      %p32 = scmp.ne.s32.totalorder %s21, %s24
      %p33 = scmp.eq.s32.totalorder %s16, 1
      %p34 = por %p32, %p33
      %p35 = scmp.ne.s32.totalorder %s24, %s25
      %p36 = scmp.eq.s32.totalorder %s16, 0
      %p37 = por %p35, %p36
      %p38 = scmp.ne.s32.totalorder %s24, %s25
      %p39 = scmp.eq.s32.totalorder %s17, 1
      %p40 = por %p38, %p39
      %p42 = scmp.ne.s32.totalorder %s25, %s41
      %p43 = scmp.eq.s32.totalorder %s17, 0
      %p44 = por %p42, %p43
      %s46 = sadd.s32 %s45, 1
      %p49 = scmp.eq.s32.totalorder %s11, 1
      %p50 = scmp.ne.s32.totalorder %s45, %s47
      %p51 = scmp.eq.s32.totalorder %s11, 0
      %p52 = por %p50, %p51
      %p53 = scmp.ne.s32.totalorder %s45, %s47
      %p54 = scmp.eq.s32.totalorder %s16, 1
      %p55 = por %p53, %p54
      %p56 = scmp.ne.s32.totalorder %s47, %s48
      %p57 = scmp.eq.s32.totalorder %s16, 0
      %p58 = por %p56, %p57
      %p59 = scmp.ne.s32.totalorder %s47, %s48
      %p60 = scmp.eq.s32.totalorder %s17, 1
      %p61 = por %p59, %p60
      %p63 = scmp.ne.s32.totalorder %s48, %s62
      %p64 = scmp.eq.s32.totalorder %s17, 0
      %p65 = por %p63, %p64
      %s67 = sadd.s32 %s66, 1
      %p70 = scmp.eq.s32.totalorder %s11, 1
      %p71 = scmp.ne.s32.totalorder %s66, %s68
      %p72 = scmp.eq.s32.totalorder %s11, 0
      %p73 = por %p71, %p72
      %p74 = scmp.ne.s32.totalorder %s66, %s68
      %p75 = scmp.eq.s32.totalorder %s16, 1
      %p76 = por %p74, %p75
      %p77 = scmp.ne.s32.totalorder %s68, %s69
      %p78 = scmp.eq.s32.totalorder %s16, 0
      %p79 = por %p77, %p78
      %p80 = scmp.ne.s32.totalorder %s68, %s69
      %p81 = scmp.eq.s32.totalorder %s17, 1
      %p82 = por %p80, %p81
      %p84 = scmp.ne.s32.totalorder %s69, %s83
      %p85 = scmp.eq.s32.totalorder %s17, 0
      %p86 = por %p84, %p85
      %s87 = ssub.s32 %s11, %s18
      %p88 = scmp.eq.s32.totalorder %s87, 0
      %s90 = sadd.s32 %s89, 1
      %s91 = scalar_select %p88, %s89, %s90
      %p94 = pneg %p88
      %p95 = scmp.eq.s32.totalorder %s11, 1
      %p96 = por %p94, %p95
      %p97 = scmp.ne.s32.totalorder %s89, %s92
      %p98 = scmp.eq.s32.totalorder %s11, 0
      %p99 = por %p97, %p98
      %p100 = scmp.ne.s32.totalorder %s89, %s92
      %p101 = scmp.eq.s32.totalorder %s16, 1
      %p102 = por %p100, %p101
      %p103 = scmp.ne.s32.totalorder %s92, %s93
      %p104 = scmp.eq.s32.totalorder %s16, 0
      %p105 = por %p103, %p104
      %p106 = scmp.ne.s32.totalorder %s92, %s93
      %p107 = scmp.eq.s32.totalorder %s17, 1
      %p108 = por %p106, %p107
      %p110 = scmp.ne.s32.totalorder %s93, %s109
      %p111 = scmp.eq.s32.totalorder %s17, 0
      %p112 = por %p110, %p111
      %p113 = scmp.le.s32.totalorder 1, %s11
      %p114 = scmp.lt.s32.totalorder %s11, 3
      %p115 = pnand %p113, %p114
      %p116 = pneg %p115
      // Predicated region
      $region9: #{fused_conv_chain.1} parent=5 // pred_check
        _
      $region10: #{fused_conv_chain.1} parent=5 // pred_check_branch
        %118 = sbr.rel (%p115) target = $region12
      $region11: #{fused_conv_chain.1} parent=5 // pred_region
        %s119 = ssub.s32 %s11, 1
        // Predicated region
        $region13: #{fused_conv_chain.1} parent=11 // pred_check
          %p120 = pneg %p58
        $region14: #{fused_conv_chain.1} parent=11 // pred_check_branch
          %122 = sbr.rel (%p120) target = $region16
        $region15: #{fused_conv_chain.1} parent=11 // pred_region
          %124 = vsyncadd [#allocation4], 0
          %s125 = sshll.u32 %s1, 4
          %s126 = int_to_ptr.hbm [resolvable:$true] %s125
          %s127 = sshll.u32 [#allocation3], 4
          %s128 = int_to_ptr.vmem [resolvable:$true] %s127
          %133 = dma.hbm_to_vmem [thread:$0]  %s126, 36864, %s128, [#allocation4], 64, 64, 4
        $region16: #{fused_conv_chain.1} parent=11 // pred_fallthru
          _
        // Predicated region
        $region17: #{fused_conv_chain.1} parent=11 // pred_check
          %p134 = pneg %p79
        $region18: #{fused_conv_chain.1} parent=11 // pred_check_branch
          %136 = sbr.rel (%p134) target = $region20
        $region19: #{fused_conv_chain.1} parent=11 // pred_region
          %138 = vsyncadd [#allocation6], 0
          %s139 = sshll.u32 %s2, 4
          %s140 = int_to_ptr.hbm [resolvable:$true] %s139
          %s141 = sshll.u32 [#allocation5], 4
          %s142 = int_to_ptr.vmem [resolvable:$true] %s141
          %147 = dma.hbm_to_vmem [thread:$0]  %s140, 64, %s142, [#allocation6], 16, 16, 1
        $region20: #{fused_conv_chain.1} parent=11 // pred_fallthru
          _
      $region12: #{fused_conv_chain.1} parent=5 // pred_fallthru
        _
      %p148 = scmp.lt.s32.totalorder %s11, 2
      // Predicated region
      $region21: #{fused_conv_chain.1} parent=5 // pred_check
        %p149 = pneg %p148
      $region22: #{fused_conv_chain.1} parent=5 // pred_check_branch
        %151 = sbr.rel (%p149) target = $region24
      $region23: #{fused_conv_chain.1} parent=5 // pred_region
        // Predicated region
        $region25: #{fused_conv_chain.1} parent=23 // pred_check
          %p152 = pneg %p31
        $region26: #{fused_conv_chain.1} parent=23 // pred_check_branch
          %154 = sbr.rel (%p152) target = $region28
        $region27: #{fused_conv_chain.1} parent=23 // pred_region
          %p155 = scmp.lt.s32.totalorder %s11, 1
          %s156 = scalar_select %p155, %s11, 1
          %s157 = smul.addr %s156, 14
          %s158 = smul.addr %s157, 4
          %s159 = scalar_lea.vmem %s0, %s158
        $region28: #{fused_conv_chain.1} parent=23 // pred_fallthru
          _
      $region24: #{fused_conv_chain.1} parent=5 // pred_fallthru
        _
      %p160 = scmp.le.s32.totalorder 1, %s11
      %p161 = scmp.lt.s32.totalorder %s11, 3
      %p162 = pnand %p160, %p161
      %p163 = pneg %p162
      // Predicated region
      $region29: #{fused_conv_chain.1} parent=5 // pred_check
        _
      $region30: #{fused_conv_chain.1} parent=5 // pred_check_branch
        %165 = sbr.rel (%p162) target = $region32
      $region31: #{fused_conv_chain.1} parent=5 // pred_region
        %s166 = ssub.s32 %s11, 1
        // Predicated region
        $region33: #{fused_conv_chain.1} parent=31 // pred_check
          %p167 = pneg %p58
        $region34: #{fused_conv_chain.1} parent=31 // pred_check_branch
          %169 = sbr.rel (%p167) target = $region36
        $region35: #{fused_conv_chain.1} parent=31 // pred_region
          %171 = dma.done [#allocation4], 36864
        $region36: #{fused_conv_chain.1} parent=31 // pred_fallthru
          _
        // Predicated region
        $region37: #{fused_conv_chain.1} parent=31 // pred_check
          %p172 = pneg %p79
        $region38: #{fused_conv_chain.1} parent=31 // pred_check_branch
          %174 = sbr.rel (%p172) target = $region40
        $region39: #{fused_conv_chain.1} parent=31 // pred_region
          %176 = dma.done [#allocation6], 64
        $region40: #{fused_conv_chain.1} parent=31 // pred_fallthru
          _
        %p177 = scmp.lt.s32.totalorder %s16, 1
        %s178 = scalar_select %p177, %s16, 1
        %s179 = smul.addr %s178, 14
        %s180 = smul.addr %s179, 4
        %s181 = scalar_lea.vmem %s0, %s180
        %p182 = pneg %p37
        %p183 = pneg %p34
        %p184 = pneg %p58
        %p185 = pneg %p55
        %p186 = pneg %p79
        %p187 = pneg %p76
        %p188 = pneg %p105
        %p189 = pneg %p102
        %p190 = scmp.lt.s32.totalorder %s16, 1
        %s191 = scalar_select %p190, %s16, 1
        %s192 = smul.addr %s191, 12
        %s193 = smul.addr %s192, 4
        %s194 = scalar_lea.vmem %s3, %s193
        %p195 = scmp.lt.s32.totalorder %s16, 1
        %s196 = scalar_select %p195, %s16, 1
        %s197 = smul.addr %s196, 14
        %s198 = smul.addr %s197, 4
        %s199 = scalar_lea.vmem %s0, %s198
        %p200 = scmp.lt.s32.totalorder %s16, 1
        %s201 = scalar_select %p200, %s16, 1
        %s202 = smul.addr %s201, 12
        %s203 = smul.addr %s202, 4
        %s204 = scalar_lea.vmem %s3, %s203
        %v206 = vlaneseq
        %v207 = vshrl.u32 %v206, 7
        %v208 = vadd.s32 %v207, 8
        %v209 = vadd.s32 %v207, 16
        %v210 = vadd.s32 %v207, 24
        %v211 = vadd.s32 %v207, 32
        %v212 = vadd.s32 %v207, 40
        %v213 = vadd.s32 %v207, 48
        %v214 = vadd.s32 %v207, 56
        %v215 = vadd.s32 %v207, 64
        %v216 = vadd.s32 %v207, 72
        %v217 = vadd.s32 %v207, 80
        %v218 = vadd.s32 %v207, 88
        %vm219 = vcmp.lt.s32.totalorder %v207, 0
        %v220 = vsub.s32 0, %v207
        %v221 = vsel %vm219, %v220, %v207
        %v222 = vand.u32 %v221, 65535
        %v223 = vshrl.u32 %v221, 16
        %v225 = vmul.u32 %v222, 43691
        %v226 = vmul.u32 %v222, 43690
        %v227 = vmul.u32 %v223, 43691
        %v228 = vmul.u32 %v223, 43690
        %v229 = vshll.u32 %v226, 16
        %v230 = vshrl.u32 %v226, 16
        %v231 = vshll.u32 %v227, 16
        %v232 = vshrl.u32 %v227, 16
        %vm233 = vc.u32 %v225, %v229
        %v234 = vsel %vm233, 1, 0
        %v235 = vadd.s32 %v225, %v229
        %v236 = vadd.s32 %v228, %v234
        %vm237 = vc.u32 %v235, %v231
        %v238 = vsel %vm237, 1, 0
        %v239 = vadd.s32 %v235, %v231
        %v240 = vadd.s32 %v236, %v238
        %v241 = vadd.s32 %v240, %v230
        %v242 = vadd.s32 %v241, %v232
        %v243 = vshrl.u32 %v242, 2
        %v244 = vmul.u32 %v243, 6
        %v245 = vsub.s32 %v221, %v244
        %v246 = vsub.s32 0, %v245
        %v247 = vsel %vm219, %v246, %v245
        %vm248 = vcmp.lt.s32.totalorder %v208, 0
        %v249 = vsub.s32 0, %v208
        %v250 = vsel %vm248, %v249, %v208
        %v251 = vand.u32 %v250, 65535
        %v252 = vshrl.u32 %v250, 16
        %v254 = vmul.u32 %v251, 43691
        %v255 = vmul.u32 %v251, 43690
        %v256 = vmul.u32 %v252, 43691
        %v257 = vmul.u32 %v252, 43690
        %v258 = vshll.u32 %v255, 16
        %v259 = vshrl.u32 %v255, 16
        %v260 = vshll.u32 %v256, 16
        %v261 = vshrl.u32 %v256, 16
        %vm262 = vc.u32 %v254, %v258
        %v263 = vsel %vm262, 1, 0
        %v264 = vadd.s32 %v254, %v258
        %v265 = vadd.s32 %v257, %v263
        %vm266 = vc.u32 %v264, %v260
        %v267 = vsel %vm266, 1, 0
        %v268 = vadd.s32 %v264, %v260
        %v269 = vadd.s32 %v265, %v267
        %v270 = vadd.s32 %v269, %v259
        %v271 = vadd.s32 %v270, %v261
        %v272 = vshrl.u32 %v271, 2
        %v273 = vmul.u32 %v272, 6
        %v274 = vsub.s32 %v250, %v273
        %v275 = vsub.s32 0, %v274
        %v276 = vsel %vm248, %v275, %v274
        %vm277 = vcmp.lt.s32.totalorder %v209, 0
        %v278 = vsub.s32 0, %v209
        %v279 = vsel %vm277, %v278, %v209
        %v280 = vand.u32 %v279, 65535
        %v281 = vshrl.u32 %v279, 16
        %v283 = vmul.u32 %v280, 43691
        %v284 = vmul.u32 %v280, 43690
        %v285 = vmul.u32 %v281, 43691
        %v286 = vmul.u32 %v281, 43690
        %v287 = vshll.u32 %v284, 16
        %v288 = vshrl.u32 %v284, 16
        %v289 = vshll.u32 %v285, 16
        %v290 = vshrl.u32 %v285, 16
        %vm291 = vc.u32 %v283, %v287
        %v292 = vsel %vm291, 1, 0
        %v293 = vadd.s32 %v283, %v287
        %v294 = vadd.s32 %v286, %v292
        %vm295 = vc.u32 %v293, %v289
        %v296 = vsel %vm295, 1, 0
        %v297 = vadd.s32 %v293, %v289
        %v298 = vadd.s32 %v294, %v296
        %v299 = vadd.s32 %v298, %v288
        %v300 = vadd.s32 %v299, %v290
        %v301 = vshrl.u32 %v300, 2
        %v302 = vmul.u32 %v301, 6
        %v303 = vsub.s32 %v279, %v302
        %v304 = vsub.s32 0, %v303
        %v305 = vsel %vm277, %v304, %v303
        %vm306 = vcmp.lt.s32.totalorder %v210, 0
        %v307 = vsub.s32 0, %v210
        %v308 = vsel %vm306, %v307, %v210
        %v309 = vand.u32 %v308, 65535
        %v310 = vshrl.u32 %v308, 16
        %v312 = vmul.u32 %v309, 43691
        %v313 = vmul.u32 %v309, 43690
        %v314 = vmul.u32 %v310, 43691
        %v315 = vmul.u32 %v310, 43690
        %v316 = vshll.u32 %v313, 16
        %v317 = vshrl.u32 %v313, 16
        %v318 = vshll.u32 %v314, 16
        %v319 = vshrl.u32 %v314, 16
        %vm320 = vc.u32 %v312, %v316
        %v321 = vsel %vm320, 1, 0
        %v322 = vadd.s32 %v312, %v316
        %v323 = vadd.s32 %v315, %v321
        %vm324 = vc.u32 %v322, %v318
        %v325 = vsel %vm324, 1, 0
        %v326 = vadd.s32 %v322, %v318
        %v327 = vadd.s32 %v323, %v325
        %v328 = vadd.s32 %v327, %v317
        %v329 = vadd.s32 %v328, %v319
        %v330 = vshrl.u32 %v329, 2
        %v331 = vmul.u32 %v330, 6
        %v332 = vsub.s32 %v308, %v331
        %v333 = vsub.s32 0, %v332
        %v334 = vsel %vm306, %v333, %v332
        %vm335 = vcmp.lt.s32.totalorder %v211, 0
        %v336 = vsub.s32 0, %v211
        %v337 = vsel %vm335, %v336, %v211
        %v338 = vand.u32 %v337, 65535
        %v339 = vshrl.u32 %v337, 16
        %v341 = vmul.u32 %v338, 43691
        %v342 = vmul.u32 %v338, 43690
        %v343 = vmul.u32 %v339, 43691
        %v344 = vmul.u32 %v339, 43690
        %v345 = vshll.u32 %v342, 16
        %v346 = vshrl.u32 %v342, 16
        %v347 = vshll.u32 %v343, 16
        %v348 = vshrl.u32 %v343, 16
        %vm349 = vc.u32 %v341, %v345
        %v350 = vsel %vm349, 1, 0
        %v351 = vadd.s32 %v341, %v345
        %v352 = vadd.s32 %v344, %v350
        %vm353 = vc.u32 %v351, %v347
        %v354 = vsel %vm353, 1, 0
        %v355 = vadd.s32 %v351, %v347
        %v356 = vadd.s32 %v352, %v354
        %v357 = vadd.s32 %v356, %v346
        %v358 = vadd.s32 %v357, %v348
        %v359 = vshrl.u32 %v358, 2
        %v360 = vmul.u32 %v359, 6
        %v361 = vsub.s32 %v337, %v360
        %v362 = vsub.s32 0, %v361
        %v363 = vsel %vm335, %v362, %v361
        %vm364 = vcmp.lt.s32.totalorder %v212, 0
        %v365 = vsub.s32 0, %v212
        %v366 = vsel %vm364, %v365, %v212
        %v367 = vand.u32 %v366, 65535
        %v368 = vshrl.u32 %v366, 16
        %v370 = vmul.u32 %v367, 43691
        %v371 = vmul.u32 %v367, 43690
        %v372 = vmul.u32 %v368, 43691
        %v373 = vmul.u32 %v368, 43690
        %v374 = vshll.u32 %v371, 16
        %v375 = vshrl.u32 %v371, 16
        %v376 = vshll.u32 %v372, 16
        %v377 = vshrl.u32 %v372, 16
        %vm378 = vc.u32 %v370, %v374
        %v379 = vsel %vm378, 1, 0
        %v380 = vadd.s32 %v370, %v374
        %v381 = vadd.s32 %v373, %v379
        %vm382 = vc.u32 %v380, %v376
        %v383 = vsel %vm382, 1, 0
        %v384 = vadd.s32 %v380, %v376
        %v385 = vadd.s32 %v381, %v383
        %v386 = vadd.s32 %v385, %v375
        %v387 = vadd.s32 %v386, %v377
        %v388 = vshrl.u32 %v387, 2
        %v389 = vmul.u32 %v388, 6
        %v390 = vsub.s32 %v366, %v389
        %v391 = vsub.s32 0, %v390
        %v392 = vsel %vm364, %v391, %v390
        %vm393 = vcmp.lt.s32.totalorder %v213, 0
        %v394 = vsub.s32 0, %v213
        %v395 = vsel %vm393, %v394, %v213
        %v396 = vand.u32 %v395, 65535
        %v397 = vshrl.u32 %v395, 16
        %v399 = vmul.u32 %v396, 43691
        %v400 = vmul.u32 %v396, 43690
        %v401 = vmul.u32 %v397, 43691
        %v402 = vmul.u32 %v397, 43690
        %v403 = vshll.u32 %v400, 16
        %v404 = vshrl.u32 %v400, 16
        %v405 = vshll.u32 %v401, 16
        %v406 = vshrl.u32 %v401, 16
        %vm407 = vc.u32 %v399, %v403
        %v408 = vsel %vm407, 1, 0
        %v409 = vadd.s32 %v399, %v403
        %v410 = vadd.s32 %v402, %v408
        %vm411 = vc.u32 %v409, %v405
        %v412 = vsel %vm411, 1, 0
        %v413 = vadd.s32 %v409, %v405
        %v414 = vadd.s32 %v410, %v412
        %v415 = vadd.s32 %v414, %v404
        %v416 = vadd.s32 %v415, %v406
        %v417 = vshrl.u32 %v416, 2
        %v418 = vmul.u32 %v417, 6
        %v419 = vsub.s32 %v395, %v418
        %v420 = vsub.s32 0, %v419
        %v421 = vsel %vm393, %v420, %v419
        %vm422 = vcmp.lt.s32.totalorder %v214, 0
        %v423 = vsub.s32 0, %v214
        %v424 = vsel %vm422, %v423, %v214
        %v425 = vand.u32 %v424, 65535
        %v426 = vshrl.u32 %v424, 16
        %v428 = vmul.u32 %v425, 43691
        %v429 = vmul.u32 %v425, 43690
        %v430 = vmul.u32 %v426, 43691
        %v431 = vmul.u32 %v426, 43690
        %v432 = vshll.u32 %v429, 16
        %v433 = vshrl.u32 %v429, 16
        %v434 = vshll.u32 %v430, 16
        %v435 = vshrl.u32 %v430, 16
        %vm436 = vc.u32 %v428, %v432
        %v437 = vsel %vm436, 1, 0
        %v438 = vadd.s32 %v428, %v432
        %v439 = vadd.s32 %v431, %v437
        %vm440 = vc.u32 %v438, %v434
        %v441 = vsel %vm440, 1, 0
        %v442 = vadd.s32 %v438, %v434
        %v443 = vadd.s32 %v439, %v441
        %v444 = vadd.s32 %v443, %v433
        %v445 = vadd.s32 %v444, %v435
        %v446 = vshrl.u32 %v445, 2
        %v447 = vmul.u32 %v446, 6
        %v448 = vsub.s32 %v424, %v447
        %v449 = vsub.s32 0, %v448
        %v450 = vsel %vm422, %v449, %v448
        %vm451 = vcmp.lt.s32.totalorder %v215, 0
        %v452 = vsub.s32 0, %v215
        %v453 = vsel %vm451, %v452, %v215
        %v454 = vand.u32 %v453, 65535
        %v455 = vshrl.u32 %v453, 16
        %v457 = vmul.u32 %v454, 43691
        %v458 = vmul.u32 %v454, 43690
        %v459 = vmul.u32 %v455, 43691
        %v460 = vmul.u32 %v455, 43690
        %v461 = vshll.u32 %v458, 16
        %v462 = vshrl.u32 %v458, 16
        %v463 = vshll.u32 %v459, 16
        %v464 = vshrl.u32 %v459, 16
        %vm465 = vc.u32 %v457, %v461
        %v466 = vsel %vm465, 1, 0
        %v467 = vadd.s32 %v457, %v461
        %v468 = vadd.s32 %v460, %v466
        %vm469 = vc.u32 %v467, %v463
        %v470 = vsel %vm469, 1, 0
        %v471 = vadd.s32 %v467, %v463
        %v472 = vadd.s32 %v468, %v470
        %v473 = vadd.s32 %v472, %v462
        %v474 = vadd.s32 %v473, %v464
        %v475 = vshrl.u32 %v474, 2
        %v476 = vmul.u32 %v475, 6
        %v477 = vsub.s32 %v453, %v476
        %v478 = vsub.s32 0, %v477
        %v479 = vsel %vm451, %v478, %v477
        %vm480 = vcmp.lt.s32.totalorder %v216, 0
        %v481 = vsub.s32 0, %v216
        %v482 = vsel %vm480, %v481, %v216
        %v483 = vand.u32 %v482, 65535
        %v484 = vshrl.u32 %v482, 16
        %v486 = vmul.u32 %v483, 43691
        %v487 = vmul.u32 %v483, 43690
        %v488 = vmul.u32 %v484, 43691
        %v489 = vmul.u32 %v484, 43690
        %v490 = vshll.u32 %v487, 16
        %v491 = vshrl.u32 %v487, 16
        %v492 = vshll.u32 %v488, 16
        %v493 = vshrl.u32 %v488, 16
        %vm494 = vc.u32 %v486, %v490
        %v495 = vsel %vm494, 1, 0
        %v496 = vadd.s32 %v486, %v490
        %v497 = vadd.s32 %v489, %v495
        %vm498 = vc.u32 %v496, %v492
        %v499 = vsel %vm498, 1, 0
        %v500 = vadd.s32 %v496, %v492
        %v501 = vadd.s32 %v497, %v499
        %v502 = vadd.s32 %v501, %v491
        %v503 = vadd.s32 %v502, %v493
        %v504 = vshrl.u32 %v503, 2
        %v505 = vmul.u32 %v504, 6
        %v506 = vsub.s32 %v482, %v505
        %v507 = vsub.s32 0, %v506
        %v508 = vsel %vm480, %v507, %v506
        %vm509 = vcmp.lt.s32.totalorder %v217, 0
        %v510 = vsub.s32 0, %v217
        %v511 = vsel %vm509, %v510, %v217
        %v512 = vand.u32 %v511, 65535
        %v513 = vshrl.u32 %v511, 16
        %v515 = vmul.u32 %v512, 43691
        %v516 = vmul.u32 %v512, 43690
        %v517 = vmul.u32 %v513, 43691
        %v518 = vmul.u32 %v513, 43690
        %v519 = vshll.u32 %v516, 16
        %v520 = vshrl.u32 %v516, 16
        %v521 = vshll.u32 %v517, 16
        %v522 = vshrl.u32 %v517, 16
        %vm523 = vc.u32 %v515, %v519
        %v524 = vsel %vm523, 1, 0
        %v525 = vadd.s32 %v515, %v519
        %v526 = vadd.s32 %v518, %v524
        %vm527 = vc.u32 %v525, %v521
        %v528 = vsel %vm527, 1, 0
        %v529 = vadd.s32 %v525, %v521
        %v530 = vadd.s32 %v526, %v528
        %v531 = vadd.s32 %v530, %v520
        %v532 = vadd.s32 %v531, %v522
        %v533 = vshrl.u32 %v532, 2
        %v534 = vmul.u32 %v533, 6
        %v535 = vsub.s32 %v511, %v534
        %v536 = vsub.s32 0, %v535
        %v537 = vsel %vm509, %v536, %v535
        %vm538 = vcmp.lt.s32.totalorder %v218, 0
        %v539 = vsub.s32 0, %v218
        %v540 = vsel %vm538, %v539, %v218
        %v541 = vand.u32 %v540, 65535
        %v542 = vshrl.u32 %v540, 16
        %v544 = vmul.u32 %v541, 43691
        %v545 = vmul.u32 %v541, 43690
        %v546 = vmul.u32 %v542, 43691
        %v547 = vmul.u32 %v542, 43690
        %v548 = vshll.u32 %v545, 16
        %v549 = vshrl.u32 %v545, 16
        %v550 = vshll.u32 %v546, 16
        %v551 = vshrl.u32 %v546, 16
        %vm552 = vc.u32 %v544, %v548
        %v553 = vsel %vm552, 1, 0
        %v554 = vadd.s32 %v544, %v548
        %v555 = vadd.s32 %v547, %v553
        %vm556 = vc.u32 %v554, %v550
        %v557 = vsel %vm556, 1, 0
        %v558 = vadd.s32 %v554, %v550
        %v559 = vadd.s32 %v555, %v557
        %v560 = vadd.s32 %v559, %v549
        %v561 = vadd.s32 %v560, %v551
        %v562 = vshrl.u32 %v561, 2
        %v563 = vmul.u32 %v562, 6
        %v564 = vsub.s32 %v540, %v563
        %v565 = vsub.s32 0, %v564
        %v566 = vsel %vm538, %v565, %v564
        %vm567 = vcmp.ne.s32.totalorder %v247, 0
        %vm568 = vcmp.ne.s32.totalorder %v276, 0
        %vm569 = vcmp.ne.s32.totalorder %v305, 0
        %vm570 = vcmp.ne.s32.totalorder %v334, 0
        %vm571 = vcmp.ne.s32.totalorder %v363, 0
        %vm572 = vcmp.ne.s32.totalorder %v392, 0
        %vm573 = vcmp.ne.s32.totalorder %v421, 0
        %vm574 = vcmp.ne.s32.totalorder %v450, 0
        %vm575 = vcmp.ne.s32.totalorder %v479, 0
        %vm576 = vcmp.ne.s32.totalorder %v508, 0
        %vm577 = vcmp.ne.s32.totalorder %v537, 0
        %vm578 = vcmp.ne.s32.totalorder %v566, 0
        %vm579 = vcmp.lt.s32.totalorder %v247, 0
        %vm580 = vcmp.lt.s32.totalorder %v276, 0
        %vm581 = vcmp.lt.s32.totalorder %v305, 0
        %vm582 = vcmp.lt.s32.totalorder %v334, 0
        %vm583 = vcmp.lt.s32.totalorder %v363, 0
        %vm584 = vcmp.lt.s32.totalorder %v392, 0
        %vm585 = vcmp.lt.s32.totalorder %v421, 0
        %vm586 = vcmp.lt.s32.totalorder %v450, 0
        %vm587 = vcmp.lt.s32.totalorder %v479, 0
        %vm588 = vcmp.lt.s32.totalorder %v508, 0
        %vm589 = vcmp.lt.s32.totalorder %v537, 0
        %vm590 = vcmp.lt.s32.totalorder %v566, 0
        %vm591 = vmand %vm579, %vm567
        %vm592 = vmand %vm580, %vm568
        %vm593 = vmand %vm581, %vm569
        %vm594 = vmand %vm582, %vm570
        %vm595 = vmand %vm583, %vm571
        %vm596 = vmand %vm584, %vm572
        %vm597 = vmand %vm585, %vm573
        %vm598 = vmand %vm586, %vm574
        %vm599 = vmand %vm587, %vm575
        %vm600 = vmand %vm588, %vm576
        %vm601 = vmand %vm589, %vm577
        %vm602 = vmand %vm590, %vm578
        %v603 = vadd.s32 %v247, 6
        %v604 = vadd.s32 %v276, 6
        %v605 = vadd.s32 %v305, 6
        %v606 = vadd.s32 %v334, 6
        %v607 = vadd.s32 %v363, 6
        %v608 = vadd.s32 %v392, 6
        %v609 = vadd.s32 %v421, 6
        %v610 = vadd.s32 %v450, 6
        %v611 = vadd.s32 %v479, 6
        %v612 = vadd.s32 %v508, 6
        %v613 = vadd.s32 %v537, 6
        %v614 = vadd.s32 %v566, 6
        %v615 = vsel %vm591, %v603, %v247
        %v616 = vsel %vm592, %v604, %v276
        %v617 = vsel %vm593, %v605, %v305
        %v618 = vsel %vm594, %v606, %v334
        %v619 = vsel %vm595, %v607, %v363
        %v620 = vsel %vm596, %v608, %v392
        %v621 = vsel %vm597, %v609, %v421
        %v622 = vsel %vm598, %v610, %v450
        %v623 = vsel %vm599, %v611, %v479
        %v624 = vsel %vm600, %v612, %v508
        %v625 = vsel %vm601, %v613, %v537
        %v626 = vsel %vm602, %v614, %v566
        %vm627 = vcmp.lt.s32.totalorder %v615, 4
        %vm628 = vcmp.lt.s32.totalorder %v616, 4
        %vm629 = vcmp.lt.s32.totalorder %v617, 4
        %vm630 = vcmp.lt.s32.totalorder %v618, 4
        %vm631 = vcmp.lt.s32.totalorder %v619, 4
        %vm632 = vcmp.lt.s32.totalorder %v620, 4
        %vm633 = vcmp.lt.s32.totalorder %v621, 4
        %vm634 = vcmp.lt.s32.totalorder %v622, 4
        %vm635 = vcmp.lt.s32.totalorder %v623, 4
        %vm636 = vcmp.lt.s32.totalorder %v624, 4
        %vm637 = vcmp.lt.s32.totalorder %v625, 4
        %vm638 = vcmp.lt.s32.totalorder %v626, 4
        %vm639 = vcmask 1043456
        %vm640 = vsmask.f32 3328
        %vm641 = vmand %vm639, %vm640
        %v642 = vld [vmem:[#allocation2] sm:$0xf]
        %v643 = vsel %vm641, 0, %v642
        %644 = vst [vmem:[#allocation2] sm:$0xf] %v643
        %vm645 = vcmask 1043459
        %vm646 = vsmask.f32 7950
        %vm647 = vmand %vm645, %vm646
        %v648 = vld [vmem:[#allocation2 + $0x30] sm:$0x8]
        %v649 = vsel %vm647, 0, %v648
        %650 = vst [vmem:[#allocation2 + $0x30] sm:$0x8] %v649
        %651 = vst [vmem:[#allocation2 + $0x34] sm:$0xf] 0
        %v652 = vld [vmem:[%s199] sm:$0xf]
        %v653 = vld [vmem:[%s199 + $0x4] sm:$0xf]
        %v654 = vld [vmem:[%s199 + $0x8] sm:$0xf]
        %v655 = vld [vmem:[%s199 + $0xc] sm:$0xf]
        %v656 = vld [vmem:[%s199 + $0x10] sm:$0xf]
        %v657 = vld [vmem:[%s199 + $0x14] sm:$0xf]
        %v658 = vld [vmem:[%s199 + $0x18] sm:$0xf]
        %v659 = vld [vmem:[%s199 + $0x1c] sm:$0xf]
        %v660 = vld [vmem:[%s199 + $0x20] sm:$0xf]
        %v661 = vld [vmem:[%s199 + $0x24] sm:$0xf]
        %v662 = vld [vmem:[%s199 + $0x28] sm:$0xf]
        %v663 = vld [vmem:[%s199 + $0x2c] sm:$0xf]
        %v664 = vld [vmem:[%s199 + $0x30] sm:$0x1]
        %v665 = vld [vmem:[%s199] sm:$0xe]
        %v666 = vld [vmem:[%s199] sm:$0x8]
        %v667 = vld [vmem:[%s199 + $0x30] sm:$0x7]
        %v668 = vld [vmem:[%s199 + $0x30] sm:$0xf]
        %v669 = vld [vmem:[%s199 + $0x4] sm:$0xc]
        %v670 = vld [vmem:[%s199 + $0x8] sm:$0xf]
        %v671 = vld [vmem:[%s199 + $0xc] sm:$0xf]
        %v672 = vld [vmem:[%s199 + $0x10] sm:$0xf]
        %v673 = vld [vmem:[%s199 + $0x14] sm:$0xf]
        %v674 = vld [vmem:[%s199 + $0x18] sm:$0xf]
        %v675 = vld [vmem:[%s199 + $0x1c] sm:$0xf]
        %v676 = vld [vmem:[%s199 + $0x20] sm:$0xf]
        %v677 = vld [vmem:[%s199 + $0x24] sm:$0xf]
        %v678 = vld [vmem:[%s199 + $0x28] sm:$0xf]
        %v679 = vld [vmem:[%s199 + $0x2c] sm:$0xf]
        %v680 = vld [vmem:[%s199 + $0x30] sm:$0xf]
        %v681 = vld [vmem:[%s199 + $0x34] sm:$0x3]
        %v682 = vld [vmem:[%s199 + $0x34] sm:$0x7]
        %v683 = vld [vmem:[%s199 + $0x4] sm:$0x8]
        %v696 = vunpack.c.l.b16 %v652
        %v697 = vunpack.c.l.b16 %v653
        %v698 = vunpack.c.l.b16 %v654
        %v699 = vunpack.c.l.b16 %v655
        %v700 = vunpack.c.l.b16 %v656
        %v701 = vunpack.c.l.b16 %v657
        %v702 = vunpack.c.l.b16 %v658
        %v703 = vunpack.c.l.b16 %v659
        %v704 = vunpack.c.l.b16 %v660
        %v705 = vunpack.c.l.b16 %v661
        %v706 = vunpack.c.l.b16 %v662
        %v707 = vunpack.c.l.b16 %v663
        %v708 = vpack.c.b16 %v697, %v696
        %v709 = vpack.c.b16 %v699, %v698
        %v710 = vpack.c.b16 %v701, %v700
        %v711 = vpack.c.b16 %v703, %v702
        %v712 = vpack.c.b16 %v705, %v704
        %v713 = vpack.c.b16 %v707, %v706
        %v721 = vunpack.c.l.b16 %v664
        %v722 = vpack.c.b16 %v721, %v721
        %vm723 = vsmask.f32 7424
        %v725 = vshrl.u32 %v708, 16
        %v727 = vshll.u32 %v708, 16
        %v729 = vrot.slane %v727, 1
        %v730 = vor.u32 %v725, %v729
        %v732 = vshll.u32 %v709, 16
        %v734 = vrot.slane %v732, 1
        %v735 = vsel %vm723, %v730, %v734
        %v736 = vshrl.u32 %v709, 16
        %v738 = vor.u32 %v736, %v734
        %v740 = vshll.u32 %v710, 16
        %v742 = vrot.slane %v740, 1
        %v743 = vsel %vm723, %v738, %v742
        %v744 = vshrl.u32 %v710, 16
        %v746 = vor.u32 %v744, %v742
        %v748 = vshll.u32 %v711, 16
        %v750 = vrot.slane %v748, 1
        %v751 = vsel %vm723, %v746, %v750
        %v752 = vshrl.u32 %v711, 16
        %v754 = vor.u32 %v752, %v750
        %v756 = vshll.u32 %v712, 16
        %v758 = vrot.slane %v756, 1
        %v759 = vsel %vm723, %v754, %v758
        %v760 = vshrl.u32 %v712, 16
        %v762 = vor.u32 %v760, %v758
        %v764 = vshll.u32 %v713, 16
        %v766 = vrot.slane %v764, 1
        %v767 = vsel %vm723, %v762, %v766
        %v768 = vshrl.u32 %v713, 16
        %v770 = vor.u32 %v768, %v766
        %v772 = vshll.u32 %v722, 16
        %v774 = vrot.slane %v772, 1
        %v775 = vsel %vm723, %v770, %v774
        %v783 = vunpack.c.l.b16 %v665
        %v784 = vpack.c.b16 %v697, %v783
        %vm785 = vcmask 1046528
        %v786 = vrot.slane %v784, 1
        %v787 = vrot.slane %v709, 1
        %v788 = vsel %vm785, %v786, %v787
        %v789 = vrot.slane %v710, 1
        %v790 = vsel %vm785, %v787, %v789
        %v791 = vrot.slane %v711, 1
        %v792 = vsel %vm785, %v789, %v791
        %v793 = vrot.slane %v712, 1
        %v794 = vsel %vm785, %v791, %v793
        %v795 = vrot.slane %v713, 1
        %v796 = vsel %vm785, %v793, %v795
        %v797 = vrot.slane %v722, 1
        %v798 = vsel %vm785, %v795, %v797
        %v807 = vunpack.c.l.b16 %v666
        %v808 = vunpack.c.l.b16 %v667
        %v809 = vpack.c.b16 %v697, %v807
        %v810 = vpack.c.b16 %v808, %v808
        %vm811 = vcmask 1044480
        %v812 = vrot.slane %v809, 3
        %v813 = vrot.slane %v709, 3
        %v814 = vsel %vm811, %v812, %v813
        %v815 = vrot.slane %v710, 3
        %v816 = vsel %vm811, %v813, %v815
        %v817 = vrot.slane %v711, 3
        %v818 = vsel %vm811, %v815, %v817
        %v819 = vrot.slane %v712, 3
        %v820 = vsel %vm811, %v817, %v819
        %v821 = vrot.slane %v713, 3
        %v822 = vsel %vm811, %v819, %v821
        %v823 = vrot.slane %v810, 3
        %v824 = vsel %vm811, %v821, %v823
        %v832 = vunpack.c.l.b16 %v668
        %v833 = vpack.c.b16 %v832, %v832
        %vm834 = vsmask.f32 4352
        %v836 = vshrl.u32 %v809, 16
        %v838 = vrot.slane %v836, 3
        %v839 = vshll.u32 %v809, 16
        %v841 = vrot.slane %v839, 4
        %v842 = vor.u32 %v838, %v841
        %v843 = vrot.slane %v736, 3
        %v844 = vrot.slane %v732, 4
        %v845 = vor.u32 %v843, %v844
        %v846 = vsel %vm834, %v842, %v845
        %v847 = vrot.slane %v744, 3
        %v848 = vrot.slane %v740, 4
        %v849 = vor.u32 %v847, %v848
        %v850 = vsel %vm834, %v845, %v849
        %v851 = vrot.slane %v752, 3
        %v852 = vrot.slane %v748, 4
        %v853 = vor.u32 %v851, %v852
        %v854 = vsel %vm834, %v849, %v853
        %v855 = vrot.slane %v760, 3
        %v856 = vrot.slane %v756, 4
        %v857 = vor.u32 %v855, %v856
        %v858 = vsel %vm834, %v853, %v857
        %v859 = vrot.slane %v768, 3
        %v860 = vrot.slane %v764, 4
        %v861 = vor.u32 %v859, %v860
        %v862 = vsel %vm834, %v857, %v861
        %v864 = vshrl.u32 %v833, 16
        %v866 = vrot.slane %v864, 3
        %v867 = vshll.u32 %v833, 16
        %v869 = vrot.slane %v867, 4
        %v870 = vor.u32 %v866, %v869
        %v871 = vsel %vm834, %v861, %v870
        %v878 = vpack.c.b16 %v698, %v697
        %v879 = vpack.c.b16 %v700, %v699
        %v880 = vpack.c.b16 %v702, %v701
        %v881 = vpack.c.b16 %v704, %v703
        %v882 = vpack.c.b16 %v706, %v705
        %v883 = vpack.c.b16 %v832, %v707
        %v903 = vunpack.c.l.b16 %v669
        %v904 = vunpack.c.l.b16 %v670
        %v905 = vunpack.c.l.b16 %v671
        %v906 = vunpack.c.l.b16 %v672
        %v907 = vunpack.c.l.b16 %v673
        %v908 = vunpack.c.l.b16 %v674
        %v909 = vunpack.c.l.b16 %v675
        %v910 = vunpack.c.l.b16 %v676
        %v911 = vunpack.c.l.b16 %v677
        %v912 = vunpack.c.l.b16 %v678
        %v913 = vunpack.c.l.b16 %v679
        %v914 = vunpack.c.l.b16 %v680
        %v915 = vunpack.c.l.b16 %v681
        %v916 = vpack.c.b16 %v904, %v903
        %v917 = vpack.c.b16 %v906, %v905
        %v918 = vpack.c.b16 %v908, %v907
        %v919 = vpack.c.b16 %v910, %v909
        %v920 = vpack.c.b16 %v912, %v911
        %v921 = vpack.c.b16 %v914, %v913
        %v922 = vpack.c.b16 %v915, %v915
        %vm923 = vcmask 1045504
        %v924 = vrot.slane %v916, 2
        %v925 = vrot.slane %v917, 2
        %v926 = vsel %vm923, %v924, %v925
        %v927 = vrot.slane %v918, 2
        %v928 = vsel %vm923, %v925, %v927
        %v929 = vrot.slane %v919, 2
        %v930 = vsel %vm923, %v927, %v929
        %v931 = vrot.slane %v920, 2
        %v932 = vsel %vm923, %v929, %v931
        %v933 = vrot.slane %v921, 2
        %v934 = vsel %vm923, %v931, %v933
        %v935 = vrot.slane %v922, 2
        %v936 = vsel %vm923, %v933, %v935
        %v944 = vunpack.c.l.b16 %v682
        %v945 = vpack.c.b16 %v944, %v944
        %vm946 = vsmask.f32 5376
        %v948 = vshrl.u32 %v916, 16
        %v950 = vrot.slane %v948, 2
        %v951 = vshll.u32 %v916, 16
        %v953 = vrot.slane %v951, 3
        %v954 = vor.u32 %v950, %v953
        %v956 = vshrl.u32 %v917, 16
        %v958 = vrot.slane %v956, 2
        %v959 = vshll.u32 %v917, 16
        %v961 = vrot.slane %v959, 3
        %v962 = vor.u32 %v958, %v961
        %v963 = vsel %vm946, %v954, %v962
        %v965 = vshrl.u32 %v918, 16
        %v967 = vrot.slane %v965, 2
        %v968 = vshll.u32 %v918, 16
        %v970 = vrot.slane %v968, 3
        %v971 = vor.u32 %v967, %v970
        %v972 = vsel %vm946, %v962, %v971
        %v974 = vshrl.u32 %v919, 16
        %v976 = vrot.slane %v974, 2
        %v977 = vshll.u32 %v919, 16
        %v979 = vrot.slane %v977, 3
        %v980 = vor.u32 %v976, %v979
        %v981 = vsel %vm946, %v971, %v980
        %v983 = vshrl.u32 %v920, 16
        %v985 = vrot.slane %v983, 2
        %v986 = vshll.u32 %v920, 16
        %v988 = vrot.slane %v986, 3
        %v989 = vor.u32 %v985, %v988
        %v990 = vsel %vm946, %v980, %v989
        %v992 = vshrl.u32 %v921, 16
        %v994 = vrot.slane %v992, 2
        %v995 = vshll.u32 %v921, 16
        %v997 = vrot.slane %v995, 3
        %v998 = vor.u32 %v994, %v997
        %v999 = vsel %vm946, %v989, %v998
        %v1001 = vshrl.u32 %v945, 16
        %v1003 = vrot.slane %v1001, 2
        %v1004 = vshll.u32 %v945, 16
        %v1006 = vrot.slane %v1004, 3
        %v1007 = vor.u32 %v1003, %v1006
        %v1008 = vsel %vm946, %v998, %v1007
        %v1016 = vunpack.c.l.b16 %v683
        %v1017 = vpack.c.b16 %v904, %v1016
        %v1018 = vrot.slane %v1017, 3
        %v1019 = vrot.slane %v917, 3
        %v1020 = vsel %vm811, %v1018, %v1019
        %v1021 = vrot.slane %v918, 3
        %v1022 = vsel %vm811, %v1019, %v1021
        %v1023 = vrot.slane %v919, 3
        %v1024 = vsel %vm811, %v1021, %v1023
        %v1025 = vrot.slane %v920, 3
        %v1026 = vsel %vm811, %v1023, %v1025
        %v1027 = vrot.slane %v921, 3
        %v1028 = vsel %vm811, %v1025, %v1027
        %v1029 = vrot.slane %v945, 3
        %v1030 = vsel %vm811, %v1027, %v1029
        %v1037 = vld [vmem:[#allocation3] sm:$0xf]
        %v1038 = vld [vmem:[#allocation3 + $0x4] sm:$0xf]
        %v1039 = vld [vmem:[#allocation3 + $0x8] sm:$0xf]
        %v1040 = vld [vmem:[#allocation3 + $0xc] sm:$0xf]
        %v1041 = vld [vmem:[#allocation3 + $0x10] sm:$0xf]
        %v1042 = vld [vmem:[#allocation3 + $0x14] sm:$0xf]
        %v1043 = vld [vmem:[#allocation3 + $0x18] sm:$0xf]
        %v1044 = vld [vmem:[#allocation3 + $0x1c] sm:$0xf]
        %v1045 = vld [vmem:[#allocation3 + $0x20] sm:$0xf]
        %v1046 = vld [vmem:[#allocation3 + $0x24] sm:$0xf]
        %v1047 = vld [vmem:[#allocation3 + $0x28] sm:$0xf]
        %v1048 = vld [vmem:[#allocation3 + $0x2c] sm:$0xf]
        %v1049 = vld [vmem:[#allocation3 + $0x30] sm:$0xf]
        %v1050 = vld [vmem:[#allocation3 + $0x34] sm:$0xf]
        %v1051 = vld [vmem:[#allocation3 + $0x38] sm:$0xf]
        %v1052 = vld [vmem:[#allocation3 + $0x3c] sm:$0xf]
        %v1053 = vld [vmem:[#allocation3 + $0x40] sm:$0xf]
        %v1054 = vld [vmem:[#allocation3 + $0x44] sm:$0xf]
        %v1055 = vld [vmem:[#allocation3 + $0x48] sm:$0xf]
        %v1056 = vld [vmem:[#allocation3 + $0x4c] sm:$0xf]
        %v1057 = vld [vmem:[#allocation3 + $0x50] sm:$0xf]
        %v1058 = vld [vmem:[#allocation3 + $0x54] sm:$0xf]
        %v1059 = vld [vmem:[#allocation3 + $0x58] sm:$0xf]
        %v1060 = vld [vmem:[#allocation3 + $0x5c] sm:$0xf]
        %v1061 = vld [vmem:[#allocation3 + $0x60] sm:$0xf]
        %v1062 = vld [vmem:[#allocation3 + $0x64] sm:$0xf]
        %v1063 = vld [vmem:[#allocation3 + $0x68] sm:$0xf]
        %v1064 = vld [vmem:[#allocation3 + $0x6c] sm:$0xf]
        %v1065 = vld [vmem:[#allocation3 + $0x70] sm:$0xf]
        %v1066 = vld [vmem:[#allocation3 + $0x74] sm:$0xf]
        %v1067 = vld [vmem:[#allocation3 + $0x78] sm:$0xf]
        %v1068 = vld [vmem:[#allocation3 + $0x7c] sm:$0xf]
        %v1069 = vld [vmem:[#allocation3 + $0x80] sm:$0xf]
        %v1070 = vld [vmem:[#allocation3 + $0x84] sm:$0xf]
        %v1071 = vld [vmem:[#allocation3 + $0x88] sm:$0xf]
        %v1072 = vld [vmem:[#allocation3 + $0x8c] sm:$0xf]
        %v1073 = vld [vmem:[#allocation3 + $0x90] sm:$0xf]
        %v1074 = vld [vmem:[#allocation3 + $0x94] sm:$0xf]
        %v1075 = vld [vmem:[#allocation3 + $0x98] sm:$0xf]
        %v1076 = vld [vmem:[#allocation3 + $0x9c] sm:$0xf]
        %v1077 = vld [vmem:[#allocation3 + $0xa0] sm:$0xf]
        %v1078 = vld [vmem:[#allocation3 + $0xa4] sm:$0xf]
        %v1079 = vld [vmem:[#allocation3 + $0xa8] sm:$0xf]
        %v1080 = vld [vmem:[#allocation3 + $0xac] sm:$0xf]
        %v1081 = vld [vmem:[#allocation3 + $0xb0] sm:$0xf]
        %v1082 = vld [vmem:[#allocation3 + $0xb4] sm:$0xf]
        %v1083 = vld [vmem:[#allocation3 + $0xb8] sm:$0xf]
        %v1084 = vld [vmem:[#allocation3 + $0xbc] sm:$0xf]
        %v1085 = vld [vmem:[#allocation3 + $0xc0] sm:$0xf]
        %v1086 = vld [vmem:[#allocation3 + $0xc4] sm:$0xf]
        %v1087 = vld [vmem:[#allocation3 + $0xc8] sm:$0xf]
        %v1088 = vld [vmem:[#allocation3 + $0xcc] sm:$0xf]
        %v1089 = vld [vmem:[#allocation3 + $0xd0] sm:$0xf]
        %v1090 = vld [vmem:[#allocation3 + $0xd4] sm:$0xf]
        %v1091 = vld [vmem:[#allocation3 + $0xd8] sm:$0xf]
        %v1092 = vld [vmem:[#allocation3 + $0xdc] sm:$0xf]
        %v1093 = vld [vmem:[#allocation3 + $0xe0] sm:$0xf]
        %v1094 = vld [vmem:[#allocation3 + $0xe4] sm:$0xf]
        %v1095 = vld [vmem:[#allocation3 + $0xe8] sm:$0xf]
        %v1096 = vld [vmem:[#allocation3 + $0xec] sm:$0xf]
        %v1097 = vld [vmem:[#allocation3 + $0xf0] sm:$0xf]
        %v1098 = vld [vmem:[#allocation3 + $0xf4] sm:$0xf]
        %v1099 = vld [vmem:[#allocation3 + $0xf8] sm:$0xf]
        %v1100 = vld [vmem:[#allocation3 + $0xfc] sm:$0xf]
        %v1101 = vld [vmem:[#allocation3 + $0x100] sm:$0xf]
        %v1102 = vld [vmem:[#allocation3 + $0x104] sm:$0xf]
        %v1103 = vld [vmem:[#allocation3 + $0x108] sm:$0xf]
        %v1104 = vld [vmem:[#allocation3 + $0x10c] sm:$0xf]
        %v1105 = vld [vmem:[#allocation3 + $0x110] sm:$0xf]
        %v1106 = vld [vmem:[#allocation3 + $0x114] sm:$0xf]
        %v1107 = vld [vmem:[#allocation3 + $0x118] sm:$0xf]
        %v1108 = vld [vmem:[#allocation3 + $0x11c] sm:$0xf]
        %v1109 = vld [vmem:[#allocation3 + $0x120] sm:$0xf]
        %v1110 = vld [vmem:[#allocation3 + $0x124] sm:$0xf]
        %v1111 = vld [vmem:[#allocation3 + $0x128] sm:$0xf]
        %v1112 = vld [vmem:[#allocation3 + $0x12c] sm:$0xf]
        %v1113 = vld [vmem:[#allocation3 + $0x130] sm:$0xf]
        %v1114 = vld [vmem:[#allocation3 + $0x134] sm:$0xf]
        %v1115 = vld [vmem:[#allocation3 + $0x138] sm:$0xf]
        %v1116 = vld [vmem:[#allocation3 + $0x13c] sm:$0xf]
        %v1117 = vld [vmem:[#allocation3 + $0x140] sm:$0xf]
        %v1118 = vld [vmem:[#allocation3 + $0x144] sm:$0xf]
        %v1119 = vld [vmem:[#allocation3 + $0x148] sm:$0xf]
        %v1120 = vld [vmem:[#allocation3 + $0x14c] sm:$0xf]
        %v1121 = vld [vmem:[#allocation3 + $0x150] sm:$0xf]
        %v1122 = vld [vmem:[#allocation3 + $0x154] sm:$0xf]
        %v1123 = vld [vmem:[#allocation3 + $0x158] sm:$0xf]
        %v1124 = vld [vmem:[#allocation3 + $0x15c] sm:$0xf]
        %v1125 = vld [vmem:[#allocation3 + $0x160] sm:$0xf]
        %v1126 = vld [vmem:[#allocation3 + $0x164] sm:$0xf]
        %v1127 = vld [vmem:[#allocation3 + $0x168] sm:$0xf]
        %v1128 = vld [vmem:[#allocation3 + $0x16c] sm:$0xf]
        %v1129 = vld [vmem:[#allocation3 + $0x170] sm:$0xf]
        %v1130 = vld [vmem:[#allocation3 + $0x174] sm:$0xf]
        %v1131 = vld [vmem:[#allocation3 + $0x178] sm:$0xf]
        %v1132 = vld [vmem:[#allocation3 + $0x17c] sm:$0xf]
        %v1133 = vld [vmem:[#allocation3 + $0x180] sm:$0xf]
        %v1134 = vld [vmem:[#allocation3 + $0x184] sm:$0xf]
        %v1135 = vld [vmem:[#allocation3 + $0x188] sm:$0xf]
        %v1136 = vld [vmem:[#allocation3 + $0x18c] sm:$0xf]
        %v1137 = vld [vmem:[#allocation3 + $0x190] sm:$0xf]
        %v1138 = vld [vmem:[#allocation3 + $0x194] sm:$0xf]
        %v1139 = vld [vmem:[#allocation3 + $0x198] sm:$0xf]
        %v1140 = vld [vmem:[#allocation3 + $0x19c] sm:$0xf]
        %v1141 = vld [vmem:[#allocation3 + $0x1a0] sm:$0xf]
        %v1142 = vld [vmem:[#allocation3 + $0x1a4] sm:$0xf]
        %v1143 = vld [vmem:[#allocation3 + $0x1a8] sm:$0xf]
        %v1144 = vld [vmem:[#allocation3 + $0x1ac] sm:$0xf]
        %v1145 = vld [vmem:[#allocation3 + $0x1b0] sm:$0xf]
        %v1146 = vld [vmem:[#allocation3 + $0x1b4] sm:$0xf]
        %v1147 = vld [vmem:[#allocation3 + $0x1b8] sm:$0xf]
        %v1148 = vld [vmem:[#allocation3 + $0x1bc] sm:$0xf]
        %v1149 = vld [vmem:[#allocation3 + $0x1c0] sm:$0xf]
        %v1150 = vld [vmem:[#allocation3 + $0x1c4] sm:$0xf]
        %v1151 = vld [vmem:[#allocation3 + $0x1c8] sm:$0xf]
        %v1152 = vld [vmem:[#allocation3 + $0x1cc] sm:$0xf]
        %v1153 = vld [vmem:[#allocation3 + $0x1d0] sm:$0xf]
        %v1154 = vld [vmem:[#allocation3 + $0x1d4] sm:$0xf]
        %v1155 = vld [vmem:[#allocation3 + $0x1d8] sm:$0xf]
        %v1156 = vld [vmem:[#allocation3 + $0x1dc] sm:$0xf]
        %v1157 = vld [vmem:[#allocation3 + $0x1e0] sm:$0xf]
        %v1158 = vld [vmem:[#allocation3 + $0x1e4] sm:$0xf]
        %v1159 = vld [vmem:[#allocation3 + $0x1e8] sm:$0xf]
        %v1160 = vld [vmem:[#allocation3 + $0x1ec] sm:$0xf]
        %v1161 = vld [vmem:[#allocation3 + $0x1f0] sm:$0xf]
        %v1162 = vld [vmem:[#allocation3 + $0x1f4] sm:$0xf]
        %v1163 = vld [vmem:[#allocation3 + $0x1f8] sm:$0xf]
        %v1164 = vld [vmem:[#allocation3 + $0x1fc] sm:$0xf]
        %v1165 = vld [vmem:[#allocation3 + $0x200] sm:$0xf]
        %v1166 = vld [vmem:[#allocation3 + $0x204] sm:$0xf]
        %v1167 = vld [vmem:[#allocation3 + $0x208] sm:$0xf]
        %v1168 = vld [vmem:[#allocation3 + $0x20c] sm:$0xf]
        %v1169 = vld [vmem:[#allocation3 + $0x210] sm:$0xf]
        %v1170 = vld [vmem:[#allocation3 + $0x214] sm:$0xf]
        %v1171 = vld [vmem:[#allocation3 + $0x218] sm:$0xf]
        %v1172 = vld [vmem:[#allocation3 + $0x21c] sm:$0xf]
        %v1173 = vld [vmem:[#allocation3 + $0x220] sm:$0xf]
        %v1174 = vld [vmem:[#allocation3 + $0x224] sm:$0xf]
        %v1175 = vld [vmem:[#allocation3 + $0x228] sm:$0xf]
        %v1176 = vld [vmem:[#allocation3 + $0x22c] sm:$0xf]
        %v1177 = vld [vmem:[#allocation3 + $0x230] sm:$0xf]
        %v1178 = vld [vmem:[#allocation3 + $0x234] sm:$0xf]
        %v1179 = vld [vmem:[#allocation3 + $0x238] sm:$0xf]
        %v1180 = vld [vmem:[#allocation3 + $0x23c] sm:$0xf]
        %v1181 = vld [vmem:[#allocation5] sm:$0x1]
        %v1183 = vperm.slane %v1181, 0
        %v1329 = vunpack.c.l.b16 %v1037
        %v1330 = vunpack.c.l.b16 %v1038
        %v1331 = vunpack.c.l.b16 %v1039
        %v1332 = vunpack.c.l.b16 %v1040
        %v1333 = vunpack.c.l.b16 %v1041
        %v1334 = vunpack.c.l.b16 %v1042
        %v1335 = vunpack.c.l.b16 %v1043
        %v1336 = vunpack.c.l.b16 %v1044
        %v1337 = vunpack.c.l.b16 %v1045
        %v1338 = vunpack.c.l.b16 %v1046
        %v1339 = vunpack.c.l.b16 %v1047
        %v1340 = vunpack.c.l.b16 %v1048
        %v1341 = vunpack.c.l.b16 %v1049
        %v1342 = vunpack.c.l.b16 %v1050
        %v1343 = vunpack.c.l.b16 %v1051
        %v1344 = vunpack.c.l.b16 %v1052
        %v1345 = vunpack.c.l.b16 %v1053
        %v1346 = vunpack.c.l.b16 %v1054
        %v1347 = vunpack.c.l.b16 %v1055
        %v1348 = vunpack.c.l.b16 %v1056
        %v1349 = vunpack.c.l.b16 %v1057
        %v1350 = vunpack.c.l.b16 %v1058
        %v1351 = vunpack.c.l.b16 %v1059
        %v1352 = vunpack.c.l.b16 %v1060
        %v1353 = vunpack.c.l.b16 %v1061
        %v1354 = vunpack.c.l.b16 %v1062
        %v1355 = vunpack.c.l.b16 %v1063
        %v1356 = vunpack.c.l.b16 %v1064
        %v1357 = vunpack.c.l.b16 %v1065
        %v1358 = vunpack.c.l.b16 %v1066
        %v1359 = vunpack.c.l.b16 %v1067
        %v1360 = vunpack.c.l.b16 %v1068
        %v1361 = vunpack.c.l.b16 %v1069
        %v1362 = vunpack.c.l.b16 %v1070
        %v1363 = vunpack.c.l.b16 %v1071
        %v1364 = vunpack.c.l.b16 %v1072
        %v1365 = vunpack.c.l.b16 %v1073
        %v1366 = vunpack.c.l.b16 %v1074
        %v1367 = vunpack.c.l.b16 %v1075
        %v1368 = vunpack.c.l.b16 %v1076
        %v1369 = vunpack.c.l.b16 %v1077
        %v1370 = vunpack.c.l.b16 %v1078
        %v1371 = vunpack.c.l.b16 %v1079
        %v1372 = vunpack.c.l.b16 %v1080
        %v1373 = vunpack.c.l.b16 %v1081
        %v1374 = vunpack.c.l.b16 %v1082
        %v1375 = vunpack.c.l.b16 %v1083
        %v1376 = vunpack.c.l.b16 %v1084
        %v1377 = vunpack.c.l.b16 %v1085
        %v1378 = vunpack.c.l.b16 %v1086
        %v1379 = vunpack.c.l.b16 %v1087
        %v1380 = vunpack.c.l.b16 %v1088
        %v1381 = vunpack.c.l.b16 %v1089
        %v1382 = vunpack.c.l.b16 %v1090
        %v1383 = vunpack.c.l.b16 %v1091
        %v1384 = vunpack.c.l.b16 %v1092
        %v1385 = vunpack.c.l.b16 %v1093
        %v1386 = vunpack.c.l.b16 %v1094
        %v1387 = vunpack.c.l.b16 %v1095
        %v1388 = vunpack.c.l.b16 %v1096
        %v1389 = vunpack.c.l.b16 %v1097
        %v1390 = vunpack.c.l.b16 %v1098
        %v1391 = vunpack.c.l.b16 %v1099
        %v1392 = vunpack.c.l.b16 %v1100
        %v1393 = vunpack.c.l.b16 %v1101
        %v1394 = vunpack.c.l.b16 %v1102
        %v1395 = vunpack.c.l.b16 %v1103
        %v1396 = vunpack.c.l.b16 %v1104
        %v1397 = vunpack.c.l.b16 %v1105
        %v1398 = vunpack.c.l.b16 %v1106
        %v1399 = vunpack.c.l.b16 %v1107
        %v1400 = vunpack.c.l.b16 %v1108
        %v1401 = vunpack.c.l.b16 %v1109
        %v1402 = vunpack.c.l.b16 %v1110
        %v1403 = vunpack.c.l.b16 %v1111
        %v1404 = vunpack.c.l.b16 %v1112
        %v1405 = vunpack.c.l.b16 %v1113
        %v1406 = vunpack.c.l.b16 %v1114
        %v1407 = vunpack.c.l.b16 %v1115
        %v1408 = vunpack.c.l.b16 %v1116
        %v1409 = vunpack.c.l.b16 %v1117
        %v1410 = vunpack.c.l.b16 %v1118
        %v1411 = vunpack.c.l.b16 %v1119
        %v1412 = vunpack.c.l.b16 %v1120
        %v1413 = vunpack.c.l.b16 %v1121
        %v1414 = vunpack.c.l.b16 %v1122
        %v1415 = vunpack.c.l.b16 %v1123
        %v1416 = vunpack.c.l.b16 %v1124
        %v1417 = vunpack.c.l.b16 %v1125
        %v1418 = vunpack.c.l.b16 %v1126
        %v1419 = vunpack.c.l.b16 %v1127
        %v1420 = vunpack.c.l.b16 %v1128
        %v1421 = vunpack.c.l.b16 %v1129
        %v1422 = vunpack.c.l.b16 %v1130
        %v1423 = vunpack.c.l.b16 %v1131
        %v1424 = vunpack.c.l.b16 %v1132
        %v1425 = vunpack.c.l.b16 %v1133
        %v1426 = vunpack.c.l.b16 %v1134
        %v1427 = vunpack.c.l.b16 %v1135
        %v1428 = vunpack.c.l.b16 %v1136
        %v1429 = vunpack.c.l.b16 %v1137
        %v1430 = vunpack.c.l.b16 %v1138
        %v1431 = vunpack.c.l.b16 %v1139
        %v1432 = vunpack.c.l.b16 %v1140
        %v1433 = vunpack.c.l.b16 %v1141
        %v1434 = vunpack.c.l.b16 %v1142
        %v1435 = vunpack.c.l.b16 %v1143
        %v1436 = vunpack.c.l.b16 %v1144
        %v1437 = vunpack.c.l.b16 %v1145
        %v1438 = vunpack.c.l.b16 %v1146
        %v1439 = vunpack.c.l.b16 %v1147
        %v1440 = vunpack.c.l.b16 %v1148
        %v1441 = vunpack.c.l.b16 %v1149
        %v1442 = vunpack.c.l.b16 %v1150
        %v1443 = vunpack.c.l.b16 %v1151
        %v1444 = vunpack.c.l.b16 %v1152
        %v1445 = vunpack.c.l.b16 %v1153
        %v1446 = vunpack.c.l.b16 %v1154
        %v1447 = vunpack.c.l.b16 %v1155
        %v1448 = vunpack.c.l.b16 %v1156
        %v1449 = vunpack.c.l.b16 %v1157
        %v1450 = vunpack.c.l.b16 %v1158
        %v1451 = vunpack.c.l.b16 %v1159
        %v1452 = vunpack.c.l.b16 %v1160
        %v1453 = vunpack.c.l.b16 %v1161
        %v1454 = vunpack.c.l.b16 %v1162
        %v1455 = vunpack.c.l.b16 %v1163
        %v1456 = vunpack.c.l.b16 %v1164
        %v1457 = vunpack.c.l.b16 %v1165
        %v1458 = vunpack.c.l.b16 %v1166
        %v1459 = vunpack.c.l.b16 %v1167
        %v1460 = vunpack.c.l.b16 %v1168
        %v1461 = vunpack.c.l.b16 %v1169
        %v1462 = vunpack.c.l.b16 %v1170
        %v1463 = vunpack.c.l.b16 %v1171
        %v1464 = vunpack.c.l.b16 %v1172
        %v1465 = vunpack.c.l.b16 %v1173
        %v1466 = vunpack.c.l.b16 %v1174
        %v1467 = vunpack.c.l.b16 %v1175
        %v1468 = vunpack.c.l.b16 %v1176
        %v1469 = vunpack.c.l.b16 %v1177
        %v1470 = vunpack.c.l.b16 %v1178
        %v1471 = vunpack.c.l.b16 %v1179
        %v1472 = vunpack.c.l.b16 %v1180
        %v1473 = vpack.c.b16 %v1330, %v1329
        %v1474 = vpack.c.b16 %v1332, %v1331
        %v1475 = vpack.c.b16 %v1334, %v1333
        %v1476 = vpack.c.b16 %v1336, %v1335
        %v1477 = vpack.c.b16 %v1338, %v1337
        %v1478 = vpack.c.b16 %v1340, %v1339
        %v1479 = vpack.c.b16 %v1342, %v1341
        %v1480 = vpack.c.b16 %v1344, %v1343
        %v1481 = vpack.c.b16 %v1346, %v1345
        %v1482 = vpack.c.b16 %v1348, %v1347
        %v1483 = vpack.c.b16 %v1350, %v1349
        %v1484 = vpack.c.b16 %v1352, %v1351
        %v1485 = vpack.c.b16 %v1354, %v1353
        %v1486 = vpack.c.b16 %v1356, %v1355
        %v1487 = vpack.c.b16 %v1358, %v1357
        %v1488 = vpack.c.b16 %v1360, %v1359
        %v1489 = vpack.c.b16 %v1362, %v1361
        %v1490 = vpack.c.b16 %v1364, %v1363
        %v1491 = vpack.c.b16 %v1366, %v1365
        %v1492 = vpack.c.b16 %v1368, %v1367
        %v1493 = vpack.c.b16 %v1370, %v1369
        %v1494 = vpack.c.b16 %v1372, %v1371
        %v1495 = vpack.c.b16 %v1374, %v1373
        %v1496 = vpack.c.b16 %v1376, %v1375
        %v1497 = vpack.c.b16 %v1378, %v1377
        %v1498 = vpack.c.b16 %v1380, %v1379
        %v1499 = vpack.c.b16 %v1382, %v1381
        %v1500 = vpack.c.b16 %v1384, %v1383
        %v1501 = vpack.c.b16 %v1386, %v1385
        %v1502 = vpack.c.b16 %v1388, %v1387
        %v1503 = vpack.c.b16 %v1390, %v1389
        %v1504 = vpack.c.b16 %v1392, %v1391
        %v1505 = vpack.c.b16 %v1394, %v1393
        %v1506 = vpack.c.b16 %v1396, %v1395
        %v1507 = vpack.c.b16 %v1398, %v1397
        %v1508 = vpack.c.b16 %v1400, %v1399
        %v1509 = vpack.c.b16 %v1402, %v1401
        %v1510 = vpack.c.b16 %v1404, %v1403
        %v1511 = vpack.c.b16 %v1406, %v1405
        %v1512 = vpack.c.b16 %v1408, %v1407
        %v1513 = vpack.c.b16 %v1410, %v1409
        %v1514 = vpack.c.b16 %v1412, %v1411
        %v1515 = vpack.c.b16 %v1414, %v1413
        %v1516 = vpack.c.b16 %v1416, %v1415
        %v1517 = vpack.c.b16 %v1418, %v1417
        %v1518 = vpack.c.b16 %v1420, %v1419
        %v1519 = vpack.c.b16 %v1422, %v1421
        %v1520 = vpack.c.b16 %v1424, %v1423
        %v1521 = vpack.c.b16 %v1426, %v1425
        %v1522 = vpack.c.b16 %v1428, %v1427
        %v1523 = vpack.c.b16 %v1430, %v1429
        %v1524 = vpack.c.b16 %v1432, %v1431
        %v1525 = vpack.c.b16 %v1434, %v1433
        %v1526 = vpack.c.b16 %v1436, %v1435
        %v1527 = vpack.c.b16 %v1438, %v1437
        %v1528 = vpack.c.b16 %v1440, %v1439
        %v1529 = vpack.c.b16 %v1442, %v1441
        %v1530 = vpack.c.b16 %v1444, %v1443
        %v1531 = vpack.c.b16 %v1446, %v1445
        %v1532 = vpack.c.b16 %v1448, %v1447
        %v1533 = vpack.c.b16 %v1450, %v1449
        %v1534 = vpack.c.b16 %v1452, %v1451
        %v1535 = vpack.c.b16 %v1454, %v1453
        %v1536 = vpack.c.b16 %v1456, %v1455
        %v1537 = vpack.c.b16 %v1458, %v1457
        %v1538 = vpack.c.b16 %v1460, %v1459
        %v1539 = vpack.c.b16 %v1462, %v1461
        %v1540 = vpack.c.b16 %v1464, %v1463
        %v1541 = vpack.c.b16 %v1466, %v1465
        %v1542 = vpack.c.b16 %v1468, %v1467
        %v1543 = vpack.c.b16 %v1470, %v1469
        %v1544 = vpack.c.b16 %v1472, %v1471
        %1617 = vmatpush.bf16.msra.mxu0 %v1480
        %1618 = vmatpush.bf16.msra.mxu0 %v1479
        %1619 = vmatpush.bf16.msra.mxu0 %v1478
        %1620 = vmatpush.bf16.msra.mxu0 %v1477
        %1621 = vmatpush.bf16.msra.mxu0 %v1476
        %1622 = vmatpush.bf16.msra.mxu0 %v1475
        %1623 = vmatpush.bf16.msra.mxu0 %v1474
        %1624 = vmatpush.bf16.msra.mxu0 %v1473
        %1625 = vmatmul.bf16.gmra.mxu0 %v708
        %v1626 = vpop.f32.mrf.mxu0
        %v1627 = vadd.f32 %v1183, %v1626
        %v1628 = vpop.f32.mrf.mxu0
        %v1629 = vadd.f32 %v1183, %v1628
        %1630 = vmatmul.bf16.gmra.mxu0 %v709
        %v1631 = vpop.f32.mrf.mxu0
        %v1632 = vadd.f32 %v1183, %v1631
        %v1633 = vpop.f32.mrf.mxu0
        %v1634 = vadd.f32 %v1183, %v1633
        %1635 = vmatmul.bf16.gmra.mxu0 %v710
        %v1636 = vpop.f32.mrf.mxu0
        %v1637 = vadd.f32 %v1183, %v1636
        %v1638 = vpop.f32.mrf.mxu0
        %v1639 = vadd.f32 %v1183, %v1638
        %1640 = vmatmul.bf16.gmra.mxu0 %v711
        %v1641 = vpop.f32.mrf.mxu0
        %v1642 = vadd.f32 %v1183, %v1641
        %v1643 = vpop.f32.mrf.mxu0
        %v1644 = vadd.f32 %v1183, %v1643
        %1645 = vmatmul.bf16.gmra.mxu0 %v712
        %v1646 = vpop.f32.mrf.mxu0
        %v1647 = vadd.f32 %v1183, %v1646
        %v1648 = vpop.f32.mrf.mxu0
        %v1649 = vadd.f32 %v1183, %v1648
        %1650 = vmatmul.bf16.gmra.mxu0 %v713
        %v1651 = vpop.f32.mrf.mxu0
        %v1652 = vadd.f32 %v1183, %v1651
        %v1653 = vpop.f32.mrf.mxu0
        %v1654 = vadd.f32 %v1183, %v1653
        %1655 = vdwg.mxu0
        %1656 = vmatpush.bf16.msra.mxu0 %v1488
        %1657 = vmatpush.bf16.msra.mxu0 %v1487
        %1658 = vmatpush.bf16.msra.mxu0 %v1486
        %1659 = vmatpush.bf16.msra.mxu0 %v1485
        %1660 = vmatpush.bf16.msra.mxu0 %v1484
        %1661 = vmatpush.bf16.msra.mxu0 %v1483
        %1662 = vmatpush.bf16.msra.mxu0 %v1482
        %1663 = vmatpush.bf16.msra.mxu0 %v1481
        %1664 = vmatmul.bf16.gmra.mxu0 %v735
        %v1665 = vpop.f32.mrf.mxu0
        %v1666 = vadd.f32 %v1627, %v1665
        %v1667 = vpop.f32.mrf.mxu0
        %v1668 = vadd.f32 %v1629, %v1667
        %1669 = vmatmul.bf16.gmra.mxu0 %v743
        %v1670 = vpop.f32.mrf.mxu0
        %v1671 = vadd.f32 %v1632, %v1670
        %v1672 = vpop.f32.mrf.mxu0
        %v1673 = vadd.f32 %v1634, %v1672
        %1674 = vmatmul.bf16.gmra.mxu0 %v751
        %v1675 = vpop.f32.mrf.mxu0
        %v1676 = vadd.f32 %v1637, %v1675
        %v1677 = vpop.f32.mrf.mxu0
        %v1678 = vadd.f32 %v1639, %v1677
        %1679 = vmatmul.bf16.gmra.mxu0 %v759
        %v1680 = vpop.f32.mrf.mxu0
        %v1681 = vadd.f32 %v1642, %v1680
        %v1682 = vpop.f32.mrf.mxu0
        %v1683 = vadd.f32 %v1644, %v1682
        %1684 = vmatmul.bf16.gmra.mxu0 %v767
        %v1685 = vpop.f32.mrf.mxu0
        %v1686 = vadd.f32 %v1647, %v1685
        %v1687 = vpop.f32.mrf.mxu0
        %v1688 = vadd.f32 %v1649, %v1687
        %1689 = vmatmul.bf16.gmra.mxu0 %v775
        %v1690 = vpop.f32.mrf.mxu0
        %v1691 = vadd.f32 %v1652, %v1690
        %v1692 = vpop.f32.mrf.mxu0
        %v1693 = vadd.f32 %v1654, %v1692
        %1694 = vdwg.mxu0
        %1695 = vmatpush.bf16.msra.mxu0 %v1496
        %1696 = vmatpush.bf16.msra.mxu0 %v1495
        %1697 = vmatpush.bf16.msra.mxu0 %v1494
        %1698 = vmatpush.bf16.msra.mxu0 %v1493
        %1699 = vmatpush.bf16.msra.mxu0 %v1492
        %1700 = vmatpush.bf16.msra.mxu0 %v1491
        %1701 = vmatpush.bf16.msra.mxu0 %v1490
        %1702 = vmatpush.bf16.msra.mxu0 %v1489
        %1703 = vmatmul.bf16.gmra.mxu0 %v788
        %v1704 = vpop.f32.mrf.mxu0
        %v1705 = vadd.f32 %v1666, %v1704
        %v1706 = vpop.f32.mrf.mxu0
        %v1707 = vadd.f32 %v1668, %v1706
        %1708 = vmatmul.bf16.gmra.mxu0 %v790
        %v1709 = vpop.f32.mrf.mxu0
        %v1710 = vadd.f32 %v1671, %v1709
        %v1711 = vpop.f32.mrf.mxu0
        %v1712 = vadd.f32 %v1673, %v1711
        %1713 = vmatmul.bf16.gmra.mxu0 %v792
        %v1714 = vpop.f32.mrf.mxu0
        %v1715 = vadd.f32 %v1676, %v1714
        %v1716 = vpop.f32.mrf.mxu0
        %v1717 = vadd.f32 %v1678, %v1716
        %1718 = vmatmul.bf16.gmra.mxu0 %v794
        %v1719 = vpop.f32.mrf.mxu0
        %v1720 = vadd.f32 %v1681, %v1719
        %v1721 = vpop.f32.mrf.mxu0
        %v1722 = vadd.f32 %v1683, %v1721
        %1723 = vmatmul.bf16.gmra.mxu0 %v796
        %v1724 = vpop.f32.mrf.mxu0
        %v1725 = vadd.f32 %v1686, %v1724
        %v1726 = vpop.f32.mrf.mxu0
        %v1727 = vadd.f32 %v1688, %v1726
        %1728 = vmatmul.bf16.gmra.mxu0 %v798
        %v1729 = vpop.f32.mrf.mxu0
        %v1730 = vadd.f32 %v1691, %v1729
        %v1731 = vpop.f32.mrf.mxu0
        %v1732 = vadd.f32 %v1693, %v1731
        %1733 = vdwg.mxu0
        %1734 = vmatpush.bf16.msra.mxu0 %v1504
        %1735 = vmatpush.bf16.msra.mxu0 %v1503
        %1736 = vmatpush.bf16.msra.mxu0 %v1502
        %1737 = vmatpush.bf16.msra.mxu0 %v1501
        %1738 = vmatpush.bf16.msra.mxu0 %v1500
        %1739 = vmatpush.bf16.msra.mxu0 %v1499
        %1740 = vmatpush.bf16.msra.mxu0 %v1498
        %1741 = vmatpush.bf16.msra.mxu0 %v1497
        %1742 = vmatmul.bf16.gmra.mxu0 %v814
        %v1743 = vpop.f32.mrf.mxu0
        %v1744 = vadd.f32 %v1705, %v1743
        %v1745 = vpop.f32.mrf.mxu0
        %v1746 = vadd.f32 %v1707, %v1745
        %1747 = vmatmul.bf16.gmra.mxu0 %v816
        %v1748 = vpop.f32.mrf.mxu0
        %v1749 = vadd.f32 %v1710, %v1748
        %v1750 = vpop.f32.mrf.mxu0
        %v1751 = vadd.f32 %v1712, %v1750
        %1752 = vmatmul.bf16.gmra.mxu0 %v818
        %v1753 = vpop.f32.mrf.mxu0
        %v1754 = vadd.f32 %v1715, %v1753
        %v1755 = vpop.f32.mrf.mxu0
        %v1756 = vadd.f32 %v1717, %v1755
        %1757 = vmatmul.bf16.gmra.mxu0 %v820
        %v1758 = vpop.f32.mrf.mxu0
        %v1759 = vadd.f32 %v1720, %v1758
        %v1760 = vpop.f32.mrf.mxu0
        %v1761 = vadd.f32 %v1722, %v1760
        %1762 = vmatmul.bf16.gmra.mxu0 %v822
        %v1763 = vpop.f32.mrf.mxu0
        %v1764 = vadd.f32 %v1725, %v1763
        %v1765 = vpop.f32.mrf.mxu0
        %v1766 = vadd.f32 %v1727, %v1765
        %1767 = vmatmul.bf16.gmra.mxu0 %v824
        %v1768 = vpop.f32.mrf.mxu0
        %v1769 = vadd.f32 %v1730, %v1768
        %v1770 = vpop.f32.mrf.mxu0
        %v1771 = vadd.f32 %v1732, %v1770
        %1772 = vdwg.mxu0
        %1773 = vmatpush.bf16.msra.mxu0 %v1512
        %1774 = vmatpush.bf16.msra.mxu0 %v1511
        %1775 = vmatpush.bf16.msra.mxu0 %v1510
        %1776 = vmatpush.bf16.msra.mxu0 %v1509
        %1777 = vmatpush.bf16.msra.mxu0 %v1508
        %1778 = vmatpush.bf16.msra.mxu0 %v1507
        %1779 = vmatpush.bf16.msra.mxu0 %v1506
        %1780 = vmatpush.bf16.msra.mxu0 %v1505
        %1781 = vmatmul.bf16.gmra.mxu0 %v846
        %v1782 = vpop.f32.mrf.mxu0
        %v1783 = vadd.f32 %v1744, %v1782
        %v1784 = vpop.f32.mrf.mxu0
        %v1785 = vadd.f32 %v1746, %v1784
        %1786 = vmatmul.bf16.gmra.mxu0 %v850
        %v1787 = vpop.f32.mrf.mxu0
        %v1788 = vadd.f32 %v1749, %v1787
        %v1789 = vpop.f32.mrf.mxu0
        %v1790 = vadd.f32 %v1751, %v1789
        %1791 = vmatmul.bf16.gmra.mxu0 %v854
        %v1792 = vpop.f32.mrf.mxu0
        %v1793 = vadd.f32 %v1754, %v1792
        %v1794 = vpop.f32.mrf.mxu0
        %v1795 = vadd.f32 %v1756, %v1794
        %1796 = vmatmul.bf16.gmra.mxu0 %v858
        %v1797 = vpop.f32.mrf.mxu0
        %v1798 = vadd.f32 %v1759, %v1797
        %v1799 = vpop.f32.mrf.mxu0
        %v1800 = vadd.f32 %v1761, %v1799
        %1801 = vmatmul.bf16.gmra.mxu0 %v862
        %v1802 = vpop.f32.mrf.mxu0
        %v1803 = vadd.f32 %v1764, %v1802
        %v1804 = vpop.f32.mrf.mxu0
        %v1805 = vadd.f32 %v1766, %v1804
        %1806 = vmatmul.bf16.gmra.mxu0 %v871
        %v1807 = vpop.f32.mrf.mxu0
        %v1808 = vadd.f32 %v1769, %v1807
        %v1809 = vpop.f32.mrf.mxu0
        %v1810 = vadd.f32 %v1771, %v1809
        %1811 = vdwg.mxu0
        %1812 = vmatpush.bf16.msra.mxu0 %v1520
        %1813 = vmatpush.bf16.msra.mxu0 %v1519
        %1814 = vmatpush.bf16.msra.mxu0 %v1518
        %1815 = vmatpush.bf16.msra.mxu0 %v1517
        %1816 = vmatpush.bf16.msra.mxu0 %v1516
        %1817 = vmatpush.bf16.msra.mxu0 %v1515
        %1818 = vmatpush.bf16.msra.mxu0 %v1514
        %1819 = vmatpush.bf16.msra.mxu0 %v1513
        %1820 = vmatmul.bf16.gmra.mxu0 %v878
        %v1821 = vpop.f32.mrf.mxu0
        %v1822 = vadd.f32 %v1783, %v1821
        %v1823 = vpop.f32.mrf.mxu0
        %v1824 = vadd.f32 %v1785, %v1823
        %1825 = vmatmul.bf16.gmra.mxu0 %v879
        %v1826 = vpop.f32.mrf.mxu0
        %v1827 = vadd.f32 %v1788, %v1826
        %v1828 = vpop.f32.mrf.mxu0
        %v1829 = vadd.f32 %v1790, %v1828
        %1830 = vmatmul.bf16.gmra.mxu0 %v880
        %v1831 = vpop.f32.mrf.mxu0
        %v1832 = vadd.f32 %v1793, %v1831
        %v1833 = vpop.f32.mrf.mxu0
        %v1834 = vadd.f32 %v1795, %v1833
        %1835 = vmatmul.bf16.gmra.mxu0 %v881
        %v1836 = vpop.f32.mrf.mxu0
        %v1837 = vadd.f32 %v1798, %v1836
        %v1838 = vpop.f32.mrf.mxu0
        %v1839 = vadd.f32 %v1800, %v1838
        %1840 = vmatmul.bf16.gmra.mxu0 %v882
        %v1841 = vpop.f32.mrf.mxu0
        %v1842 = vadd.f32 %v1803, %v1841
        %v1843 = vpop.f32.mrf.mxu0
        %v1844 = vadd.f32 %v1805, %v1843
        %1845 = vmatmul.bf16.gmra.mxu0 %v883
        %v1846 = vpop.f32.mrf.mxu0
        %v1847 = vadd.f32 %v1808, %v1846
        %v1848 = vpop.f32.mrf.mxu0
        %v1849 = vadd.f32 %v1810, %v1848
        %1850 = vdwg.mxu0
        %1851 = vmatpush.bf16.msra.mxu0 %v1528
        %1852 = vmatpush.bf16.msra.mxu0 %v1527
        %1853 = vmatpush.bf16.msra.mxu0 %v1526
        %1854 = vmatpush.bf16.msra.mxu0 %v1525
        %1855 = vmatpush.bf16.msra.mxu0 %v1524
        %1856 = vmatpush.bf16.msra.mxu0 %v1523
        %1857 = vmatpush.bf16.msra.mxu0 %v1522
        %1858 = vmatpush.bf16.msra.mxu0 %v1521
        %1859 = vmatmul.bf16.gmra.mxu0 %v926
        %v1860 = vpop.f32.mrf.mxu0
        %v1861 = vadd.f32 %v1822, %v1860
        %v1862 = vpop.f32.mrf.mxu0
        %v1863 = vadd.f32 %v1824, %v1862
        %1864 = vmatmul.bf16.gmra.mxu0 %v928
        %v1865 = vpop.f32.mrf.mxu0
        %v1866 = vadd.f32 %v1827, %v1865
        %v1867 = vpop.f32.mrf.mxu0
        %v1868 = vadd.f32 %v1829, %v1867
        %1869 = vmatmul.bf16.gmra.mxu0 %v930
        %v1870 = vpop.f32.mrf.mxu0
        %v1871 = vadd.f32 %v1832, %v1870
        %v1872 = vpop.f32.mrf.mxu0
        %v1873 = vadd.f32 %v1834, %v1872
        %1874 = vmatmul.bf16.gmra.mxu0 %v932
        %v1875 = vpop.f32.mrf.mxu0
        %v1876 = vadd.f32 %v1837, %v1875
        %v1877 = vpop.f32.mrf.mxu0
        %v1878 = vadd.f32 %v1839, %v1877
        %1879 = vmatmul.bf16.gmra.mxu0 %v934
        %v1880 = vpop.f32.mrf.mxu0
        %v1881 = vadd.f32 %v1842, %v1880
        %v1882 = vpop.f32.mrf.mxu0
        %v1883 = vadd.f32 %v1844, %v1882
        %1884 = vmatmul.bf16.gmra.mxu0 %v936
        %v1885 = vpop.f32.mrf.mxu0
        %v1886 = vadd.f32 %v1847, %v1885
        %v1887 = vpop.f32.mrf.mxu0
        %v1888 = vadd.f32 %v1849, %v1887
        %1889 = vdwg.mxu0
        %1890 = vmatpush.bf16.msra.mxu0 %v1536
        %1891 = vmatpush.bf16.msra.mxu0 %v1535
        %1892 = vmatpush.bf16.msra.mxu0 %v1534
        %1893 = vmatpush.bf16.msra.mxu0 %v1533
        %1894 = vmatpush.bf16.msra.mxu0 %v1532
        %1895 = vmatpush.bf16.msra.mxu0 %v1531
        %1896 = vmatpush.bf16.msra.mxu0 %v1530
        %1897 = vmatpush.bf16.msra.mxu0 %v1529
        %1898 = vmatmul.bf16.gmra.mxu0 %v963
        %v1899 = vpop.f32.mrf.mxu0
        %v1900 = vadd.f32 %v1861, %v1899
        %v1901 = vpop.f32.mrf.mxu0
        %v1902 = vadd.f32 %v1863, %v1901
        %1903 = vmatmul.bf16.gmra.mxu0 %v972
        %v1904 = vpop.f32.mrf.mxu0
        %v1905 = vadd.f32 %v1866, %v1904
        %v1906 = vpop.f32.mrf.mxu0
        %v1907 = vadd.f32 %v1868, %v1906
        %1908 = vmatmul.bf16.gmra.mxu0 %v981
        %v1909 = vpop.f32.mrf.mxu0
        %v1910 = vadd.f32 %v1871, %v1909
        %v1911 = vpop.f32.mrf.mxu0
        %v1912 = vadd.f32 %v1873, %v1911
        %1913 = vmatmul.bf16.gmra.mxu0 %v990
        %v1914 = vpop.f32.mrf.mxu0
        %v1915 = vadd.f32 %v1876, %v1914
        %v1916 = vpop.f32.mrf.mxu0
        %v1917 = vadd.f32 %v1878, %v1916
        %1918 = vmatmul.bf16.gmra.mxu0 %v999
        %v1919 = vpop.f32.mrf.mxu0
        %v1920 = vadd.f32 %v1881, %v1919
        %v1921 = vpop.f32.mrf.mxu0
        %v1922 = vadd.f32 %v1883, %v1921
        %1923 = vmatmul.bf16.gmra.mxu0 %v1008
        %v1924 = vpop.f32.mrf.mxu0
        %v1925 = vadd.f32 %v1886, %v1924
        %v1926 = vpop.f32.mrf.mxu0
        %v1927 = vadd.f32 %v1888, %v1926
        %1928 = vdwg.mxu0
        %1929 = vmatpush.bf16.msra.mxu0 %v1544
        %1930 = vmatpush.bf16.msra.mxu0 %v1543
        %1931 = vmatpush.bf16.msra.mxu0 %v1542
        %1932 = vmatpush.bf16.msra.mxu0 %v1541
        %1933 = vmatpush.bf16.msra.mxu0 %v1540
        %1934 = vmatpush.bf16.msra.mxu0 %v1539
        %1935 = vmatpush.bf16.msra.mxu0 %v1538
        %1936 = vmatpush.bf16.msra.mxu0 %v1537
        %1937 = vmatmul.bf16.gmra.mxu0 %v1020
        %v1938 = vpop.f32.mrf.mxu0
        %v1939 = vadd.f32 %v1900, %v1938
        %v1940 = vpop.f32.mrf.mxu0
        %v1941 = vadd.f32 %v1902, %v1940
        %1942 = vmatmul.bf16.gmra.mxu0 %v1022
        %v1943 = vpop.f32.mrf.mxu0
        %v1944 = vadd.f32 %v1905, %v1943
        %v1945 = vpop.f32.mrf.mxu0
        %v1946 = vadd.f32 %v1907, %v1945
        %1947 = vmatmul.bf16.gmra.mxu0 %v1024
        %v1948 = vpop.f32.mrf.mxu0
        %v1949 = vadd.f32 %v1910, %v1948
        %v1950 = vpop.f32.mrf.mxu0
        %v1951 = vadd.f32 %v1912, %v1950
        %1952 = vmatmul.bf16.gmra.mxu0 %v1026
        %v1953 = vpop.f32.mrf.mxu0
        %v1954 = vadd.f32 %v1915, %v1953
        %v1955 = vpop.f32.mrf.mxu0
        %v1956 = vadd.f32 %v1917, %v1955
        %1957 = vmatmul.bf16.gmra.mxu0 %v1028
        %v1958 = vpop.f32.mrf.mxu0
        %v1959 = vadd.f32 %v1920, %v1958
        %v1960 = vpop.f32.mrf.mxu0
        %v1961 = vadd.f32 %v1922, %v1960
        %1962 = vmatmul.bf16.gmra.mxu0 %v1030
        %v1963 = vpop.f32.mrf.mxu0
        %v1964 = vadd.f32 %v1925, %v1963
        %v1965 = vpop.f32.mrf.mxu0
        %v1966 = vadd.f32 %v1927, %v1965
        %1967 = vdwg.mxu0
        %v1968 = vsel %vm627, 1, 0
        %v1969 = vsel %vm628, 1, 0
        %v1970 = vsel %vm629, 1, 0
        %v1971 = vsel %vm630, 1, 0
        %v1972 = vsel %vm631, 1, 0
        %v1973 = vsel %vm632, 1, 0
        %v1974 = vsel %vm633, 1, 0
        %v1975 = vsel %vm634, 1, 0
        %v1976 = vsel %vm635, 1, 0
        %v1977 = vsel %vm636, 1, 0
        %v1978 = vsel %vm637, 1, 0
        %v1979 = vsel %vm638, 1, 0
        %vm1980 = vcmp.eq.s32.totalorder %v1968, 1
        %vm1981 = vcmp.eq.s32.totalorder %v1969, 1
        %vm1982 = vcmp.eq.s32.totalorder %v1970, 1
        %vm1983 = vcmp.eq.s32.totalorder %v1971, 1
        %vm1984 = vcmp.eq.s32.totalorder %v1972, 1
        %vm1985 = vcmp.eq.s32.totalorder %v1973, 1
        %vm1986 = vcmp.eq.s32.totalorder %v1974, 1
        %vm1987 = vcmp.eq.s32.totalorder %v1975, 1
        %vm1988 = vcmp.eq.s32.totalorder %v1976, 1
        %vm1989 = vcmp.eq.s32.totalorder %v1977, 1
        %vm1990 = vcmp.eq.s32.totalorder %v1978, 1
        %vm1991 = vcmp.eq.s32.totalorder %v1979, 1
        %v1992 = vsel %vm1980, %v1939, 0.0
        %v1993 = vsel %vm1981, %v1941, 0.0
        %v1994 = vsel %vm1982, %v1944, 0.0
        %v1995 = vsel %vm1983, %v1946, 0.0
        %v1996 = vsel %vm1984, %v1949, 0.0
        %v1997 = vsel %vm1985, %v1951, 0.0
        %v1998 = vsel %vm1986, %v1954, 0.0
        %v1999 = vsel %vm1987, %v1956, 0.0
        %v2000 = vsel %vm1988, %v1959, 0.0
        %v2001 = vsel %vm1989, %v1961, 0.0
        %v2002 = vsel %vm1990, %v1964, 0.0
        %v2003 = vsel %vm1991, %v1966, 0.0
        %v2004 = vpack.c.bf16 %v1992, %v1992
        %v2005 = vpack.c.bf16 %v1993, %v1993
        %v2006 = vpack.c.bf16 %v1994, %v1994
        %v2007 = vpack.c.bf16 %v1995, %v1995
        %v2008 = vpack.c.bf16 %v1996, %v1996
        %v2009 = vpack.c.bf16 %v1997, %v1997
        %v2010 = vpack.c.bf16 %v1998, %v1998
        %v2011 = vpack.c.bf16 %v1999, %v1999
        %v2012 = vpack.c.bf16 %v2000, %v2000
        %v2013 = vpack.c.bf16 %v2001, %v2001
        %v2014 = vpack.c.bf16 %v2002, %v2002
        %v2015 = vpack.c.bf16 %v2003, %v2003
        %vm2016 = vsmask.f32 7440
        %vm2017 = vmor %vm640, %vm2016
        %v2019 = vshll.u32 %v2004, 16
        %v2021 = vrot.slane %v2019, 5
        %v2022 = vshrl.u32 %v2004, 16
        %v2024 = vrot.slane %v2022, 4
        %v2025 = vor.u32 %v2024, %v2021
        %v2026 = vrot.slane %v2025, 4
        %v2028 = vshll.u32 %v2005, 16
        %v2030 = vrot.slane %v2028, 5
        %v2031 = vsel %vm2017, %v2026, %v2030
        %v2032 = vshrl.u32 %v2005, 16
        %v2034 = vrot.slane %v2032, 4
        %v2035 = vor.u32 %v2034, %v2030
        %v2036 = vrot.slane %v2035, 4
        %v2038 = vshll.u32 %v2006, 16
        %v2040 = vrot.slane %v2038, 5
        %v2041 = vsel %vm2017, %v2036, %v2040
        %v2042 = vshrl.u32 %v2006, 16
        %v2044 = vrot.slane %v2042, 4
        %v2045 = vor.u32 %v2044, %v2040
        %v2046 = vrot.slane %v2045, 4
        %v2048 = vshll.u32 %v2007, 16
        %v2050 = vrot.slane %v2048, 5
        %v2051 = vsel %vm2017, %v2046, %v2050
        %v2052 = vshrl.u32 %v2007, 16
        %v2054 = vrot.slane %v2052, 4
        %v2055 = vor.u32 %v2054, %v2050
        %v2056 = vrot.slane %v2055, 4
        %v2058 = vshll.u32 %v2008, 16
        %v2060 = vrot.slane %v2058, 5
        %v2061 = vsel %vm2017, %v2056, %v2060
        %v2062 = vshrl.u32 %v2008, 16
        %v2064 = vrot.slane %v2062, 4
        %v2065 = vor.u32 %v2064, %v2060
        %v2066 = vrot.slane %v2065, 4
        %v2068 = vshll.u32 %v2009, 16
        %v2070 = vrot.slane %v2068, 5
        %v2071 = vsel %vm2017, %v2066, %v2070
        %v2072 = vshrl.u32 %v2009, 16
        %v2074 = vrot.slane %v2072, 4
        %v2075 = vor.u32 %v2074, %v2070
        %v2076 = vrot.slane %v2075, 4
        %v2078 = vshll.u32 %v2010, 16
        %v2080 = vrot.slane %v2078, 5
        %v2081 = vsel %vm2017, %v2076, %v2080
        %v2082 = vshrl.u32 %v2010, 16
        %v2084 = vrot.slane %v2082, 4
        %v2085 = vor.u32 %v2084, %v2080
        %v2086 = vrot.slane %v2085, 4
        %v2088 = vshll.u32 %v2011, 16
        %v2090 = vrot.slane %v2088, 5
        %v2091 = vsel %vm2017, %v2086, %v2090
        %v2092 = vshrl.u32 %v2011, 16
        %v2094 = vrot.slane %v2092, 4
        %v2095 = vor.u32 %v2094, %v2090
        %v2096 = vrot.slane %v2095, 4
        %v2098 = vshll.u32 %v2012, 16
        %v2100 = vrot.slane %v2098, 5
        %v2101 = vsel %vm2017, %v2096, %v2100
        %v2102 = vshrl.u32 %v2012, 16
        %v2104 = vrot.slane %v2102, 4
        %v2105 = vor.u32 %v2104, %v2100
        %v2106 = vrot.slane %v2105, 4
        %v2108 = vshll.u32 %v2013, 16
        %v2110 = vrot.slane %v2108, 5
        %v2111 = vsel %vm2017, %v2106, %v2110
        %v2112 = vshrl.u32 %v2013, 16
        %v2114 = vrot.slane %v2112, 4
        %v2115 = vor.u32 %v2114, %v2110
        %v2116 = vrot.slane %v2115, 4
        %v2118 = vshll.u32 %v2014, 16
        %v2120 = vrot.slane %v2118, 5
        %v2121 = vsel %vm2017, %v2116, %v2120
        %v2122 = vshrl.u32 %v2014, 16
        %v2124 = vrot.slane %v2122, 4
        %v2125 = vor.u32 %v2124, %v2120
        %v2126 = vrot.slane %v2125, 4
        %v2128 = vshll.u32 %v2015, 16
        %v2130 = vrot.slane %v2128, 5
        %v2131 = vsel %vm2017, %v2126, %v2130
        %v2132 = vshrl.u32 %v2015, 16
        %v2134 = vrot.slane %v2132, 4
        %v2135 = vor.u32 %v2134, %v2130
        %v2136 = vrot.slane %v2135, 4
        %v2150 = vld [vmem:[#allocation2] sm:$0x8]
        %v2151 = vsel %vm647, %v2021, %v2150
        %2152 = vst [vmem:[#allocation2] sm:$0x8] %v2151
        %2153 = vst [vmem:[#allocation2 + $0x4] sm:$0xf] %v2031
        %2154 = vst [vmem:[#allocation2 + $0x8] sm:$0xf] %v2041
        %2155 = vst [vmem:[#allocation2 + $0xc] sm:$0xf] %v2051
        %2156 = vst [vmem:[#allocation2 + $0x10] sm:$0xf] %v2061
        %2157 = vst [vmem:[#allocation2 + $0x14] sm:$0xf] %v2071
        %2158 = vst [vmem:[#allocation2 + $0x18] sm:$0xf] %v2081
        %2159 = vst [vmem:[#allocation2 + $0x1c] sm:$0xf] %v2091
        %2160 = vst [vmem:[#allocation2 + $0x20] sm:$0xf] %v2101
        %2161 = vst [vmem:[#allocation2 + $0x24] sm:$0xf] %v2111
        %2162 = vst [vmem:[#allocation2 + $0x28] sm:$0xf] %v2121
        %2163 = vst [vmem:[#allocation2 + $0x2c] sm:$0xf] %v2131
        %v2164 = vld [vmem:[#allocation2 + $0x30] sm:$0xf]
        %v2165 = vsel %vm641, %v2136, %v2164
        %2166 = vst [vmem:[#allocation2 + $0x30] sm:$0xf] %v2165
        %v2167 = vld [vmem:[#allocation2] sm:$0xf]
        %v2168 = vld [vmem:[#allocation2 + $0x4] sm:$0xf]
        %v2169 = vld [vmem:[#allocation2 + $0x8] sm:$0xf]
        %v2170 = vld [vmem:[#allocation2 + $0xc] sm:$0xf]
        %v2171 = vld [vmem:[#allocation2 + $0x10] sm:$0xf]
        %v2172 = vld [vmem:[#allocation2 + $0x14] sm:$0xf]
        %v2173 = vld [vmem:[#allocation2 + $0x18] sm:$0xf]
        %v2174 = vld [vmem:[#allocation2 + $0x1c] sm:$0xf]
        %v2175 = vld [vmem:[#allocation2 + $0x20] sm:$0xf]
        %v2176 = vld [vmem:[#allocation2 + $0x24] sm:$0xf]
        %v2177 = vld [vmem:[#allocation2 + $0x28] sm:$0xf]
        %v2178 = vld [vmem:[#allocation2 + $0x2c] sm:$0xf]
        %v2179 = vld [vmem:[#allocation2 + $0x30] sm:$0x1]
        %v2180 = vld [vmem:[#allocation2] sm:$0xe]
        %v2181 = vld [vmem:[#allocation2] sm:$0x8]
        %v2182 = vld [vmem:[#allocation2 + $0x30] sm:$0x7]
        %v2183 = vld [vmem:[#allocation2 + $0x30] sm:$0xf]
        %v2184 = vld [vmem:[#allocation2 + $0x4] sm:$0xc]
        %v2185 = vld [vmem:[#allocation2 + $0x8] sm:$0xf]
        %v2186 = vld [vmem:[#allocation2 + $0xc] sm:$0xf]
        %v2187 = vld [vmem:[#allocation2 + $0x10] sm:$0xf]
        %v2188 = vld [vmem:[#allocation2 + $0x14] sm:$0xf]
        %v2189 = vld [vmem:[#allocation2 + $0x18] sm:$0xf]
        %v2190 = vld [vmem:[#allocation2 + $0x1c] sm:$0xf]
        %v2191 = vld [vmem:[#allocation2 + $0x20] sm:$0xf]
        %v2192 = vld [vmem:[#allocation2 + $0x24] sm:$0xf]
        %v2193 = vld [vmem:[#allocation2 + $0x28] sm:$0xf]
        %v2194 = vld [vmem:[#allocation2 + $0x2c] sm:$0xf]
        %v2195 = vld [vmem:[#allocation2 + $0x30] sm:$0xf]
        %v2196 = vld [vmem:[#allocation2 + $0x34] sm:$0x3]
        %v2197 = vld [vmem:[#allocation2 + $0x34] sm:$0x7]
        %v2198 = vld [vmem:[#allocation2 + $0x4] sm:$0x8]
        %v2211 = vunpack.c.l.b16 %v2167
        %v2212 = vunpack.c.l.b16 %v2168
        %v2213 = vunpack.c.l.b16 %v2169
        %v2214 = vunpack.c.l.b16 %v2170
        %v2215 = vunpack.c.l.b16 %v2171
        %v2216 = vunpack.c.l.b16 %v2172
        %v2217 = vunpack.c.l.b16 %v2173
        %v2218 = vunpack.c.l.b16 %v2174
        %v2219 = vunpack.c.l.b16 %v2175
        %v2220 = vunpack.c.l.b16 %v2176
        %v2221 = vunpack.c.l.b16 %v2177
        %v2222 = vunpack.c.l.b16 %v2178
        %v2223 = vpack.c.b16 %v2212, %v2211
        %v2224 = vpack.c.b16 %v2214, %v2213
        %v2225 = vpack.c.b16 %v2216, %v2215
        %v2226 = vpack.c.b16 %v2218, %v2217
        %v2227 = vpack.c.b16 %v2220, %v2219
        %v2228 = vpack.c.b16 %v2222, %v2221
        %v2236 = vunpack.c.l.b16 %v2179
        %v2237 = vpack.c.b16 %v2236, %v2236
        %v2239 = vshrl.u32 %v2223, 16
        %v2241 = vshll.u32 %v2223, 16
        %v2243 = vrot.slane %v2241, 1
        %v2244 = vor.u32 %v2239, %v2243
        %v2246 = vshll.u32 %v2224, 16
        %v2248 = vrot.slane %v2246, 1
        %v2249 = vsel %vm723, %v2244, %v2248
        %v2250 = vshrl.u32 %v2224, 16
        %v2252 = vor.u32 %v2250, %v2248
        %v2254 = vshll.u32 %v2225, 16
        %v2256 = vrot.slane %v2254, 1
        %v2257 = vsel %vm723, %v2252, %v2256
        %v2258 = vshrl.u32 %v2225, 16
        %v2260 = vor.u32 %v2258, %v2256
        %v2262 = vshll.u32 %v2226, 16
        %v2264 = vrot.slane %v2262, 1
        %v2265 = vsel %vm723, %v2260, %v2264
        %v2266 = vshrl.u32 %v2226, 16
        %v2268 = vor.u32 %v2266, %v2264
        %v2270 = vshll.u32 %v2227, 16
        %v2272 = vrot.slane %v2270, 1
        %v2273 = vsel %vm723, %v2268, %v2272
        %v2274 = vshrl.u32 %v2227, 16
        %v2276 = vor.u32 %v2274, %v2272
        %v2278 = vshll.u32 %v2228, 16
        %v2280 = vrot.slane %v2278, 1
        %v2281 = vsel %vm723, %v2276, %v2280
        %v2282 = vshrl.u32 %v2228, 16
        %v2284 = vor.u32 %v2282, %v2280
        %v2286 = vshll.u32 %v2237, 16
        %v2288 = vrot.slane %v2286, 1
        %v2289 = vsel %vm723, %v2284, %v2288
        %v2297 = vunpack.c.l.b16 %v2180
        %v2298 = vpack.c.b16 %v2212, %v2297
        %v2299 = vrot.slane %v2298, 1
        %v2300 = vrot.slane %v2224, 1
        %v2301 = vsel %vm785, %v2299, %v2300
        %v2302 = vrot.slane %v2225, 1
        %v2303 = vsel %vm785, %v2300, %v2302
        %v2304 = vrot.slane %v2226, 1
        %v2305 = vsel %vm785, %v2302, %v2304
        %v2306 = vrot.slane %v2227, 1
        %v2307 = vsel %vm785, %v2304, %v2306
        %v2308 = vrot.slane %v2228, 1
        %v2309 = vsel %vm785, %v2306, %v2308
        %v2310 = vrot.slane %v2237, 1
        %v2311 = vsel %vm785, %v2308, %v2310
        %v2320 = vunpack.c.l.b16 %v2181
        %v2321 = vunpack.c.l.b16 %v2182
        %v2322 = vpack.c.b16 %v2212, %v2320
        %v2323 = vpack.c.b16 %v2321, %v2321
        %v2324 = vrot.slane %v2322, 3
        %v2325 = vrot.slane %v2224, 3
        %v2326 = vsel %vm811, %v2324, %v2325
        %v2327 = vrot.slane %v2225, 3
        %v2328 = vsel %vm811, %v2325, %v2327
        %v2329 = vrot.slane %v2226, 3
        %v2330 = vsel %vm811, %v2327, %v2329
        %v2331 = vrot.slane %v2227, 3
        %v2332 = vsel %vm811, %v2329, %v2331
        %v2333 = vrot.slane %v2228, 3
        %v2334 = vsel %vm811, %v2331, %v2333
        %v2335 = vrot.slane %v2323, 3
        %v2336 = vsel %vm811, %v2333, %v2335
        %v2344 = vunpack.c.l.b16 %v2183
        %v2345 = vpack.c.b16 %v2344, %v2344
        %v2347 = vshrl.u32 %v2322, 16
        %v2349 = vrot.slane %v2347, 3
        %v2350 = vshll.u32 %v2322, 16
        %v2352 = vrot.slane %v2350, 4
        %v2353 = vor.u32 %v2349, %v2352
        %v2354 = vrot.slane %v2250, 3
        %v2355 = vrot.slane %v2246, 4
        %v2356 = vor.u32 %v2354, %v2355
        %v2357 = vsel %vm834, %v2353, %v2356
        %v2358 = vrot.slane %v2258, 3
        %v2359 = vrot.slane %v2254, 4
        %v2360 = vor.u32 %v2358, %v2359
        %v2361 = vsel %vm834, %v2356, %v2360
        %v2362 = vrot.slane %v2266, 3
        %v2363 = vrot.slane %v2262, 4
        %v2364 = vor.u32 %v2362, %v2363
        %v2365 = vsel %vm834, %v2360, %v2364
        %v2366 = vrot.slane %v2274, 3
        %v2367 = vrot.slane %v2270, 4
        %v2368 = vor.u32 %v2366, %v2367
        %v2369 = vsel %vm834, %v2364, %v2368
        %v2370 = vrot.slane %v2282, 3
        %v2371 = vrot.slane %v2278, 4
        %v2372 = vor.u32 %v2370, %v2371
        %v2373 = vsel %vm834, %v2368, %v2372
        %v2375 = vshrl.u32 %v2345, 16
        %v2377 = vrot.slane %v2375, 3
        %v2378 = vshll.u32 %v2345, 16
        %v2380 = vrot.slane %v2378, 4
        %v2381 = vor.u32 %v2377, %v2380
        %v2382 = vsel %vm834, %v2372, %v2381
        %v2389 = vpack.c.b16 %v2213, %v2212
        %v2390 = vpack.c.b16 %v2215, %v2214
        %v2391 = vpack.c.b16 %v2217, %v2216
        %v2392 = vpack.c.b16 %v2219, %v2218
        %v2393 = vpack.c.b16 %v2221, %v2220
        %v2394 = vpack.c.b16 %v2344, %v2222
        %v2414 = vunpack.c.l.b16 %v2184
        %v2415 = vunpack.c.l.b16 %v2185
        %v2416 = vunpack.c.l.b16 %v2186
        %v2417 = vunpack.c.l.b16 %v2187
        %v2418 = vunpack.c.l.b16 %v2188
        %v2419 = vunpack.c.l.b16 %v2189
        %v2420 = vunpack.c.l.b16 %v2190
        %v2421 = vunpack.c.l.b16 %v2191
        %v2422 = vunpack.c.l.b16 %v2192
        %v2423 = vunpack.c.l.b16 %v2193
        %v2424 = vunpack.c.l.b16 %v2194
        %v2425 = vunpack.c.l.b16 %v2195
        %v2426 = vunpack.c.l.b16 %v2196
        %v2427 = vpack.c.b16 %v2415, %v2414
        %v2428 = vpack.c.b16 %v2417, %v2416
        %v2429 = vpack.c.b16 %v2419, %v2418
        %v2430 = vpack.c.b16 %v2421, %v2420
        %v2431 = vpack.c.b16 %v2423, %v2422
        %v2432 = vpack.c.b16 %v2425, %v2424
        %v2433 = vpack.c.b16 %v2426, %v2426
        %v2434 = vrot.slane %v2427, 2
        %v2435 = vrot.slane %v2428, 2
        %v2436 = vsel %vm923, %v2434, %v2435
        %v2437 = vrot.slane %v2429, 2
        %v2438 = vsel %vm923, %v2435, %v2437
        %v2439 = vrot.slane %v2430, 2
        %v2440 = vsel %vm923, %v2437, %v2439
        %v2441 = vrot.slane %v2431, 2
        %v2442 = vsel %vm923, %v2439, %v2441
        %v2443 = vrot.slane %v2432, 2
        %v2444 = vsel %vm923, %v2441, %v2443
        %v2445 = vrot.slane %v2433, 2
        %v2446 = vsel %vm923, %v2443, %v2445
        %v2454 = vunpack.c.l.b16 %v2197
        %v2455 = vpack.c.b16 %v2454, %v2454
        %v2457 = vshrl.u32 %v2427, 16
        %v2459 = vrot.slane %v2457, 2
        %v2460 = vshll.u32 %v2427, 16
        %v2462 = vrot.slane %v2460, 3
        %v2463 = vor.u32 %v2459, %v2462
        %v2465 = vshrl.u32 %v2428, 16
        %v2467 = vrot.slane %v2465, 2
        %v2468 = vshll.u32 %v2428, 16
        %v2470 = vrot.slane %v2468, 3
        %v2471 = vor.u32 %v2467, %v2470
        %v2472 = vsel %vm946, %v2463, %v2471
        %v2474 = vshrl.u32 %v2429, 16
        %v2476 = vrot.slane %v2474, 2
        %v2477 = vshll.u32 %v2429, 16
        %v2479 = vrot.slane %v2477, 3
        %v2480 = vor.u32 %v2476, %v2479
        %v2481 = vsel %vm946, %v2471, %v2480
        %v2483 = vshrl.u32 %v2430, 16
        %v2485 = vrot.slane %v2483, 2
        %v2486 = vshll.u32 %v2430, 16
        %v2488 = vrot.slane %v2486, 3
        %v2489 = vor.u32 %v2485, %v2488
        %v2490 = vsel %vm946, %v2480, %v2489
        %v2492 = vshrl.u32 %v2431, 16
        %v2494 = vrot.slane %v2492, 2
        %v2495 = vshll.u32 %v2431, 16
        %v2497 = vrot.slane %v2495, 3
        %v2498 = vor.u32 %v2494, %v2497
        %v2499 = vsel %vm946, %v2489, %v2498
        %v2501 = vshrl.u32 %v2432, 16
        %v2503 = vrot.slane %v2501, 2
        %v2504 = vshll.u32 %v2432, 16
        %v2506 = vrot.slane %v2504, 3
        %v2507 = vor.u32 %v2503, %v2506
        %v2508 = vsel %vm946, %v2498, %v2507
        %v2510 = vshrl.u32 %v2455, 16
        %v2512 = vrot.slane %v2510, 2
        %v2513 = vshll.u32 %v2455, 16
        %v2515 = vrot.slane %v2513, 3
        %v2516 = vor.u32 %v2512, %v2515
        %v2517 = vsel %vm946, %v2507, %v2516
        %v2525 = vunpack.c.l.b16 %v2198
        %v2526 = vpack.c.b16 %v2415, %v2525
        %v2527 = vrot.slane %v2526, 3
        %v2528 = vrot.slane %v2428, 3
        %v2529 = vsel %vm811, %v2527, %v2528
        %v2530 = vrot.slane %v2429, 3
        %v2531 = vsel %vm811, %v2528, %v2530
        %v2532 = vrot.slane %v2430, 3
        %v2533 = vsel %vm811, %v2530, %v2532
        %v2534 = vrot.slane %v2431, 3
        %v2535 = vsel %vm811, %v2532, %v2534
        %v2536 = vrot.slane %v2432, 3
        %v2537 = vsel %vm811, %v2534, %v2536
        %v2538 = vrot.slane %v2455, 3
        %v2539 = vsel %vm811, %v2536, %v2538
        %s2546 = scalar_lea.vmem [#allocation3], 576
        %v2547 = vld [vmem:[%s2546] sm:$0xf]
        %v2548 = vld [vmem:[%s2546 + $0x4] sm:$0xf]
        %v2549 = vld [vmem:[%s2546 + $0x8] sm:$0xf]
        %v2550 = vld [vmem:[%s2546 + $0xc] sm:$0xf]
        %v2551 = vld [vmem:[%s2546 + $0x10] sm:$0xf]
        %v2552 = vld [vmem:[%s2546 + $0x14] sm:$0xf]
        %v2553 = vld [vmem:[%s2546 + $0x18] sm:$0xf]
        %v2554 = vld [vmem:[%s2546 + $0x1c] sm:$0xf]
        %v2555 = vld [vmem:[%s2546 + $0x20] sm:$0xf]
        %v2556 = vld [vmem:[%s2546 + $0x24] sm:$0xf]
        %v2557 = vld [vmem:[%s2546 + $0x28] sm:$0xf]
        %v2558 = vld [vmem:[%s2546 + $0x2c] sm:$0xf]
        %v2559 = vld [vmem:[%s2546 + $0x30] sm:$0xf]
        %v2560 = vld [vmem:[%s2546 + $0x34] sm:$0xf]
        %v2561 = vld [vmem:[%s2546 + $0x38] sm:$0xf]
        %v2562 = vld [vmem:[%s2546 + $0x3c] sm:$0xf]
        %v2563 = vld [vmem:[%s2546 + $0x40] sm:$0xf]
        %v2564 = vld [vmem:[%s2546 + $0x44] sm:$0xf]
        %v2565 = vld [vmem:[%s2546 + $0x48] sm:$0xf]
        %v2566 = vld [vmem:[%s2546 + $0x4c] sm:$0xf]
        %v2567 = vld [vmem:[%s2546 + $0x50] sm:$0xf]
        %v2568 = vld [vmem:[%s2546 + $0x54] sm:$0xf]
        %v2569 = vld [vmem:[%s2546 + $0x58] sm:$0xf]
        %v2570 = vld [vmem:[%s2546 + $0x5c] sm:$0xf]
        %v2571 = vld [vmem:[%s2546 + $0x60] sm:$0xf]
        %v2572 = vld [vmem:[%s2546 + $0x64] sm:$0xf]
        %v2573 = vld [vmem:[%s2546 + $0x68] sm:$0xf]
        %v2574 = vld [vmem:[%s2546 + $0x6c] sm:$0xf]
        %v2575 = vld [vmem:[%s2546 + $0x70] sm:$0xf]
        %v2576 = vld [vmem:[%s2546 + $0x74] sm:$0xf]
        %v2577 = vld [vmem:[%s2546 + $0x78] sm:$0xf]
        %v2578 = vld [vmem:[%s2546 + $0x7c] sm:$0xf]
        %v2579 = vld [vmem:[%s2546 + $0x80] sm:$0xf]
        %v2580 = vld [vmem:[%s2546 + $0x84] sm:$0xf]
        %v2581 = vld [vmem:[%s2546 + $0x88] sm:$0xf]
        %v2582 = vld [vmem:[%s2546 + $0x8c] sm:$0xf]
        %v2583 = vld [vmem:[%s2546 + $0x90] sm:$0xf]
        %v2584 = vld [vmem:[%s2546 + $0x94] sm:$0xf]
        %v2585 = vld [vmem:[%s2546 + $0x98] sm:$0xf]
        %v2586 = vld [vmem:[%s2546 + $0x9c] sm:$0xf]
        %v2587 = vld [vmem:[%s2546 + $0xa0] sm:$0xf]
        %v2588 = vld [vmem:[%s2546 + $0xa4] sm:$0xf]
        %v2589 = vld [vmem:[%s2546 + $0xa8] sm:$0xf]
        %v2590 = vld [vmem:[%s2546 + $0xac] sm:$0xf]
        %v2591 = vld [vmem:[%s2546 + $0xb0] sm:$0xf]
        %v2592 = vld [vmem:[%s2546 + $0xb4] sm:$0xf]
        %v2593 = vld [vmem:[%s2546 + $0xb8] sm:$0xf]
        %v2594 = vld [vmem:[%s2546 + $0xbc] sm:$0xf]
        %v2595 = vld [vmem:[%s2546 + $0xc0] sm:$0xf]
        %v2596 = vld [vmem:[%s2546 + $0xc4] sm:$0xf]
        %v2597 = vld [vmem:[%s2546 + $0xc8] sm:$0xf]
        %v2598 = vld [vmem:[%s2546 + $0xcc] sm:$0xf]
        %v2599 = vld [vmem:[%s2546 + $0xd0] sm:$0xf]
        %v2600 = vld [vmem:[%s2546 + $0xd4] sm:$0xf]
        %v2601 = vld [vmem:[%s2546 + $0xd8] sm:$0xf]
        %v2602 = vld [vmem:[%s2546 + $0xdc] sm:$0xf]
        %v2603 = vld [vmem:[%s2546 + $0xe0] sm:$0xf]
        %v2604 = vld [vmem:[%s2546 + $0xe4] sm:$0xf]
        %v2605 = vld [vmem:[%s2546 + $0xe8] sm:$0xf]
        %v2606 = vld [vmem:[%s2546 + $0xec] sm:$0xf]
        %v2607 = vld [vmem:[%s2546 + $0xf0] sm:$0xf]
        %v2608 = vld [vmem:[%s2546 + $0xf4] sm:$0xf]
        %v2609 = vld [vmem:[%s2546 + $0xf8] sm:$0xf]
        %v2610 = vld [vmem:[%s2546 + $0xfc] sm:$0xf]
        %v2611 = vld [vmem:[%s2546 + $0x100] sm:$0xf]
        %v2612 = vld [vmem:[%s2546 + $0x104] sm:$0xf]
        %v2613 = vld [vmem:[%s2546 + $0x108] sm:$0xf]
        %v2614 = vld [vmem:[%s2546 + $0x10c] sm:$0xf]
        %v2615 = vld [vmem:[%s2546 + $0x110] sm:$0xf]
        %v2616 = vld [vmem:[%s2546 + $0x114] sm:$0xf]
        %v2617 = vld [vmem:[%s2546 + $0x118] sm:$0xf]
        %v2618 = vld [vmem:[%s2546 + $0x11c] sm:$0xf]
        %v2619 = vld [vmem:[%s2546 + $0x120] sm:$0xf]
        %v2620 = vld [vmem:[%s2546 + $0x124] sm:$0xf]
        %v2621 = vld [vmem:[%s2546 + $0x128] sm:$0xf]
        %v2622 = vld [vmem:[%s2546 + $0x12c] sm:$0xf]
        %v2623 = vld [vmem:[%s2546 + $0x130] sm:$0xf]
        %v2624 = vld [vmem:[%s2546 + $0x134] sm:$0xf]
        %v2625 = vld [vmem:[%s2546 + $0x138] sm:$0xf]
        %v2626 = vld [vmem:[%s2546 + $0x13c] sm:$0xf]
        %v2627 = vld [vmem:[%s2546 + $0x140] sm:$0xf]
        %v2628 = vld [vmem:[%s2546 + $0x144] sm:$0xf]
        %v2629 = vld [vmem:[%s2546 + $0x148] sm:$0xf]
        %v2630 = vld [vmem:[%s2546 + $0x14c] sm:$0xf]
        %v2631 = vld [vmem:[%s2546 + $0x150] sm:$0xf]
        %v2632 = vld [vmem:[%s2546 + $0x154] sm:$0xf]
        %v2633 = vld [vmem:[%s2546 + $0x158] sm:$0xf]
        %v2634 = vld [vmem:[%s2546 + $0x15c] sm:$0xf]
        %v2635 = vld [vmem:[%s2546 + $0x160] sm:$0xf]
        %v2636 = vld [vmem:[%s2546 + $0x164] sm:$0xf]
        %v2637 = vld [vmem:[%s2546 + $0x168] sm:$0xf]
        %v2638 = vld [vmem:[%s2546 + $0x16c] sm:$0xf]
        %v2639 = vld [vmem:[%s2546 + $0x170] sm:$0xf]
        %v2640 = vld [vmem:[%s2546 + $0x174] sm:$0xf]
        %v2641 = vld [vmem:[%s2546 + $0x178] sm:$0xf]
        %v2642 = vld [vmem:[%s2546 + $0x17c] sm:$0xf]
        %v2643 = vld [vmem:[%s2546 + $0x180] sm:$0xf]
        %v2644 = vld [vmem:[%s2546 + $0x184] sm:$0xf]
        %v2645 = vld [vmem:[%s2546 + $0x188] sm:$0xf]
        %v2646 = vld [vmem:[%s2546 + $0x18c] sm:$0xf]
        %v2647 = vld [vmem:[%s2546 + $0x190] sm:$0xf]
        %v2648 = vld [vmem:[%s2546 + $0x194] sm:$0xf]
        %v2649 = vld [vmem:[%s2546 + $0x198] sm:$0xf]
        %v2650 = vld [vmem:[%s2546 + $0x19c] sm:$0xf]
        %v2651 = vld [vmem:[%s2546 + $0x1a0] sm:$0xf]
        %v2652 = vld [vmem:[%s2546 + $0x1a4] sm:$0xf]
        %v2653 = vld [vmem:[%s2546 + $0x1a8] sm:$0xf]
        %v2654 = vld [vmem:[%s2546 + $0x1ac] sm:$0xf]
        %v2655 = vld [vmem:[%s2546 + $0x1b0] sm:$0xf]
        %v2656 = vld [vmem:[%s2546 + $0x1b4] sm:$0xf]
        %v2657 = vld [vmem:[%s2546 + $0x1b8] sm:$0xf]
        %v2658 = vld [vmem:[%s2546 + $0x1bc] sm:$0xf]
        %v2659 = vld [vmem:[%s2546 + $0x1c0] sm:$0xf]
        %v2660 = vld [vmem:[%s2546 + $0x1c4] sm:$0xf]
        %v2661 = vld [vmem:[%s2546 + $0x1c8] sm:$0xf]
        %v2662 = vld [vmem:[%s2546 + $0x1cc] sm:$0xf]
        %v2663 = vld [vmem:[%s2546 + $0x1d0] sm:$0xf]
        %v2664 = vld [vmem:[%s2546 + $0x1d4] sm:$0xf]
        %v2665 = vld [vmem:[%s2546 + $0x1d8] sm:$0xf]
        %v2666 = vld [vmem:[%s2546 + $0x1dc] sm:$0xf]
        %v2667 = vld [vmem:[%s2546 + $0x1e0] sm:$0xf]
        %v2668 = vld [vmem:[%s2546 + $0x1e4] sm:$0xf]
        %v2669 = vld [vmem:[%s2546 + $0x1e8] sm:$0xf]
        %v2670 = vld [vmem:[%s2546 + $0x1ec] sm:$0xf]
        %v2671 = vld [vmem:[%s2546 + $0x1f0] sm:$0xf]
        %v2672 = vld [vmem:[%s2546 + $0x1f4] sm:$0xf]
        %v2673 = vld [vmem:[%s2546 + $0x1f8] sm:$0xf]
        %v2674 = vld [vmem:[%s2546 + $0x1fc] sm:$0xf]
        %v2675 = vld [vmem:[%s2546 + $0x200] sm:$0xf]
        %v2676 = vld [vmem:[%s2546 + $0x204] sm:$0xf]
        %v2677 = vld [vmem:[%s2546 + $0x208] sm:$0xf]
        %v2678 = vld [vmem:[%s2546 + $0x20c] sm:$0xf]
        %v2679 = vld [vmem:[%s2546 + $0x210] sm:$0xf]
        %v2680 = vld [vmem:[%s2546 + $0x214] sm:$0xf]
        %v2681 = vld [vmem:[%s2546 + $0x218] sm:$0xf]
        %v2682 = vld [vmem:[%s2546 + $0x21c] sm:$0xf]
        %v2683 = vld [vmem:[%s2546 + $0x220] sm:$0xf]
        %v2684 = vld [vmem:[%s2546 + $0x224] sm:$0xf]
        %v2685 = vld [vmem:[%s2546 + $0x228] sm:$0xf]
        %v2686 = vld [vmem:[%s2546 + $0x22c] sm:$0xf]
        %v2687 = vld [vmem:[%s2546 + $0x230] sm:$0xf]
        %v2688 = vld [vmem:[%s2546 + $0x234] sm:$0xf]
        %v2689 = vld [vmem:[%s2546 + $0x238] sm:$0xf]
        %v2690 = vld [vmem:[%s2546 + $0x23c] sm:$0xf]
        %s2691 = scalar_lea.vmem [#allocation5], 1
        %v2692 = vld [vmem:[%s2691] sm:$0x1]
        %v2694 = vperm.slane %v2692, 0
        %v2840 = vunpack.c.l.b16 %v2547
        %v2841 = vunpack.c.l.b16 %v2548
        %v2842 = vunpack.c.l.b16 %v2549
        %v2843 = vunpack.c.l.b16 %v2550
        %v2844 = vunpack.c.l.b16 %v2551
        %v2845 = vunpack.c.l.b16 %v2552
        %v2846 = vunpack.c.l.b16 %v2553
        %v2847 = vunpack.c.l.b16 %v2554
        %v2848 = vunpack.c.l.b16 %v2555
        %v2849 = vunpack.c.l.b16 %v2556
        %v2850 = vunpack.c.l.b16 %v2557
        %v2851 = vunpack.c.l.b16 %v2558
        %v2852 = vunpack.c.l.b16 %v2559
        %v2853 = vunpack.c.l.b16 %v2560
        %v2854 = vunpack.c.l.b16 %v2561
        %v2855 = vunpack.c.l.b16 %v2562
        %v2856 = vunpack.c.l.b16 %v2563
        %v2857 = vunpack.c.l.b16 %v2564
        %v2858 = vunpack.c.l.b16 %v2565
        %v2859 = vunpack.c.l.b16 %v2566
        %v2860 = vunpack.c.l.b16 %v2567
        %v2861 = vunpack.c.l.b16 %v2568
        %v2862 = vunpack.c.l.b16 %v2569
        %v2863 = vunpack.c.l.b16 %v2570
        %v2864 = vunpack.c.l.b16 %v2571
        %v2865 = vunpack.c.l.b16 %v2572
        %v2866 = vunpack.c.l.b16 %v2573
        %v2867 = vunpack.c.l.b16 %v2574
        %v2868 = vunpack.c.l.b16 %v2575
        %v2869 = vunpack.c.l.b16 %v2576
        %v2870 = vunpack.c.l.b16 %v2577
        %v2871 = vunpack.c.l.b16 %v2578
        %v2872 = vunpack.c.l.b16 %v2579
        %v2873 = vunpack.c.l.b16 %v2580
        %v2874 = vunpack.c.l.b16 %v2581
        %v2875 = vunpack.c.l.b16 %v2582
        %v2876 = vunpack.c.l.b16 %v2583
        %v2877 = vunpack.c.l.b16 %v2584
        %v2878 = vunpack.c.l.b16 %v2585
        %v2879 = vunpack.c.l.b16 %v2586
        %v2880 = vunpack.c.l.b16 %v2587
        %v2881 = vunpack.c.l.b16 %v2588
        %v2882 = vunpack.c.l.b16 %v2589
        %v2883 = vunpack.c.l.b16 %v2590
        %v2884 = vunpack.c.l.b16 %v2591
        %v2885 = vunpack.c.l.b16 %v2592
        %v2886 = vunpack.c.l.b16 %v2593
        %v2887 = vunpack.c.l.b16 %v2594
        %v2888 = vunpack.c.l.b16 %v2595
        %v2889 = vunpack.c.l.b16 %v2596
        %v2890 = vunpack.c.l.b16 %v2597
        %v2891 = vunpack.c.l.b16 %v2598
        %v2892 = vunpack.c.l.b16 %v2599
        %v2893 = vunpack.c.l.b16 %v2600
        %v2894 = vunpack.c.l.b16 %v2601
        %v2895 = vunpack.c.l.b16 %v2602
        %v2896 = vunpack.c.l.b16 %v2603
        %v2897 = vunpack.c.l.b16 %v2604
        %v2898 = vunpack.c.l.b16 %v2605
        %v2899 = vunpack.c.l.b16 %v2606
        %v2900 = vunpack.c.l.b16 %v2607
        %v2901 = vunpack.c.l.b16 %v2608
        %v2902 = vunpack.c.l.b16 %v2609
        %v2903 = vunpack.c.l.b16 %v2610
        %v2904 = vunpack.c.l.b16 %v2611
        %v2905 = vunpack.c.l.b16 %v2612
        %v2906 = vunpack.c.l.b16 %v2613
        %v2907 = vunpack.c.l.b16 %v2614
        %v2908 = vunpack.c.l.b16 %v2615
        %v2909 = vunpack.c.l.b16 %v2616
        %v2910 = vunpack.c.l.b16 %v2617
        %v2911 = vunpack.c.l.b16 %v2618
        %v2912 = vunpack.c.l.b16 %v2619
        %v2913 = vunpack.c.l.b16 %v2620
        %v2914 = vunpack.c.l.b16 %v2621
        %v2915 = vunpack.c.l.b16 %v2622
        %v2916 = vunpack.c.l.b16 %v2623
        %v2917 = vunpack.c.l.b16 %v2624
        %v2918 = vunpack.c.l.b16 %v2625
        %v2919 = vunpack.c.l.b16 %v2626
        %v2920 = vunpack.c.l.b16 %v2627
        %v2921 = vunpack.c.l.b16 %v2628
        %v2922 = vunpack.c.l.b16 %v2629
        %v2923 = vunpack.c.l.b16 %v2630
        %v2924 = vunpack.c.l.b16 %v2631
        %v2925 = vunpack.c.l.b16 %v2632
        %v2926 = vunpack.c.l.b16 %v2633
        %v2927 = vunpack.c.l.b16 %v2634
        %v2928 = vunpack.c.l.b16 %v2635
        %v2929 = vunpack.c.l.b16 %v2636
        %v2930 = vunpack.c.l.b16 %v2637
        %v2931 = vunpack.c.l.b16 %v2638
        %v2932 = vunpack.c.l.b16 %v2639
        %v2933 = vunpack.c.l.b16 %v2640
        %v2934 = vunpack.c.l.b16 %v2641
        %v2935 = vunpack.c.l.b16 %v2642
        %v2936 = vunpack.c.l.b16 %v2643
        %v2937 = vunpack.c.l.b16 %v2644
        %v2938 = vunpack.c.l.b16 %v2645
        %v2939 = vunpack.c.l.b16 %v2646
        %v2940 = vunpack.c.l.b16 %v2647
        %v2941 = vunpack.c.l.b16 %v2648
        %v2942 = vunpack.c.l.b16 %v2649
        %v2943 = vunpack.c.l.b16 %v2650
        %v2944 = vunpack.c.l.b16 %v2651
        %v2945 = vunpack.c.l.b16 %v2652
        %v2946 = vunpack.c.l.b16 %v2653
        %v2947 = vunpack.c.l.b16 %v2654
        %v2948 = vunpack.c.l.b16 %v2655
        %v2949 = vunpack.c.l.b16 %v2656
        %v2950 = vunpack.c.l.b16 %v2657
        %v2951 = vunpack.c.l.b16 %v2658
        %v2952 = vunpack.c.l.b16 %v2659
        %v2953 = vunpack.c.l.b16 %v2660
        %v2954 = vunpack.c.l.b16 %v2661
        %v2955 = vunpack.c.l.b16 %v2662
        %v2956 = vunpack.c.l.b16 %v2663
        %v2957 = vunpack.c.l.b16 %v2664
        %v2958 = vunpack.c.l.b16 %v2665
        %v2959 = vunpack.c.l.b16 %v2666
        %v2960 = vunpack.c.l.b16 %v2667
        %v2961 = vunpack.c.l.b16 %v2668
        %v2962 = vunpack.c.l.b16 %v2669
        %v2963 = vunpack.c.l.b16 %v2670
        %v2964 = vunpack.c.l.b16 %v2671
        %v2965 = vunpack.c.l.b16 %v2672
        %v2966 = vunpack.c.l.b16 %v2673
        %v2967 = vunpack.c.l.b16 %v2674
        %v2968 = vunpack.c.l.b16 %v2675
        %v2969 = vunpack.c.l.b16 %v2676
        %v2970 = vunpack.c.l.b16 %v2677
        %v2971 = vunpack.c.l.b16 %v2678
        %v2972 = vunpack.c.l.b16 %v2679
        %v2973 = vunpack.c.l.b16 %v2680
        %v2974 = vunpack.c.l.b16 %v2681
        %v2975 = vunpack.c.l.b16 %v2682
        %v2976 = vunpack.c.l.b16 %v2683
        %v2977 = vunpack.c.l.b16 %v2684
        %v2978 = vunpack.c.l.b16 %v2685
        %v2979 = vunpack.c.l.b16 %v2686
        %v2980 = vunpack.c.l.b16 %v2687
        %v2981 = vunpack.c.l.b16 %v2688
        %v2982 = vunpack.c.l.b16 %v2689
        %v2983 = vunpack.c.l.b16 %v2690
        %v2984 = vpack.c.b16 %v2841, %v2840
        %v2985 = vpack.c.b16 %v2843, %v2842
        %v2986 = vpack.c.b16 %v2845, %v2844
        %v2987 = vpack.c.b16 %v2847, %v2846
        %v2988 = vpack.c.b16 %v2849, %v2848
        %v2989 = vpack.c.b16 %v2851, %v2850
        %v2990 = vpack.c.b16 %v2853, %v2852
        %v2991 = vpack.c.b16 %v2855, %v2854
        %v2992 = vpack.c.b16 %v2857, %v2856
        %v2993 = vpack.c.b16 %v2859, %v2858
        %v2994 = vpack.c.b16 %v2861, %v2860
        %v2995 = vpack.c.b16 %v2863, %v2862
        %v2996 = vpack.c.b16 %v2865, %v2864
        %v2997 = vpack.c.b16 %v2867, %v2866
        %v2998 = vpack.c.b16 %v2869, %v2868
        %v2999 = vpack.c.b16 %v2871, %v2870
        %v3000 = vpack.c.b16 %v2873, %v2872
        %v3001 = vpack.c.b16 %v2875, %v2874
        %v3002 = vpack.c.b16 %v2877, %v2876
        %v3003 = vpack.c.b16 %v2879, %v2878
        %v3004 = vpack.c.b16 %v2881, %v2880
        %v3005 = vpack.c.b16 %v2883, %v2882
        %v3006 = vpack.c.b16 %v2885, %v2884
        %v3007 = vpack.c.b16 %v2887, %v2886
        %v3008 = vpack.c.b16 %v2889, %v2888
        %v3009 = vpack.c.b16 %v2891, %v2890
        %v3010 = vpack.c.b16 %v2893, %v2892
        %v3011 = vpack.c.b16 %v2895, %v2894
        %v3012 = vpack.c.b16 %v2897, %v2896
        %v3013 = vpack.c.b16 %v2899, %v2898
        %v3014 = vpack.c.b16 %v2901, %v2900
        %v3015 = vpack.c.b16 %v2903, %v2902
        %v3016 = vpack.c.b16 %v2905, %v2904
        %v3017 = vpack.c.b16 %v2907, %v2906
        %v3018 = vpack.c.b16 %v2909, %v2908
        %v3019 = vpack.c.b16 %v2911, %v2910
        %v3020 = vpack.c.b16 %v2913, %v2912
        %v3021 = vpack.c.b16 %v2915, %v2914
        %v3022 = vpack.c.b16 %v2917, %v2916
        %v3023 = vpack.c.b16 %v2919, %v2918
        %v3024 = vpack.c.b16 %v2921, %v2920
        %v3025 = vpack.c.b16 %v2923, %v2922
        %v3026 = vpack.c.b16 %v2925, %v2924
        %v3027 = vpack.c.b16 %v2927, %v2926
        %v3028 = vpack.c.b16 %v2929, %v2928
        %v3029 = vpack.c.b16 %v2931, %v2930
        %v3030 = vpack.c.b16 %v2933, %v2932
        %v3031 = vpack.c.b16 %v2935, %v2934
        %v3032 = vpack.c.b16 %v2937, %v2936
        %v3033 = vpack.c.b16 %v2939, %v2938
        %v3034 = vpack.c.b16 %v2941, %v2940
        %v3035 = vpack.c.b16 %v2943, %v2942
        %v3036 = vpack.c.b16 %v2945, %v2944
        %v3037 = vpack.c.b16 %v2947, %v2946
        %v3038 = vpack.c.b16 %v2949, %v2948
        %v3039 = vpack.c.b16 %v2951, %v2950
        %v3040 = vpack.c.b16 %v2953, %v2952
        %v3041 = vpack.c.b16 %v2955, %v2954
        %v3042 = vpack.c.b16 %v2957, %v2956
        %v3043 = vpack.c.b16 %v2959, %v2958
        %v3044 = vpack.c.b16 %v2961, %v2960
        %v3045 = vpack.c.b16 %v2963, %v2962
        %v3046 = vpack.c.b16 %v2965, %v2964
        %v3047 = vpack.c.b16 %v2967, %v2966
        %v3048 = vpack.c.b16 %v2969, %v2968
        %v3049 = vpack.c.b16 %v2971, %v2970
        %v3050 = vpack.c.b16 %v2973, %v2972
        %v3051 = vpack.c.b16 %v2975, %v2974
        %v3052 = vpack.c.b16 %v2977, %v2976
        %v3053 = vpack.c.b16 %v2979, %v2978
        %v3054 = vpack.c.b16 %v2981, %v2980
        %v3055 = vpack.c.b16 %v2983, %v2982
        %3128 = vmatpush.bf16.msra.mxu0 %v2991
        %3129 = vmatpush.bf16.msra.mxu0 %v2990
        %3130 = vmatpush.bf16.msra.mxu0 %v2989
        %3131 = vmatpush.bf16.msra.mxu0 %v2988
        %3132 = vmatpush.bf16.msra.mxu0 %v2987
        %3133 = vmatpush.bf16.msra.mxu0 %v2986
        %3134 = vmatpush.bf16.msra.mxu0 %v2985
        %3135 = vmatpush.bf16.msra.mxu0 %v2984
        %3136 = vmatmul.bf16.gmra.mxu0 %v2223
        %v3137 = vpop.f32.mrf.mxu0
        %v3138 = vadd.f32 %v2694, %v3137
        %v3139 = vpop.f32.mrf.mxu0
        %v3140 = vadd.f32 %v2694, %v3139
        %3141 = vmatmul.bf16.gmra.mxu0 %v2224
        %v3142 = vpop.f32.mrf.mxu0
        %v3143 = vadd.f32 %v2694, %v3142
        %v3144 = vpop.f32.mrf.mxu0
        %v3145 = vadd.f32 %v2694, %v3144
        %3146 = vmatmul.bf16.gmra.mxu0 %v2225
        %v3147 = vpop.f32.mrf.mxu0
        %v3148 = vadd.f32 %v2694, %v3147
        %v3149 = vpop.f32.mrf.mxu0
        %v3150 = vadd.f32 %v2694, %v3149
        %3151 = vmatmul.bf16.gmra.mxu0 %v2226
        %v3152 = vpop.f32.mrf.mxu0
        %v3153 = vadd.f32 %v2694, %v3152
        %v3154 = vpop.f32.mrf.mxu0
        %v3155 = vadd.f32 %v2694, %v3154
        %3156 = vmatmul.bf16.gmra.mxu0 %v2227
        %v3157 = vpop.f32.mrf.mxu0
        %v3158 = vadd.f32 %v2694, %v3157
        %v3159 = vpop.f32.mrf.mxu0
        %v3160 = vadd.f32 %v2694, %v3159
        %3161 = vmatmul.bf16.gmra.mxu0 %v2228
        %v3162 = vpop.f32.mrf.mxu0
        %v3163 = vadd.f32 %v2694, %v3162
        %v3164 = vpop.f32.mrf.mxu0
        %v3165 = vadd.f32 %v2694, %v3164
        %3166 = vdwg.mxu0
        %3167 = vmatpush.bf16.msra.mxu0 %v2999
        %3168 = vmatpush.bf16.msra.mxu0 %v2998
        %3169 = vmatpush.bf16.msra.mxu0 %v2997
        %3170 = vmatpush.bf16.msra.mxu0 %v2996
        %3171 = vmatpush.bf16.msra.mxu0 %v2995
        %3172 = vmatpush.bf16.msra.mxu0 %v2994
        %3173 = vmatpush.bf16.msra.mxu0 %v2993
        %3174 = vmatpush.bf16.msra.mxu0 %v2992
        %3175 = vmatmul.bf16.gmra.mxu0 %v2249
        %v3176 = vpop.f32.mrf.mxu0
        %v3177 = vadd.f32 %v3138, %v3176
        %v3178 = vpop.f32.mrf.mxu0
        %v3179 = vadd.f32 %v3140, %v3178
        %3180 = vmatmul.bf16.gmra.mxu0 %v2257
        %v3181 = vpop.f32.mrf.mxu0
        %v3182 = vadd.f32 %v3143, %v3181
        %v3183 = vpop.f32.mrf.mxu0
        %v3184 = vadd.f32 %v3145, %v3183
        %3185 = vmatmul.bf16.gmra.mxu0 %v2265
        %v3186 = vpop.f32.mrf.mxu0
        %v3187 = vadd.f32 %v3148, %v3186
        %v3188 = vpop.f32.mrf.mxu0
        %v3189 = vadd.f32 %v3150, %v3188
        %3190 = vmatmul.bf16.gmra.mxu0 %v2273
        %v3191 = vpop.f32.mrf.mxu0
        %v3192 = vadd.f32 %v3153, %v3191
        %v3193 = vpop.f32.mrf.mxu0
        %v3194 = vadd.f32 %v3155, %v3193
        %3195 = vmatmul.bf16.gmra.mxu0 %v2281
        %v3196 = vpop.f32.mrf.mxu0
        %v3197 = vadd.f32 %v3158, %v3196
        %v3198 = vpop.f32.mrf.mxu0
        %v3199 = vadd.f32 %v3160, %v3198
        %3200 = vmatmul.bf16.gmra.mxu0 %v2289
        %v3201 = vpop.f32.mrf.mxu0
        %v3202 = vadd.f32 %v3163, %v3201
        %v3203 = vpop.f32.mrf.mxu0
        %v3204 = vadd.f32 %v3165, %v3203
        %3205 = vdwg.mxu0
        %3206 = vmatpush.bf16.msra.mxu0 %v3007
        %3207 = vmatpush.bf16.msra.mxu0 %v3006
        %3208 = vmatpush.bf16.msra.mxu0 %v3005
        %3209 = vmatpush.bf16.msra.mxu0 %v3004
        %3210 = vmatpush.bf16.msra.mxu0 %v3003
        %3211 = vmatpush.bf16.msra.mxu0 %v3002
        %3212 = vmatpush.bf16.msra.mxu0 %v3001
        %3213 = vmatpush.bf16.msra.mxu0 %v3000
        %3214 = vmatmul.bf16.gmra.mxu0 %v2301
        %v3215 = vpop.f32.mrf.mxu0
        %v3216 = vadd.f32 %v3177, %v3215
        %v3217 = vpop.f32.mrf.mxu0
        %v3218 = vadd.f32 %v3179, %v3217
        %3219 = vmatmul.bf16.gmra.mxu0 %v2303
        %v3220 = vpop.f32.mrf.mxu0
        %v3221 = vadd.f32 %v3182, %v3220
        %v3222 = vpop.f32.mrf.mxu0
        %v3223 = vadd.f32 %v3184, %v3222
        %3224 = vmatmul.bf16.gmra.mxu0 %v2305
        %v3225 = vpop.f32.mrf.mxu0
        %v3226 = vadd.f32 %v3187, %v3225
        %v3227 = vpop.f32.mrf.mxu0
        %v3228 = vadd.f32 %v3189, %v3227
        %3229 = vmatmul.bf16.gmra.mxu0 %v2307
        %v3230 = vpop.f32.mrf.mxu0
        %v3231 = vadd.f32 %v3192, %v3230
        %v3232 = vpop.f32.mrf.mxu0
        %v3233 = vadd.f32 %v3194, %v3232
        %3234 = vmatmul.bf16.gmra.mxu0 %v2309
        %v3235 = vpop.f32.mrf.mxu0
        %v3236 = vadd.f32 %v3197, %v3235
        %v3237 = vpop.f32.mrf.mxu0
        %v3238 = vadd.f32 %v3199, %v3237
        %3239 = vmatmul.bf16.gmra.mxu0 %v2311
        %v3240 = vpop.f32.mrf.mxu0
        %v3241 = vadd.f32 %v3202, %v3240
        %v3242 = vpop.f32.mrf.mxu0
        %v3243 = vadd.f32 %v3204, %v3242
        %3244 = vdwg.mxu0
        %3245 = vmatpush.bf16.msra.mxu0 %v3015
        %3246 = vmatpush.bf16.msra.mxu0 %v3014
        %3247 = vmatpush.bf16.msra.mxu0 %v3013
        %3248 = vmatpush.bf16.msra.mxu0 %v3012
        %3249 = vmatpush.bf16.msra.mxu0 %v3011
        %3250 = vmatpush.bf16.msra.mxu0 %v3010
        %3251 = vmatpush.bf16.msra.mxu0 %v3009
        %3252 = vmatpush.bf16.msra.mxu0 %v3008
        %3253 = vmatmul.bf16.gmra.mxu0 %v2326
        %v3254 = vpop.f32.mrf.mxu0
        %v3255 = vadd.f32 %v3216, %v3254
        %v3256 = vpop.f32.mrf.mxu0
        %v3257 = vadd.f32 %v3218, %v3256
        %3258 = vmatmul.bf16.gmra.mxu0 %v2328
        %v3259 = vpop.f32.mrf.mxu0
        %v3260 = vadd.f32 %v3221, %v3259
        %v3261 = vpop.f32.mrf.mxu0
        %v3262 = vadd.f32 %v3223, %v3261
        %3263 = vmatmul.bf16.gmra.mxu0 %v2330
        %v3264 = vpop.f32.mrf.mxu0
        %v3265 = vadd.f32 %v3226, %v3264
        %v3266 = vpop.f32.mrf.mxu0
        %v3267 = vadd.f32 %v3228, %v3266
        %3268 = vmatmul.bf16.gmra.mxu0 %v2332
        %v3269 = vpop.f32.mrf.mxu0
        %v3270 = vadd.f32 %v3231, %v3269
        %v3271 = vpop.f32.mrf.mxu0
        %v3272 = vadd.f32 %v3233, %v3271
        %3273 = vmatmul.bf16.gmra.mxu0 %v2334
        %v3274 = vpop.f32.mrf.mxu0
        %v3275 = vadd.f32 %v3236, %v3274
        %v3276 = vpop.f32.mrf.mxu0
        %v3277 = vadd.f32 %v3238, %v3276
        %3278 = vmatmul.bf16.gmra.mxu0 %v2336
        %v3279 = vpop.f32.mrf.mxu0
        %v3280 = vadd.f32 %v3241, %v3279
        %v3281 = vpop.f32.mrf.mxu0
        %v3282 = vadd.f32 %v3243, %v3281
        %3283 = vdwg.mxu0
        %3284 = vmatpush.bf16.msra.mxu0 %v3023
        %3285 = vmatpush.bf16.msra.mxu0 %v3022
        %3286 = vmatpush.bf16.msra.mxu0 %v3021
        %3287 = vmatpush.bf16.msra.mxu0 %v3020
        %3288 = vmatpush.bf16.msra.mxu0 %v3019
        %3289 = vmatpush.bf16.msra.mxu0 %v3018
        %3290 = vmatpush.bf16.msra.mxu0 %v3017
        %3291 = vmatpush.bf16.msra.mxu0 %v3016
        %3292 = vmatmul.bf16.gmra.mxu0 %v2357
        %v3293 = vpop.f32.mrf.mxu0
        %v3294 = vadd.f32 %v3255, %v3293
        %v3295 = vpop.f32.mrf.mxu0
        %v3296 = vadd.f32 %v3257, %v3295
        %3297 = vmatmul.bf16.gmra.mxu0 %v2361
        %v3298 = vpop.f32.mrf.mxu0
        %v3299 = vadd.f32 %v3260, %v3298
        %v3300 = vpop.f32.mrf.mxu0
        %v3301 = vadd.f32 %v3262, %v3300
        %3302 = vmatmul.bf16.gmra.mxu0 %v2365
        %v3303 = vpop.f32.mrf.mxu0
        %v3304 = vadd.f32 %v3265, %v3303
        %v3305 = vpop.f32.mrf.mxu0
        %v3306 = vadd.f32 %v3267, %v3305
        %3307 = vmatmul.bf16.gmra.mxu0 %v2369
        %v3308 = vpop.f32.mrf.mxu0
        %v3309 = vadd.f32 %v3270, %v3308
        %v3310 = vpop.f32.mrf.mxu0
        %v3311 = vadd.f32 %v3272, %v3310
        %3312 = vmatmul.bf16.gmra.mxu0 %v2373
        %v3313 = vpop.f32.mrf.mxu0
        %v3314 = vadd.f32 %v3275, %v3313
        %v3315 = vpop.f32.mrf.mxu0
        %v3316 = vadd.f32 %v3277, %v3315
        %3317 = vmatmul.bf16.gmra.mxu0 %v2382
        %v3318 = vpop.f32.mrf.mxu0
        %v3319 = vadd.f32 %v3280, %v3318
        %v3320 = vpop.f32.mrf.mxu0
        %v3321 = vadd.f32 %v3282, %v3320
        %3322 = vdwg.mxu0
        %3323 = vmatpush.bf16.msra.mxu0 %v3031
        %3324 = vmatpush.bf16.msra.mxu0 %v3030
        %3325 = vmatpush.bf16.msra.mxu0 %v3029
        %3326 = vmatpush.bf16.msra.mxu0 %v3028
        %3327 = vmatpush.bf16.msra.mxu0 %v3027
        %3328 = vmatpush.bf16.msra.mxu0 %v3026
        %3329 = vmatpush.bf16.msra.mxu0 %v3025
        %3330 = vmatpush.bf16.msra.mxu0 %v3024
        %3331 = vmatmul.bf16.gmra.mxu0 %v2389
        %v3332 = vpop.f32.mrf.mxu0
        %v3333 = vadd.f32 %v3294, %v3332
        %v3334 = vpop.f32.mrf.mxu0
        %v3335 = vadd.f32 %v3296, %v3334
        %3336 = vmatmul.bf16.gmra.mxu0 %v2390
        %v3337 = vpop.f32.mrf.mxu0
        %v3338 = vadd.f32 %v3299, %v3337
        %v3339 = vpop.f32.mrf.mxu0
        %v3340 = vadd.f32 %v3301, %v3339
        %3341 = vmatmul.bf16.gmra.mxu0 %v2391
        %v3342 = vpop.f32.mrf.mxu0
        %v3343 = vadd.f32 %v3304, %v3342
        %v3344 = vpop.f32.mrf.mxu0
        %v3345 = vadd.f32 %v3306, %v3344
        %3346 = vmatmul.bf16.gmra.mxu0 %v2392
        %v3347 = vpop.f32.mrf.mxu0
        %v3348 = vadd.f32 %v3309, %v3347
        %v3349 = vpop.f32.mrf.mxu0
        %v3350 = vadd.f32 %v3311, %v3349
        %3351 = vmatmul.bf16.gmra.mxu0 %v2393
        %v3352 = vpop.f32.mrf.mxu0
        %v3353 = vadd.f32 %v3314, %v3352
        %v3354 = vpop.f32.mrf.mxu0
        %v3355 = vadd.f32 %v3316, %v3354
        %3356 = vmatmul.bf16.gmra.mxu0 %v2394
        %v3357 = vpop.f32.mrf.mxu0
        %v3358 = vadd.f32 %v3319, %v3357
        %v3359 = vpop.f32.mrf.mxu0
        %v3360 = vadd.f32 %v3321, %v3359
        %3361 = vdwg.mxu0
        %3362 = vmatpush.bf16.msra.mxu0 %v3039
        %3363 = vmatpush.bf16.msra.mxu0 %v3038
        %3364 = vmatpush.bf16.msra.mxu0 %v3037
        %3365 = vmatpush.bf16.msra.mxu0 %v3036
        %3366 = vmatpush.bf16.msra.mxu0 %v3035
        %3367 = vmatpush.bf16.msra.mxu0 %v3034
        %3368 = vmatpush.bf16.msra.mxu0 %v3033
        %3369 = vmatpush.bf16.msra.mxu0 %v3032
        %3370 = vmatmul.bf16.gmra.mxu0 %v2436
        %v3371 = vpop.f32.mrf.mxu0
        %v3372 = vadd.f32 %v3333, %v3371
        %v3373 = vpop.f32.mrf.mxu0
        %v3374 = vadd.f32 %v3335, %v3373
        %3375 = vmatmul.bf16.gmra.mxu0 %v2438
        %v3376 = vpop.f32.mrf.mxu0
        %v3377 = vadd.f32 %v3338, %v3376
        %v3378 = vpop.f32.mrf.mxu0
        %v3379 = vadd.f32 %v3340, %v3378
        %3380 = vmatmul.bf16.gmra.mxu0 %v2440
        %v3381 = vpop.f32.mrf.mxu0
        %v3382 = vadd.f32 %v3343, %v3381
        %v3383 = vpop.f32.mrf.mxu0
        %v3384 = vadd.f32 %v3345, %v3383
        %3385 = vmatmul.bf16.gmra.mxu0 %v2442
        %v3386 = vpop.f32.mrf.mxu0
        %v3387 = vadd.f32 %v3348, %v3386
        %v3388 = vpop.f32.mrf.mxu0
        %v3389 = vadd.f32 %v3350, %v3388
        %3390 = vmatmul.bf16.gmra.mxu0 %v2444
        %v3391 = vpop.f32.mrf.mxu0
        %v3392 = vadd.f32 %v3353, %v3391
        %v3393 = vpop.f32.mrf.mxu0
        %v3394 = vadd.f32 %v3355, %v3393
        %3395 = vmatmul.bf16.gmra.mxu0 %v2446
        %v3396 = vpop.f32.mrf.mxu0
        %v3397 = vadd.f32 %v3358, %v3396
        %v3398 = vpop.f32.mrf.mxu0
        %v3399 = vadd.f32 %v3360, %v3398
        %3400 = vdwg.mxu0
        %3401 = vmatpush.bf16.msra.mxu0 %v3047
        %3402 = vmatpush.bf16.msra.mxu0 %v3046
        %3403 = vmatpush.bf16.msra.mxu0 %v3045
        %3404 = vmatpush.bf16.msra.mxu0 %v3044
        %3405 = vmatpush.bf16.msra.mxu0 %v3043
        %3406 = vmatpush.bf16.msra.mxu0 %v3042
        %3407 = vmatpush.bf16.msra.mxu0 %v3041
        %3408 = vmatpush.bf16.msra.mxu0 %v3040
        %3409 = vmatmul.bf16.gmra.mxu0 %v2472
        %v3410 = vpop.f32.mrf.mxu0
        %v3411 = vadd.f32 %v3372, %v3410
        %v3412 = vpop.f32.mrf.mxu0
        %v3413 = vadd.f32 %v3374, %v3412
        %3414 = vmatmul.bf16.gmra.mxu0 %v2481
        %v3415 = vpop.f32.mrf.mxu0
        %v3416 = vadd.f32 %v3377, %v3415
        %v3417 = vpop.f32.mrf.mxu0
        %v3418 = vadd.f32 %v3379, %v3417
        %3419 = vmatmul.bf16.gmra.mxu0 %v2490
        %v3420 = vpop.f32.mrf.mxu0
        %v3421 = vadd.f32 %v3382, %v3420
        %v3422 = vpop.f32.mrf.mxu0
        %v3423 = vadd.f32 %v3384, %v3422
        %3424 = vmatmul.bf16.gmra.mxu0 %v2499
        %v3425 = vpop.f32.mrf.mxu0
        %v3426 = vadd.f32 %v3387, %v3425
        %v3427 = vpop.f32.mrf.mxu0
        %v3428 = vadd.f32 %v3389, %v3427
        %3429 = vmatmul.bf16.gmra.mxu0 %v2508
        %v3430 = vpop.f32.mrf.mxu0
        %v3431 = vadd.f32 %v3392, %v3430
        %v3432 = vpop.f32.mrf.mxu0
        %v3433 = vadd.f32 %v3394, %v3432
        %3434 = vmatmul.bf16.gmra.mxu0 %v2517
        %v3435 = vpop.f32.mrf.mxu0
        %v3436 = vadd.f32 %v3397, %v3435
        %v3437 = vpop.f32.mrf.mxu0
        %v3438 = vadd.f32 %v3399, %v3437
        %3439 = vdwg.mxu0
        %3440 = vmatpush.bf16.msra.mxu0 %v3055
        %3441 = vmatpush.bf16.msra.mxu0 %v3054
        %3442 = vmatpush.bf16.msra.mxu0 %v3053
        %3443 = vmatpush.bf16.msra.mxu0 %v3052
        %3444 = vmatpush.bf16.msra.mxu0 %v3051
        %3445 = vmatpush.bf16.msra.mxu0 %v3050
        %3446 = vmatpush.bf16.msra.mxu0 %v3049
        %3447 = vmatpush.bf16.msra.mxu0 %v3048
        %3448 = vmatmul.bf16.gmra.mxu0 %v2529
        %v3449 = vpop.f32.mrf.mxu0
        %v3450 = vadd.f32 %v3411, %v3449
        %v3451 = vpop.f32.mrf.mxu0
        %v3452 = vadd.f32 %v3413, %v3451
        %3453 = vmatmul.bf16.gmra.mxu0 %v2531
        %v3454 = vpop.f32.mrf.mxu0
        %v3455 = vadd.f32 %v3416, %v3454
        %v3456 = vpop.f32.mrf.mxu0
        %v3457 = vadd.f32 %v3418, %v3456
        %3458 = vmatmul.bf16.gmra.mxu0 %v2533
        %v3459 = vpop.f32.mrf.mxu0
        %v3460 = vadd.f32 %v3421, %v3459
        %v3461 = vpop.f32.mrf.mxu0
        %v3462 = vadd.f32 %v3423, %v3461
        %3463 = vmatmul.bf16.gmra.mxu0 %v2535
        %v3464 = vpop.f32.mrf.mxu0
        %v3465 = vadd.f32 %v3426, %v3464
        %v3466 = vpop.f32.mrf.mxu0
        %v3467 = vadd.f32 %v3428, %v3466
        %3468 = vmatmul.bf16.gmra.mxu0 %v2537
        %v3469 = vpop.f32.mrf.mxu0
        %v3470 = vadd.f32 %v3431, %v3469
        %v3471 = vpop.f32.mrf.mxu0
        %v3472 = vadd.f32 %v3433, %v3471
        %3473 = vmatmul.bf16.gmra.mxu0 %v2539
        %v3474 = vpop.f32.mrf.mxu0
        %v3475 = vadd.f32 %v3436, %v3474
        %v3476 = vpop.f32.mrf.mxu0
        %v3477 = vadd.f32 %v3438, %v3476
        %3478 = vdwg.mxu0
        %v3479 = vsel %vm1980, %v3450, 0.0
        %v3480 = vsel %vm1981, %v3452, 0.0
        %v3481 = vsel %vm1982, %v3455, 0.0
        %v3482 = vsel %vm1983, %v3457, 0.0
        %v3483 = vsel %vm1984, %v3460, 0.0
        %v3484 = vsel %vm1985, %v3462, 0.0
        %v3485 = vsel %vm1986, %v3465, 0.0
        %v3486 = vsel %vm1987, %v3467, 0.0
        %v3487 = vsel %vm1988, %v3470, 0.0
        %v3488 = vsel %vm1989, %v3472, 0.0
        %v3489 = vsel %vm1990, %v3475, 0.0
        %v3490 = vsel %vm1991, %v3477, 0.0
        %v3491 = vpack.c.bf16 %v3479, %v3479
        %v3492 = vpack.c.bf16 %v3480, %v3480
        %v3493 = vpack.c.bf16 %v3481, %v3481
        %v3494 = vpack.c.bf16 %v3482, %v3482
        %v3495 = vpack.c.bf16 %v3483, %v3483
        %v3496 = vpack.c.bf16 %v3484, %v3484
        %v3497 = vpack.c.bf16 %v3485, %v3485
        %v3498 = vpack.c.bf16 %v3486, %v3486
        %v3499 = vpack.c.bf16 %v3487, %v3487
        %v3500 = vpack.c.bf16 %v3488, %v3488
        %v3501 = vpack.c.bf16 %v3489, %v3489
        %v3502 = vpack.c.bf16 %v3490, %v3490
        %v3504 = vshll.u32 %v3491, 16
        %v3506 = vrot.slane %v3504, 5
        %v3507 = vshrl.u32 %v3491, 16
        %v3509 = vrot.slane %v3507, 4
        %v3510 = vor.u32 %v3509, %v3506
        %v3511 = vrot.slane %v3510, 4
        %v3513 = vshll.u32 %v3492, 16
        %v3515 = vrot.slane %v3513, 5
        %v3516 = vsel %vm2017, %v3511, %v3515
        %v3517 = vshrl.u32 %v3492, 16
        %v3519 = vrot.slane %v3517, 4
        %v3520 = vor.u32 %v3519, %v3515
        %v3521 = vrot.slane %v3520, 4
        %v3523 = vshll.u32 %v3493, 16
        %v3525 = vrot.slane %v3523, 5
        %v3526 = vsel %vm2017, %v3521, %v3525
        %v3527 = vshrl.u32 %v3493, 16
        %v3529 = vrot.slane %v3527, 4
        %v3530 = vor.u32 %v3529, %v3525
        %v3531 = vrot.slane %v3530, 4
        %v3533 = vshll.u32 %v3494, 16
        %v3535 = vrot.slane %v3533, 5
        %v3536 = vsel %vm2017, %v3531, %v3535
        %v3537 = vshrl.u32 %v3494, 16
        %v3539 = vrot.slane %v3537, 4
        %v3540 = vor.u32 %v3539, %v3535
        %v3541 = vrot.slane %v3540, 4
        %v3543 = vshll.u32 %v3495, 16
        %v3545 = vrot.slane %v3543, 5
        %v3546 = vsel %vm2017, %v3541, %v3545
        %v3547 = vshrl.u32 %v3495, 16
        %v3549 = vrot.slane %v3547, 4
        %v3550 = vor.u32 %v3549, %v3545
        %v3551 = vrot.slane %v3550, 4
        %v3553 = vshll.u32 %v3496, 16
        %v3555 = vrot.slane %v3553, 5
        %v3556 = vsel %vm2017, %v3551, %v3555
        %v3557 = vshrl.u32 %v3496, 16
        %v3559 = vrot.slane %v3557, 4
        %v3560 = vor.u32 %v3559, %v3555
        %v3561 = vrot.slane %v3560, 4
        %v3563 = vshll.u32 %v3497, 16
        %v3565 = vrot.slane %v3563, 5
        %v3566 = vsel %vm2017, %v3561, %v3565
        %v3567 = vshrl.u32 %v3497, 16
        %v3569 = vrot.slane %v3567, 4
        %v3570 = vor.u32 %v3569, %v3565
        %v3571 = vrot.slane %v3570, 4
        %v3573 = vshll.u32 %v3498, 16
        %v3575 = vrot.slane %v3573, 5
        %v3576 = vsel %vm2017, %v3571, %v3575
        %v3577 = vshrl.u32 %v3498, 16
        %v3579 = vrot.slane %v3577, 4
        %v3580 = vor.u32 %v3579, %v3575
        %v3581 = vrot.slane %v3580, 4
        %v3583 = vshll.u32 %v3499, 16
        %v3585 = vrot.slane %v3583, 5
        %v3586 = vsel %vm2017, %v3581, %v3585
        %v3587 = vshrl.u32 %v3499, 16
        %v3589 = vrot.slane %v3587, 4
        %v3590 = vor.u32 %v3589, %v3585
        %v3591 = vrot.slane %v3590, 4
        %v3593 = vshll.u32 %v3500, 16
        %v3595 = vrot.slane %v3593, 5
        %v3596 = vsel %vm2017, %v3591, %v3595
        %v3597 = vshrl.u32 %v3500, 16
        %v3599 = vrot.slane %v3597, 4
        %v3600 = vor.u32 %v3599, %v3595
        %v3601 = vrot.slane %v3600, 4
        %v3603 = vshll.u32 %v3501, 16
        %v3605 = vrot.slane %v3603, 5
        %v3606 = vsel %vm2017, %v3601, %v3605
        %v3607 = vshrl.u32 %v3501, 16
        %v3609 = vrot.slane %v3607, 4
        %v3610 = vor.u32 %v3609, %v3605
        %v3611 = vrot.slane %v3610, 4
        %v3613 = vshll.u32 %v3502, 16
        %v3615 = vrot.slane %v3613, 5
        %v3616 = vsel %vm2017, %v3611, %v3615
        %v3617 = vshrl.u32 %v3502, 16
        %v3619 = vrot.slane %v3617, 4
        %v3620 = vor.u32 %v3619, %v3615
        %v3621 = vrot.slane %v3620, 4
        %v3635 = vsel %vm647, %v3506, %v2181
        %3636 = vst [vmem:[#allocation2] sm:$0x8] %v3635
        %3637 = vst [vmem:[#allocation2 + $0x4] sm:$0xf] %v3516
        %3638 = vst [vmem:[#allocation2 + $0x8] sm:$0xf] %v3526
        %3639 = vst [vmem:[#allocation2 + $0xc] sm:$0xf] %v3536
        %3640 = vst [vmem:[#allocation2 + $0x10] sm:$0xf] %v3546
        %3641 = vst [vmem:[#allocation2 + $0x14] sm:$0xf] %v3556
        %3642 = vst [vmem:[#allocation2 + $0x18] sm:$0xf] %v3566
        %3643 = vst [vmem:[#allocation2 + $0x1c] sm:$0xf] %v3576
        %3644 = vst [vmem:[#allocation2 + $0x20] sm:$0xf] %v3586
        %3645 = vst [vmem:[#allocation2 + $0x24] sm:$0xf] %v3596
        %3646 = vst [vmem:[#allocation2 + $0x28] sm:$0xf] %v3606
        %3647 = vst [vmem:[#allocation2 + $0x2c] sm:$0xf] %v3616
        %v3648 = vld [vmem:[#allocation2 + $0x30] sm:$0xf]
        %v3649 = vsel %vm641, %v3621, %v3648
        %3650 = vst [vmem:[#allocation2 + $0x30] sm:$0xf] %v3649
        %v3651 = vld [vmem:[#allocation2] sm:$0xf]
        %v3652 = vld [vmem:[#allocation2 + $0x4] sm:$0xf]
        %v3653 = vld [vmem:[#allocation2 + $0x8] sm:$0xf]
        %v3654 = vld [vmem:[#allocation2 + $0xc] sm:$0xf]
        %v3655 = vld [vmem:[#allocation2 + $0x10] sm:$0xf]
        %v3656 = vld [vmem:[#allocation2 + $0x14] sm:$0xf]
        %v3657 = vld [vmem:[#allocation2 + $0x18] sm:$0xf]
        %v3658 = vld [vmem:[#allocation2 + $0x1c] sm:$0xf]
        %v3659 = vld [vmem:[#allocation2 + $0x20] sm:$0xf]
        %v3660 = vld [vmem:[#allocation2 + $0x24] sm:$0xf]
        %v3661 = vld [vmem:[#allocation2 + $0x28] sm:$0xf]
        %v3662 = vld [vmem:[#allocation2 + $0x2c] sm:$0xf]
        %v3663 = vld [vmem:[#allocation2 + $0x30] sm:$0x1]
        %v3664 = vld [vmem:[#allocation2] sm:$0xe]
        %v3665 = vld [vmem:[#allocation2] sm:$0x8]
        %v3666 = vld [vmem:[#allocation2 + $0x30] sm:$0x7]
        %v3667 = vld [vmem:[#allocation2 + $0x30] sm:$0xf]
        %v3668 = vld [vmem:[#allocation2 + $0x4] sm:$0xc]
        %v3669 = vld [vmem:[#allocation2 + $0x8] sm:$0xf]
        %v3670 = vld [vmem:[#allocation2 + $0xc] sm:$0xf]
        %v3671 = vld [vmem:[#allocation2 + $0x10] sm:$0xf]
        %v3672 = vld [vmem:[#allocation2 + $0x14] sm:$0xf]
        %v3673 = vld [vmem:[#allocation2 + $0x18] sm:$0xf]
        %v3674 = vld [vmem:[#allocation2 + $0x1c] sm:$0xf]
        %v3675 = vld [vmem:[#allocation2 + $0x20] sm:$0xf]
        %v3676 = vld [vmem:[#allocation2 + $0x24] sm:$0xf]
        %v3677 = vld [vmem:[#allocation2 + $0x28] sm:$0xf]
        %v3678 = vld [vmem:[#allocation2 + $0x2c] sm:$0xf]
        %v3679 = vld [vmem:[#allocation2 + $0x30] sm:$0xf]
        %v3680 = vld [vmem:[#allocation2 + $0x34] sm:$0x3]
        %v3681 = vld [vmem:[#allocation2 + $0x34] sm:$0x7]
        %v3682 = vld [vmem:[#allocation2 + $0x4] sm:$0x8]
        %v3695 = vunpack.c.l.b16 %v3651
        %v3696 = vunpack.c.l.b16 %v3652
        %v3697 = vunpack.c.l.b16 %v3653
        %v3698 = vunpack.c.l.b16 %v3654
        %v3699 = vunpack.c.l.b16 %v3655
        %v3700 = vunpack.c.l.b16 %v3656
        %v3701 = vunpack.c.l.b16 %v3657
        %v3702 = vunpack.c.l.b16 %v3658
        %v3703 = vunpack.c.l.b16 %v3659
        %v3704 = vunpack.c.l.b16 %v3660
        %v3705 = vunpack.c.l.b16 %v3661
        %v3706 = vunpack.c.l.b16 %v3662
        %v3707 = vpack.c.b16 %v3696, %v3695
        %v3708 = vpack.c.b16 %v3698, %v3697
        %v3709 = vpack.c.b16 %v3700, %v3699
        %v3710 = vpack.c.b16 %v3702, %v3701
        %v3711 = vpack.c.b16 %v3704, %v3703
        %v3712 = vpack.c.b16 %v3706, %v3705
        %v3720 = vunpack.c.l.b16 %v3663
        %v3721 = vpack.c.b16 %v3720, %v3720
        %v3723 = vshrl.u32 %v3707, 16
        %v3725 = vshll.u32 %v3707, 16
        %v3727 = vrot.slane %v3725, 1
        %v3728 = vor.u32 %v3723, %v3727
        %v3730 = vshll.u32 %v3708, 16
        %v3732 = vrot.slane %v3730, 1
        %v3733 = vsel %vm723, %v3728, %v3732
        %v3734 = vshrl.u32 %v3708, 16
        %v3736 = vor.u32 %v3734, %v3732
        %v3738 = vshll.u32 %v3709, 16
        %v3740 = vrot.slane %v3738, 1
        %v3741 = vsel %vm723, %v3736, %v3740
        %v3742 = vshrl.u32 %v3709, 16
        %v3744 = vor.u32 %v3742, %v3740
        %v3746 = vshll.u32 %v3710, 16
        %v3748 = vrot.slane %v3746, 1
        %v3749 = vsel %vm723, %v3744, %v3748
        %v3750 = vshrl.u32 %v3710, 16
        %v3752 = vor.u32 %v3750, %v3748
        %v3754 = vshll.u32 %v3711, 16
        %v3756 = vrot.slane %v3754, 1
        %v3757 = vsel %vm723, %v3752, %v3756
        %v3758 = vshrl.u32 %v3711, 16
        %v3760 = vor.u32 %v3758, %v3756
        %v3762 = vshll.u32 %v3712, 16
        %v3764 = vrot.slane %v3762, 1
        %v3765 = vsel %vm723, %v3760, %v3764
        %v3766 = vshrl.u32 %v3712, 16
        %v3768 = vor.u32 %v3766, %v3764
        %v3770 = vshll.u32 %v3721, 16
        %v3772 = vrot.slane %v3770, 1
        %v3773 = vsel %vm723, %v3768, %v3772
        %v3781 = vunpack.c.l.b16 %v3664
        %v3782 = vpack.c.b16 %v3696, %v3781
        %v3783 = vrot.slane %v3782, 1
        %v3784 = vrot.slane %v3708, 1
        %v3785 = vsel %vm785, %v3783, %v3784
        %v3786 = vrot.slane %v3709, 1
        %v3787 = vsel %vm785, %v3784, %v3786
        %v3788 = vrot.slane %v3710, 1
        %v3789 = vsel %vm785, %v3786, %v3788
        %v3790 = vrot.slane %v3711, 1
        %v3791 = vsel %vm785, %v3788, %v3790
        %v3792 = vrot.slane %v3712, 1
        %v3793 = vsel %vm785, %v3790, %v3792
        %v3794 = vrot.slane %v3721, 1
        %v3795 = vsel %vm785, %v3792, %v3794
        %v3804 = vunpack.c.l.b16 %v3665
        %v3805 = vunpack.c.l.b16 %v3666
        %v3806 = vpack.c.b16 %v3696, %v3804
        %v3807 = vpack.c.b16 %v3805, %v3805
        %v3808 = vrot.slane %v3806, 3
        %v3809 = vrot.slane %v3708, 3
        %v3810 = vsel %vm811, %v3808, %v3809
        %v3811 = vrot.slane %v3709, 3
        %v3812 = vsel %vm811, %v3809, %v3811
        %v3813 = vrot.slane %v3710, 3
        %v3814 = vsel %vm811, %v3811, %v3813
        %v3815 = vrot.slane %v3711, 3
        %v3816 = vsel %vm811, %v3813, %v3815
        %v3817 = vrot.slane %v3712, 3
        %v3818 = vsel %vm811, %v3815, %v3817
        %v3819 = vrot.slane %v3807, 3
        %v3820 = vsel %vm811, %v3817, %v3819
        %v3828 = vunpack.c.l.b16 %v3667
        %v3829 = vpack.c.b16 %v3828, %v3828
        %v3831 = vshrl.u32 %v3806, 16
        %v3833 = vrot.slane %v3831, 3
        %v3834 = vshll.u32 %v3806, 16
        %v3836 = vrot.slane %v3834, 4
        %v3837 = vor.u32 %v3833, %v3836
        %v3838 = vrot.slane %v3734, 3
        %v3839 = vrot.slane %v3730, 4
        %v3840 = vor.u32 %v3838, %v3839
        %v3841 = vsel %vm834, %v3837, %v3840
        %v3842 = vrot.slane %v3742, 3
        %v3843 = vrot.slane %v3738, 4
        %v3844 = vor.u32 %v3842, %v3843
        %v3845 = vsel %vm834, %v3840, %v3844
        %v3846 = vrot.slane %v3750, 3
        %v3847 = vrot.slane %v3746, 4
        %v3848 = vor.u32 %v3846, %v3847
        %v3849 = vsel %vm834, %v3844, %v3848
        %v3850 = vrot.slane %v3758, 3
        %v3851 = vrot.slane %v3754, 4
        %v3852 = vor.u32 %v3850, %v3851
        %v3853 = vsel %vm834, %v3848, %v3852
        %v3854 = vrot.slane %v3766, 3
        %v3855 = vrot.slane %v3762, 4
        %v3856 = vor.u32 %v3854, %v3855
        %v3857 = vsel %vm834, %v3852, %v3856
        %v3859 = vshrl.u32 %v3829, 16
        %v3861 = vrot.slane %v3859, 3
        %v3862 = vshll.u32 %v3829, 16
        %v3864 = vrot.slane %v3862, 4
        %v3865 = vor.u32 %v3861, %v3864
        %v3866 = vsel %vm834, %v3856, %v3865
        %v3873 = vpack.c.b16 %v3697, %v3696
        %v3874 = vpack.c.b16 %v3699, %v3698
        %v3875 = vpack.c.b16 %v3701, %v3700
        %v3876 = vpack.c.b16 %v3703, %v3702
        %v3877 = vpack.c.b16 %v3705, %v3704
        %v3878 = vpack.c.b16 %v3828, %v3706
        %v3898 = vunpack.c.l.b16 %v3668
        %v3899 = vunpack.c.l.b16 %v3669
        %v3900 = vunpack.c.l.b16 %v3670
        %v3901 = vunpack.c.l.b16 %v3671
        %v3902 = vunpack.c.l.b16 %v3672
        %v3903 = vunpack.c.l.b16 %v3673
        %v3904 = vunpack.c.l.b16 %v3674
        %v3905 = vunpack.c.l.b16 %v3675
        %v3906 = vunpack.c.l.b16 %v3676
        %v3907 = vunpack.c.l.b16 %v3677
        %v3908 = vunpack.c.l.b16 %v3678
        %v3909 = vunpack.c.l.b16 %v3679
        %v3910 = vunpack.c.l.b16 %v3680
        %v3911 = vpack.c.b16 %v3899, %v3898
        %v3912 = vpack.c.b16 %v3901, %v3900
        %v3913 = vpack.c.b16 %v3903, %v3902
        %v3914 = vpack.c.b16 %v3905, %v3904
        %v3915 = vpack.c.b16 %v3907, %v3906
        %v3916 = vpack.c.b16 %v3909, %v3908
        %v3917 = vpack.c.b16 %v3910, %v3910
        %v3918 = vrot.slane %v3911, 2
        %v3919 = vrot.slane %v3912, 2
        %v3920 = vsel %vm923, %v3918, %v3919
        %v3921 = vrot.slane %v3913, 2
        %v3922 = vsel %vm923, %v3919, %v3921
        %v3923 = vrot.slane %v3914, 2
        %v3924 = vsel %vm923, %v3921, %v3923
        %v3925 = vrot.slane %v3915, 2
        %v3926 = vsel %vm923, %v3923, %v3925
        %v3927 = vrot.slane %v3916, 2
        %v3928 = vsel %vm923, %v3925, %v3927
        %v3929 = vrot.slane %v3917, 2
        %v3930 = vsel %vm923, %v3927, %v3929
        %v3938 = vunpack.c.l.b16 %v3681
        %v3939 = vpack.c.b16 %v3938, %v3938
        %v3941 = vshrl.u32 %v3911, 16
        %v3943 = vrot.slane %v3941, 2
        %v3944 = vshll.u32 %v3911, 16
        %v3946 = vrot.slane %v3944, 3
        %v3947 = vor.u32 %v3943, %v3946
        %v3949 = vshrl.u32 %v3912, 16
        %v3951 = vrot.slane %v3949, 2
        %v3952 = vshll.u32 %v3912, 16
        %v3954 = vrot.slane %v3952, 3
        %v3955 = vor.u32 %v3951, %v3954
        %v3956 = vsel %vm946, %v3947, %v3955
        %v3958 = vshrl.u32 %v3913, 16
        %v3960 = vrot.slane %v3958, 2
        %v3961 = vshll.u32 %v3913, 16
        %v3963 = vrot.slane %v3961, 3
        %v3964 = vor.u32 %v3960, %v3963
        %v3965 = vsel %vm946, %v3955, %v3964
        %v3967 = vshrl.u32 %v3914, 16
        %v3969 = vrot.slane %v3967, 2
        %v3970 = vshll.u32 %v3914, 16
        %v3972 = vrot.slane %v3970, 3
        %v3973 = vor.u32 %v3969, %v3972
        %v3974 = vsel %vm946, %v3964, %v3973
        %v3976 = vshrl.u32 %v3915, 16
        %v3978 = vrot.slane %v3976, 2
        %v3979 = vshll.u32 %v3915, 16
        %v3981 = vrot.slane %v3979, 3
        %v3982 = vor.u32 %v3978, %v3981
        %v3983 = vsel %vm946, %v3973, %v3982
        %v3985 = vshrl.u32 %v3916, 16
        %v3987 = vrot.slane %v3985, 2
        %v3988 = vshll.u32 %v3916, 16
        %v3990 = vrot.slane %v3988, 3
        %v3991 = vor.u32 %v3987, %v3990
        %v3992 = vsel %vm946, %v3982, %v3991
        %v3994 = vshrl.u32 %v3939, 16
        %v3996 = vrot.slane %v3994, 2
        %v3997 = vshll.u32 %v3939, 16
        %v3999 = vrot.slane %v3997, 3
        %v4000 = vor.u32 %v3996, %v3999
        %v4001 = vsel %vm946, %v3991, %v4000
        %v4009 = vunpack.c.l.b16 %v3682
        %v4010 = vpack.c.b16 %v3899, %v4009
        %v4011 = vrot.slane %v4010, 3
        %v4012 = vrot.slane %v3912, 3
        %v4013 = vsel %vm811, %v4011, %v4012
        %v4014 = vrot.slane %v3913, 3
        %v4015 = vsel %vm811, %v4012, %v4014
        %v4016 = vrot.slane %v3914, 3
        %v4017 = vsel %vm811, %v4014, %v4016
        %v4018 = vrot.slane %v3915, 3
        %v4019 = vsel %vm811, %v4016, %v4018
        %v4020 = vrot.slane %v3916, 3
        %v4021 = vsel %vm811, %v4018, %v4020
        %v4022 = vrot.slane %v3939, 3
        %v4023 = vsel %vm811, %v4020, %v4022
        %s4030 = scalar_lea.vmem [#allocation3], 1152
        %v4031 = vld [vmem:[%s4030] sm:$0xf]
        %v4032 = vld [vmem:[%s4030 + $0x4] sm:$0xf]
        %v4033 = vld [vmem:[%s4030 + $0x8] sm:$0xf]
        %v4034 = vld [vmem:[%s4030 + $0xc] sm:$0xf]
        %v4035 = vld [vmem:[%s4030 + $0x10] sm:$0xf]
        %v4036 = vld [vmem:[%s4030 + $0x14] sm:$0xf]
        %v4037 = vld [vmem:[%s4030 + $0x18] sm:$0xf]
        %v4038 = vld [vmem:[%s4030 + $0x1c] sm:$0xf]
        %v4039 = vld [vmem:[%s4030 + $0x20] sm:$0xf]
        %v4040 = vld [vmem:[%s4030 + $0x24] sm:$0xf]
        %v4041 = vld [vmem:[%s4030 + $0x28] sm:$0xf]
        %v4042 = vld [vmem:[%s4030 + $0x2c] sm:$0xf]
        %v4043 = vld [vmem:[%s4030 + $0x30] sm:$0xf]
        %v4044 = vld [vmem:[%s4030 + $0x34] sm:$0xf]
        %v4045 = vld [vmem:[%s4030 + $0x38] sm:$0xf]
        %v4046 = vld [vmem:[%s4030 + $0x3c] sm:$0xf]
        %v4047 = vld [vmem:[%s4030 + $0x40] sm:$0xf]
        %v4048 = vld [vmem:[%s4030 + $0x44] sm:$0xf]
        %v4049 = vld [vmem:[%s4030 + $0x48] sm:$0xf]
        %v4050 = vld [vmem:[%s4030 + $0x4c] sm:$0xf]
        %v4051 = vld [vmem:[%s4030 + $0x50] sm:$0xf]
        %v4052 = vld [vmem:[%s4030 + $0x54] sm:$0xf]
        %v4053 = vld [vmem:[%s4030 + $0x58] sm:$0xf]
        %v4054 = vld [vmem:[%s4030 + $0x5c] sm:$0xf]
        %v4055 = vld [vmem:[%s4030 + $0x60] sm:$0xf]
        %v4056 = vld [vmem:[%s4030 + $0x64] sm:$0xf]
        %v4057 = vld [vmem:[%s4030 + $0x68] sm:$0xf]
        %v4058 = vld [vmem:[%s4030 + $0x6c] sm:$0xf]
        %v4059 = vld [vmem:[%s4030 + $0x70] sm:$0xf]
        %v4060 = vld [vmem:[%s4030 + $0x74] sm:$0xf]
        %v4061 = vld [vmem:[%s4030 + $0x78] sm:$0xf]
        %v4062 = vld [vmem:[%s4030 + $0x7c] sm:$0xf]
        %v4063 = vld [vmem:[%s4030 + $0x80] sm:$0xf]
        %v4064 = vld [vmem:[%s4030 + $0x84] sm:$0xf]
        %v4065 = vld [vmem:[%s4030 + $0x88] sm:$0xf]
        %v4066 = vld [vmem:[%s4030 + $0x8c] sm:$0xf]
        %v4067 = vld [vmem:[%s4030 + $0x90] sm:$0xf]
        %v4068 = vld [vmem:[%s4030 + $0x94] sm:$0xf]
        %v4069 = vld [vmem:[%s4030 + $0x98] sm:$0xf]
        %v4070 = vld [vmem:[%s4030 + $0x9c] sm:$0xf]
        %v4071 = vld [vmem:[%s4030 + $0xa0] sm:$0xf]
        %v4072 = vld [vmem:[%s4030 + $0xa4] sm:$0xf]
        %v4073 = vld [vmem:[%s4030 + $0xa8] sm:$0xf]
        %v4074 = vld [vmem:[%s4030 + $0xac] sm:$0xf]
        %v4075 = vld [vmem:[%s4030 + $0xb0] sm:$0xf]
        %v4076 = vld [vmem:[%s4030 + $0xb4] sm:$0xf]
        %v4077 = vld [vmem:[%s4030 + $0xb8] sm:$0xf]
        %v4078 = vld [vmem:[%s4030 + $0xbc] sm:$0xf]
        %v4079 = vld [vmem:[%s4030 + $0xc0] sm:$0xf]
        %v4080 = vld [vmem:[%s4030 + $0xc4] sm:$0xf]
        %v4081 = vld [vmem:[%s4030 + $0xc8] sm:$0xf]
        %v4082 = vld [vmem:[%s4030 + $0xcc] sm:$0xf]
        %v4083 = vld [vmem:[%s4030 + $0xd0] sm:$0xf]
        %v4084 = vld [vmem:[%s4030 + $0xd4] sm:$0xf]
        %v4085 = vld [vmem:[%s4030 + $0xd8] sm:$0xf]
        %v4086 = vld [vmem:[%s4030 + $0xdc] sm:$0xf]
        %v4087 = vld [vmem:[%s4030 + $0xe0] sm:$0xf]
        %v4088 = vld [vmem:[%s4030 + $0xe4] sm:$0xf]
        %v4089 = vld [vmem:[%s4030 + $0xe8] sm:$0xf]
        %v4090 = vld [vmem:[%s4030 + $0xec] sm:$0xf]
        %v4091 = vld [vmem:[%s4030 + $0xf0] sm:$0xf]
        %v4092 = vld [vmem:[%s4030 + $0xf4] sm:$0xf]
        %v4093 = vld [vmem:[%s4030 + $0xf8] sm:$0xf]
        %v4094 = vld [vmem:[%s4030 + $0xfc] sm:$0xf]
        %v4095 = vld [vmem:[%s4030 + $0x100] sm:$0xf]
        %v4096 = vld [vmem:[%s4030 + $0x104] sm:$0xf]
        %v4097 = vld [vmem:[%s4030 + $0x108] sm:$0xf]
        %v4098 = vld [vmem:[%s4030 + $0x10c] sm:$0xf]
        %v4099 = vld [vmem:[%s4030 + $0x110] sm:$0xf]
        %v4100 = vld [vmem:[%s4030 + $0x114] sm:$0xf]
        %v4101 = vld [vmem:[%s4030 + $0x118] sm:$0xf]
        %v4102 = vld [vmem:[%s4030 + $0x11c] sm:$0xf]
        %v4103 = vld [vmem:[%s4030 + $0x120] sm:$0xf]
        %v4104 = vld [vmem:[%s4030 + $0x124] sm:$0xf]
        %v4105 = vld [vmem:[%s4030 + $0x128] sm:$0xf]
        %v4106 = vld [vmem:[%s4030 + $0x12c] sm:$0xf]
        %v4107 = vld [vmem:[%s4030 + $0x130] sm:$0xf]
        %v4108 = vld [vmem:[%s4030 + $0x134] sm:$0xf]
        %v4109 = vld [vmem:[%s4030 + $0x138] sm:$0xf]
        %v4110 = vld [vmem:[%s4030 + $0x13c] sm:$0xf]
        %v4111 = vld [vmem:[%s4030 + $0x140] sm:$0xf]
        %v4112 = vld [vmem:[%s4030 + $0x144] sm:$0xf]
        %v4113 = vld [vmem:[%s4030 + $0x148] sm:$0xf]
        %v4114 = vld [vmem:[%s4030 + $0x14c] sm:$0xf]
        %v4115 = vld [vmem:[%s4030 + $0x150] sm:$0xf]
        %v4116 = vld [vmem:[%s4030 + $0x154] sm:$0xf]
        %v4117 = vld [vmem:[%s4030 + $0x158] sm:$0xf]
        %v4118 = vld [vmem:[%s4030 + $0x15c] sm:$0xf]
        %v4119 = vld [vmem:[%s4030 + $0x160] sm:$0xf]
        %v4120 = vld [vmem:[%s4030 + $0x164] sm:$0xf]
        %v4121 = vld [vmem:[%s4030 + $0x168] sm:$0xf]
        %v4122 = vld [vmem:[%s4030 + $0x16c] sm:$0xf]
        %v4123 = vld [vmem:[%s4030 + $0x170] sm:$0xf]
        %v4124 = vld [vmem:[%s4030 + $0x174] sm:$0xf]
        %v4125 = vld [vmem:[%s4030 + $0x178] sm:$0xf]
        %v4126 = vld [vmem:[%s4030 + $0x17c] sm:$0xf]
        %v4127 = vld [vmem:[%s4030 + $0x180] sm:$0xf]
        %v4128 = vld [vmem:[%s4030 + $0x184] sm:$0xf]
        %v4129 = vld [vmem:[%s4030 + $0x188] sm:$0xf]
        %v4130 = vld [vmem:[%s4030 + $0x18c] sm:$0xf]
        %v4131 = vld [vmem:[%s4030 + $0x190] sm:$0xf]
        %v4132 = vld [vmem:[%s4030 + $0x194] sm:$0xf]
        %v4133 = vld [vmem:[%s4030 + $0x198] sm:$0xf]
        %v4134 = vld [vmem:[%s4030 + $0x19c] sm:$0xf]
        %v4135 = vld [vmem:[%s4030 + $0x1a0] sm:$0xf]
        %v4136 = vld [vmem:[%s4030 + $0x1a4] sm:$0xf]
        %v4137 = vld [vmem:[%s4030 + $0x1a8] sm:$0xf]
        %v4138 = vld [vmem:[%s4030 + $0x1ac] sm:$0xf]
        %v4139 = vld [vmem:[%s4030 + $0x1b0] sm:$0xf]
        %v4140 = vld [vmem:[%s4030 + $0x1b4] sm:$0xf]
        %v4141 = vld [vmem:[%s4030 + $0x1b8] sm:$0xf]
        %v4142 = vld [vmem:[%s4030 + $0x1bc] sm:$0xf]
        %v4143 = vld [vmem:[%s4030 + $0x1c0] sm:$0xf]
        %v4144 = vld [vmem:[%s4030 + $0x1c4] sm:$0xf]
        %v4145 = vld [vmem:[%s4030 + $0x1c8] sm:$0xf]
        %v4146 = vld [vmem:[%s4030 + $0x1cc] sm:$0xf]
        %v4147 = vld [vmem:[%s4030 + $0x1d0] sm:$0xf]
        %v4148 = vld [vmem:[%s4030 + $0x1d4] sm:$0xf]
        %v4149 = vld [vmem:[%s4030 + $0x1d8] sm:$0xf]
        %v4150 = vld [vmem:[%s4030 + $0x1dc] sm:$0xf]
        %v4151 = vld [vmem:[%s4030 + $0x1e0] sm:$0xf]
        %v4152 = vld [vmem:[%s4030 + $0x1e4] sm:$0xf]
        %v4153 = vld [vmem:[%s4030 + $0x1e8] sm:$0xf]
        %v4154 = vld [vmem:[%s4030 + $0x1ec] sm:$0xf]
        %v4155 = vld [vmem:[%s4030 + $0x1f0] sm:$0xf]
        %v4156 = vld [vmem:[%s4030 + $0x1f4] sm:$0xf]
        %v4157 = vld [vmem:[%s4030 + $0x1f8] sm:$0xf]
        %v4158 = vld [vmem:[%s4030 + $0x1fc] sm:$0xf]
        %v4159 = vld [vmem:[%s4030 + $0x200] sm:$0xf]
        %v4160 = vld [vmem:[%s4030 + $0x204] sm:$0xf]
        %v4161 = vld [vmem:[%s4030 + $0x208] sm:$0xf]
        %v4162 = vld [vmem:[%s4030 + $0x20c] sm:$0xf]
        %v4163 = vld [vmem:[%s4030 + $0x210] sm:$0xf]
        %v4164 = vld [vmem:[%s4030 + $0x214] sm:$0xf]
        %v4165 = vld [vmem:[%s4030 + $0x218] sm:$0xf]
        %v4166 = vld [vmem:[%s4030 + $0x21c] sm:$0xf]
        %v4167 = vld [vmem:[%s4030 + $0x220] sm:$0xf]
        %v4168 = vld [vmem:[%s4030 + $0x224] sm:$0xf]
        %v4169 = vld [vmem:[%s4030 + $0x228] sm:$0xf]
        %v4170 = vld [vmem:[%s4030 + $0x22c] sm:$0xf]
        %v4171 = vld [vmem:[%s4030 + $0x230] sm:$0xf]
        %v4172 = vld [vmem:[%s4030 + $0x234] sm:$0xf]
        %v4173 = vld [vmem:[%s4030 + $0x238] sm:$0xf]
        %v4174 = vld [vmem:[%s4030 + $0x23c] sm:$0xf]
        %s4175 = scalar_lea.vmem [#allocation5], 2
        %v4176 = vld [vmem:[%s4175] sm:$0x1]
        %v4178 = vperm.slane %v4176, 0
        %v4324 = vunpack.c.l.b16 %v4031
        %v4325 = vunpack.c.l.b16 %v4032
        %v4326 = vunpack.c.l.b16 %v4033
        %v4327 = vunpack.c.l.b16 %v4034
        %v4328 = vunpack.c.l.b16 %v4035
        %v4329 = vunpack.c.l.b16 %v4036
        %v4330 = vunpack.c.l.b16 %v4037
        %v4331 = vunpack.c.l.b16 %v4038
        %v4332 = vunpack.c.l.b16 %v4039
        %v4333 = vunpack.c.l.b16 %v4040
        %v4334 = vunpack.c.l.b16 %v4041
        %v4335 = vunpack.c.l.b16 %v4042
        %v4336 = vunpack.c.l.b16 %v4043
        %v4337 = vunpack.c.l.b16 %v4044
        %v4338 = vunpack.c.l.b16 %v4045
        %v4339 = vunpack.c.l.b16 %v4046
        %v4340 = vunpack.c.l.b16 %v4047
        %v4341 = vunpack.c.l.b16 %v4048
        %v4342 = vunpack.c.l.b16 %v4049
        %v4343 = vunpack.c.l.b16 %v4050
        %v4344 = vunpack.c.l.b16 %v4051
        %v4345 = vunpack.c.l.b16 %v4052
        %v4346 = vunpack.c.l.b16 %v4053
        %v4347 = vunpack.c.l.b16 %v4054
        %v4348 = vunpack.c.l.b16 %v4055
        %v4349 = vunpack.c.l.b16 %v4056
        %v4350 = vunpack.c.l.b16 %v4057
        %v4351 = vunpack.c.l.b16 %v4058
        %v4352 = vunpack.c.l.b16 %v4059
        %v4353 = vunpack.c.l.b16 %v4060
        %v4354 = vunpack.c.l.b16 %v4061
        %v4355 = vunpack.c.l.b16 %v4062
        %v4356 = vunpack.c.l.b16 %v4063
        %v4357 = vunpack.c.l.b16 %v4064
        %v4358 = vunpack.c.l.b16 %v4065
        %v4359 = vunpack.c.l.b16 %v4066
        %v4360 = vunpack.c.l.b16 %v4067
        %v4361 = vunpack.c.l.b16 %v4068
        %v4362 = vunpack.c.l.b16 %v4069
        %v4363 = vunpack.c.l.b16 %v4070
        %v4364 = vunpack.c.l.b16 %v4071
        %v4365 = vunpack.c.l.b16 %v4072
        %v4366 = vunpack.c.l.b16 %v4073
        %v4367 = vunpack.c.l.b16 %v4074
        %v4368 = vunpack.c.l.b16 %v4075
        %v4369 = vunpack.c.l.b16 %v4076
        %v4370 = vunpack.c.l.b16 %v4077
        %v4371 = vunpack.c.l.b16 %v4078
        %v4372 = vunpack.c.l.b16 %v4079
        %v4373 = vunpack.c.l.b16 %v4080
        %v4374 = vunpack.c.l.b16 %v4081
        %v4375 = vunpack.c.l.b16 %v4082
        %v4376 = vunpack.c.l.b16 %v4083
        %v4377 = vunpack.c.l.b16 %v4084
        %v4378 = vunpack.c.l.b16 %v4085
        %v4379 = vunpack.c.l.b16 %v4086
        %v4380 = vunpack.c.l.b16 %v4087
        %v4381 = vunpack.c.l.b16 %v4088
        %v4382 = vunpack.c.l.b16 %v4089
        %v4383 = vunpack.c.l.b16 %v4090
        %v4384 = vunpack.c.l.b16 %v4091
        %v4385 = vunpack.c.l.b16 %v4092
        %v4386 = vunpack.c.l.b16 %v4093
        %v4387 = vunpack.c.l.b16 %v4094
        %v4388 = vunpack.c.l.b16 %v4095
        %v4389 = vunpack.c.l.b16 %v4096
        %v4390 = vunpack.c.l.b16 %v4097
        %v4391 = vunpack.c.l.b16 %v4098
        %v4392 = vunpack.c.l.b16 %v4099
        %v4393 = vunpack.c.l.b16 %v4100
        %v4394 = vunpack.c.l.b16 %v4101
        %v4395 = vunpack.c.l.b16 %v4102
        %v4396 = vunpack.c.l.b16 %v4103
        %v4397 = vunpack.c.l.b16 %v4104
        %v4398 = vunpack.c.l.b16 %v4105
        %v4399 = vunpack.c.l.b16 %v4106
        %v4400 = vunpack.c.l.b16 %v4107
        %v4401 = vunpack.c.l.b16 %v4108
        %v4402 = vunpack.c.l.b16 %v4109
        %v4403 = vunpack.c.l.b16 %v4110
        %v4404 = vunpack.c.l.b16 %v4111
        %v4405 = vunpack.c.l.b16 %v4112
        %v4406 = vunpack.c.l.b16 %v4113
        %v4407 = vunpack.c.l.b16 %v4114
        %v4408 = vunpack.c.l.b16 %v4115
        %v4409 = vunpack.c.l.b16 %v4116
        %v4410 = vunpack.c.l.b16 %v4117
        %v4411 = vunpack.c.l.b16 %v4118
        %v4412 = vunpack.c.l.b16 %v4119
        %v4413 = vunpack.c.l.b16 %v4120
        %v4414 = vunpack.c.l.b16 %v4121
        %v4415 = vunpack.c.l.b16 %v4122
        %v4416 = vunpack.c.l.b16 %v4123
        %v4417 = vunpack.c.l.b16 %v4124
        %v4418 = vunpack.c.l.b16 %v4125
        %v4419 = vunpack.c.l.b16 %v4126
        %v4420 = vunpack.c.l.b16 %v4127
        %v4421 = vunpack.c.l.b16 %v4128
        %v4422 = vunpack.c.l.b16 %v4129
        %v4423 = vunpack.c.l.b16 %v4130
        %v4424 = vunpack.c.l.b16 %v4131
        %v4425 = vunpack.c.l.b16 %v4132
        %v4426 = vunpack.c.l.b16 %v4133
        %v4427 = vunpack.c.l.b16 %v4134
        %v4428 = vunpack.c.l.b16 %v4135
        %v4429 = vunpack.c.l.b16 %v4136
        %v4430 = vunpack.c.l.b16 %v4137
        %v4431 = vunpack.c.l.b16 %v4138
        %v4432 = vunpack.c.l.b16 %v4139
        %v4433 = vunpack.c.l.b16 %v4140
        %v4434 = vunpack.c.l.b16 %v4141
        %v4435 = vunpack.c.l.b16 %v4142
        %v4436 = vunpack.c.l.b16 %v4143
        %v4437 = vunpack.c.l.b16 %v4144
        %v4438 = vunpack.c.l.b16 %v4145
        %v4439 = vunpack.c.l.b16 %v4146
        %v4440 = vunpack.c.l.b16 %v4147
        %v4441 = vunpack.c.l.b16 %v4148
        %v4442 = vunpack.c.l.b16 %v4149
        %v4443 = vunpack.c.l.b16 %v4150
        %v4444 = vunpack.c.l.b16 %v4151
        %v4445 = vunpack.c.l.b16 %v4152
        %v4446 = vunpack.c.l.b16 %v4153
        %v4447 = vunpack.c.l.b16 %v4154
        %v4448 = vunpack.c.l.b16 %v4155
        %v4449 = vunpack.c.l.b16 %v4156
        %v4450 = vunpack.c.l.b16 %v4157
        %v4451 = vunpack.c.l.b16 %v4158
        %v4452 = vunpack.c.l.b16 %v4159
        %v4453 = vunpack.c.l.b16 %v4160
        %v4454 = vunpack.c.l.b16 %v4161
        %v4455 = vunpack.c.l.b16 %v4162
        %v4456 = vunpack.c.l.b16 %v4163
        %v4457 = vunpack.c.l.b16 %v4164
        %v4458 = vunpack.c.l.b16 %v4165
        %v4459 = vunpack.c.l.b16 %v4166
        %v4460 = vunpack.c.l.b16 %v4167
        %v4461 = vunpack.c.l.b16 %v4168
        %v4462 = vunpack.c.l.b16 %v4169
        %v4463 = vunpack.c.l.b16 %v4170
        %v4464 = vunpack.c.l.b16 %v4171
        %v4465 = vunpack.c.l.b16 %v4172
        %v4466 = vunpack.c.l.b16 %v4173
        %v4467 = vunpack.c.l.b16 %v4174
        %v4468 = vpack.c.b16 %v4325, %v4324
        %v4469 = vpack.c.b16 %v4327, %v4326
        %v4470 = vpack.c.b16 %v4329, %v4328
        %v4471 = vpack.c.b16 %v4331, %v4330
        %v4472 = vpack.c.b16 %v4333, %v4332
        %v4473 = vpack.c.b16 %v4335, %v4334
        %v4474 = vpack.c.b16 %v4337, %v4336
        %v4475 = vpack.c.b16 %v4339, %v4338
        %v4476 = vpack.c.b16 %v4341, %v4340
        %v4477 = vpack.c.b16 %v4343, %v4342
        %v4478 = vpack.c.b16 %v4345, %v4344
        %v4479 = vpack.c.b16 %v4347, %v4346
        %v4480 = vpack.c.b16 %v4349, %v4348
        %v4481 = vpack.c.b16 %v4351, %v4350
        %v4482 = vpack.c.b16 %v4353, %v4352
        %v4483 = vpack.c.b16 %v4355, %v4354
        %v4484 = vpack.c.b16 %v4357, %v4356
        %v4485 = vpack.c.b16 %v4359, %v4358
        %v4486 = vpack.c.b16 %v4361, %v4360
        %v4487 = vpack.c.b16 %v4363, %v4362
        %v4488 = vpack.c.b16 %v4365, %v4364
        %v4489 = vpack.c.b16 %v4367, %v4366
        %v4490 = vpack.c.b16 %v4369, %v4368
        %v4491 = vpack.c.b16 %v4371, %v4370
        %v4492 = vpack.c.b16 %v4373, %v4372
        %v4493 = vpack.c.b16 %v4375, %v4374
        %v4494 = vpack.c.b16 %v4377, %v4376
        %v4495 = vpack.c.b16 %v4379, %v4378
        %v4496 = vpack.c.b16 %v4381, %v4380
        %v4497 = vpack.c.b16 %v4383, %v4382
        %v4498 = vpack.c.b16 %v4385, %v4384
        %v4499 = vpack.c.b16 %v4387, %v4386
        %v4500 = vpack.c.b16 %v4389, %v4388
        %v4501 = vpack.c.b16 %v4391, %v4390
        %v4502 = vpack.c.b16 %v4393, %v4392
        %v4503 = vpack.c.b16 %v4395, %v4394
        %v4504 = vpack.c.b16 %v4397, %v4396
        %v4505 = vpack.c.b16 %v4399, %v4398
        %v4506 = vpack.c.b16 %v4401, %v4400
        %v4507 = vpack.c.b16 %v4403, %v4402
        %v4508 = vpack.c.b16 %v4405, %v4404
        %v4509 = vpack.c.b16 %v4407, %v4406
        %v4510 = vpack.c.b16 %v4409, %v4408
        %v4511 = vpack.c.b16 %v4411, %v4410
        %v4512 = vpack.c.b16 %v4413, %v4412
        %v4513 = vpack.c.b16 %v4415, %v4414
        %v4514 = vpack.c.b16 %v4417, %v4416
        %v4515 = vpack.c.b16 %v4419, %v4418
        %v4516 = vpack.c.b16 %v4421, %v4420
        %v4517 = vpack.c.b16 %v4423, %v4422
        %v4518 = vpack.c.b16 %v4425, %v4424
        %v4519 = vpack.c.b16 %v4427, %v4426
        %v4520 = vpack.c.b16 %v4429, %v4428
        %v4521 = vpack.c.b16 %v4431, %v4430
        %v4522 = vpack.c.b16 %v4433, %v4432
        %v4523 = vpack.c.b16 %v4435, %v4434
        %v4524 = vpack.c.b16 %v4437, %v4436
        %v4525 = vpack.c.b16 %v4439, %v4438
        %v4526 = vpack.c.b16 %v4441, %v4440
        %v4527 = vpack.c.b16 %v4443, %v4442
        %v4528 = vpack.c.b16 %v4445, %v4444
        %v4529 = vpack.c.b16 %v4447, %v4446
        %v4530 = vpack.c.b16 %v4449, %v4448
        %v4531 = vpack.c.b16 %v4451, %v4450
        %v4532 = vpack.c.b16 %v4453, %v4452
        %v4533 = vpack.c.b16 %v4455, %v4454
        %v4534 = vpack.c.b16 %v4457, %v4456
        %v4535 = vpack.c.b16 %v4459, %v4458
        %v4536 = vpack.c.b16 %v4461, %v4460
        %v4537 = vpack.c.b16 %v4463, %v4462
        %v4538 = vpack.c.b16 %v4465, %v4464
        %v4539 = vpack.c.b16 %v4467, %v4466
        %4612 = vmatpush.bf16.msra.mxu0 %v4475
        %4613 = vmatpush.bf16.msra.mxu0 %v4474
        %4614 = vmatpush.bf16.msra.mxu0 %v4473
        %4615 = vmatpush.bf16.msra.mxu0 %v4472
        %4616 = vmatpush.bf16.msra.mxu0 %v4471
        %4617 = vmatpush.bf16.msra.mxu0 %v4470
        %4618 = vmatpush.bf16.msra.mxu0 %v4469
        %4619 = vmatpush.bf16.msra.mxu0 %v4468
        %4620 = vmatmul.bf16.gmra.mxu0 %v3707
        %v4621 = vpop.f32.mrf.mxu0
        %v4622 = vadd.f32 %v4178, %v4621
        %v4623 = vpop.f32.mrf.mxu0
        %v4624 = vadd.f32 %v4178, %v4623
        %4625 = vmatmul.bf16.gmra.mxu0 %v3708
        %v4626 = vpop.f32.mrf.mxu0
        %v4627 = vadd.f32 %v4178, %v4626
        %v4628 = vpop.f32.mrf.mxu0
        %v4629 = vadd.f32 %v4178, %v4628
        %4630 = vmatmul.bf16.gmra.mxu0 %v3709
        %v4631 = vpop.f32.mrf.mxu0
        %v4632 = vadd.f32 %v4178, %v4631
        %v4633 = vpop.f32.mrf.mxu0
        %v4634 = vadd.f32 %v4178, %v4633
        %4635 = vmatmul.bf16.gmra.mxu0 %v3710
        %v4636 = vpop.f32.mrf.mxu0
        %v4637 = vadd.f32 %v4178, %v4636
        %v4638 = vpop.f32.mrf.mxu0
        %v4639 = vadd.f32 %v4178, %v4638
        %4640 = vmatmul.bf16.gmra.mxu0 %v3711
        %v4641 = vpop.f32.mrf.mxu0
        %v4642 = vadd.f32 %v4178, %v4641
        %v4643 = vpop.f32.mrf.mxu0
        %v4644 = vadd.f32 %v4178, %v4643
        %4645 = vmatmul.bf16.gmra.mxu0 %v3712
        %v4646 = vpop.f32.mrf.mxu0
        %v4647 = vadd.f32 %v4178, %v4646
        %v4648 = vpop.f32.mrf.mxu0
        %v4649 = vadd.f32 %v4178, %v4648
        %4650 = vdwg.mxu0
        %4651 = vmatpush.bf16.msra.mxu0 %v4483
        %4652 = vmatpush.bf16.msra.mxu0 %v4482
        %4653 = vmatpush.bf16.msra.mxu0 %v4481
        %4654 = vmatpush.bf16.msra.mxu0 %v4480
        %4655 = vmatpush.bf16.msra.mxu0 %v4479
        %4656 = vmatpush.bf16.msra.mxu0 %v4478
        %4657 = vmatpush.bf16.msra.mxu0 %v4477
        %4658 = vmatpush.bf16.msra.mxu0 %v4476
        %4659 = vmatmul.bf16.gmra.mxu0 %v3733
        %v4660 = vpop.f32.mrf.mxu0
        %v4661 = vadd.f32 %v4622, %v4660
        %v4662 = vpop.f32.mrf.mxu0
        %v4663 = vadd.f32 %v4624, %v4662
        %4664 = vmatmul.bf16.gmra.mxu0 %v3741
        %v4665 = vpop.f32.mrf.mxu0
        %v4666 = vadd.f32 %v4627, %v4665
        %v4667 = vpop.f32.mrf.mxu0
        %v4668 = vadd.f32 %v4629, %v4667
        %4669 = vmatmul.bf16.gmra.mxu0 %v3749
        %v4670 = vpop.f32.mrf.mxu0
        %v4671 = vadd.f32 %v4632, %v4670
        %v4672 = vpop.f32.mrf.mxu0
        %v4673 = vadd.f32 %v4634, %v4672
        %4674 = vmatmul.bf16.gmra.mxu0 %v3757
        %v4675 = vpop.f32.mrf.mxu0
        %v4676 = vadd.f32 %v4637, %v4675
        %v4677 = vpop.f32.mrf.mxu0
        %v4678 = vadd.f32 %v4639, %v4677
        %4679 = vmatmul.bf16.gmra.mxu0 %v3765
        %v4680 = vpop.f32.mrf.mxu0
        %v4681 = vadd.f32 %v4642, %v4680
        %v4682 = vpop.f32.mrf.mxu0
        %v4683 = vadd.f32 %v4644, %v4682
        %4684 = vmatmul.bf16.gmra.mxu0 %v3773
        %v4685 = vpop.f32.mrf.mxu0
        %v4686 = vadd.f32 %v4647, %v4685
        %v4687 = vpop.f32.mrf.mxu0
        %v4688 = vadd.f32 %v4649, %v4687
        %4689 = vdwg.mxu0
        %4690 = vmatpush.bf16.msra.mxu0 %v4491
        %4691 = vmatpush.bf16.msra.mxu0 %v4490
        %4692 = vmatpush.bf16.msra.mxu0 %v4489
        %4693 = vmatpush.bf16.msra.mxu0 %v4488
        %4694 = vmatpush.bf16.msra.mxu0 %v4487
        %4695 = vmatpush.bf16.msra.mxu0 %v4486
        %4696 = vmatpush.bf16.msra.mxu0 %v4485
        %4697 = vmatpush.bf16.msra.mxu0 %v4484
        %4698 = vmatmul.bf16.gmra.mxu0 %v3785
        %v4699 = vpop.f32.mrf.mxu0
        %v4700 = vadd.f32 %v4661, %v4699
        %v4701 = vpop.f32.mrf.mxu0
        %v4702 = vadd.f32 %v4663, %v4701
        %4703 = vmatmul.bf16.gmra.mxu0 %v3787
        %v4704 = vpop.f32.mrf.mxu0
        %v4705 = vadd.f32 %v4666, %v4704
        %v4706 = vpop.f32.mrf.mxu0
        %v4707 = vadd.f32 %v4668, %v4706
        %4708 = vmatmul.bf16.gmra.mxu0 %v3789
        %v4709 = vpop.f32.mrf.mxu0
        %v4710 = vadd.f32 %v4671, %v4709
        %v4711 = vpop.f32.mrf.mxu0
        %v4712 = vadd.f32 %v4673, %v4711
        %4713 = vmatmul.bf16.gmra.mxu0 %v3791
        %v4714 = vpop.f32.mrf.mxu0
        %v4715 = vadd.f32 %v4676, %v4714
        %v4716 = vpop.f32.mrf.mxu0
        %v4717 = vadd.f32 %v4678, %v4716
        %4718 = vmatmul.bf16.gmra.mxu0 %v3793
        %v4719 = vpop.f32.mrf.mxu0
        %v4720 = vadd.f32 %v4681, %v4719
        %v4721 = vpop.f32.mrf.mxu0
        %v4722 = vadd.f32 %v4683, %v4721
        %4723 = vmatmul.bf16.gmra.mxu0 %v3795
        %v4724 = vpop.f32.mrf.mxu0
        %v4725 = vadd.f32 %v4686, %v4724
        %v4726 = vpop.f32.mrf.mxu0
        %v4727 = vadd.f32 %v4688, %v4726
        %4728 = vdwg.mxu0
        %4729 = vmatpush.bf16.msra.mxu0 %v4499
        %4730 = vmatpush.bf16.msra.mxu0 %v4498
        %4731 = vmatpush.bf16.msra.mxu0 %v4497
        %4732 = vmatpush.bf16.msra.mxu0 %v4496
        %4733 = vmatpush.bf16.msra.mxu0 %v4495
        %4734 = vmatpush.bf16.msra.mxu0 %v4494
        %4735 = vmatpush.bf16.msra.mxu0 %v4493
        %4736 = vmatpush.bf16.msra.mxu0 %v4492
        %4737 = vmatmul.bf16.gmra.mxu0 %v3810
        %v4738 = vpop.f32.mrf.mxu0
        %v4739 = vadd.f32 %v4700, %v4738
        %v4740 = vpop.f32.mrf.mxu0
        %v4741 = vadd.f32 %v4702, %v4740
        %4742 = vmatmul.bf16.gmra.mxu0 %v3812
        %v4743 = vpop.f32.mrf.mxu0
        %v4744 = vadd.f32 %v4705, %v4743
        %v4745 = vpop.f32.mrf.mxu0
        %v4746 = vadd.f32 %v4707, %v4745
        %4747 = vmatmul.bf16.gmra.mxu0 %v3814
        %v4748 = vpop.f32.mrf.mxu0
        %v4749 = vadd.f32 %v4710, %v4748
        %v4750 = vpop.f32.mrf.mxu0
        %v4751 = vadd.f32 %v4712, %v4750
        %4752 = vmatmul.bf16.gmra.mxu0 %v3816
        %v4753 = vpop.f32.mrf.mxu0
        %v4754 = vadd.f32 %v4715, %v4753
        %v4755 = vpop.f32.mrf.mxu0
        %v4756 = vadd.f32 %v4717, %v4755
        %4757 = vmatmul.bf16.gmra.mxu0 %v3818
        %v4758 = vpop.f32.mrf.mxu0
        %v4759 = vadd.f32 %v4720, %v4758
        %v4760 = vpop.f32.mrf.mxu0
        %v4761 = vadd.f32 %v4722, %v4760
        %4762 = vmatmul.bf16.gmra.mxu0 %v3820
        %v4763 = vpop.f32.mrf.mxu0
        %v4764 = vadd.f32 %v4725, %v4763
        %v4765 = vpop.f32.mrf.mxu0
        %v4766 = vadd.f32 %v4727, %v4765
        %4767 = vdwg.mxu0
        %4768 = vmatpush.bf16.msra.mxu0 %v4507
        %4769 = vmatpush.bf16.msra.mxu0 %v4506
        %4770 = vmatpush.bf16.msra.mxu0 %v4505
        %4771 = vmatpush.bf16.msra.mxu0 %v4504
        %4772 = vmatpush.bf16.msra.mxu0 %v4503
        %4773 = vmatpush.bf16.msra.mxu0 %v4502
        %4774 = vmatpush.bf16.msra.mxu0 %v4501
        %4775 = vmatpush.bf16.msra.mxu0 %v4500
        %4776 = vmatmul.bf16.gmra.mxu0 %v3841
        %v4777 = vpop.f32.mrf.mxu0
        %v4778 = vadd.f32 %v4739, %v4777
        %v4779 = vpop.f32.mrf.mxu0
        %v4780 = vadd.f32 %v4741, %v4779
        %4781 = vmatmul.bf16.gmra.mxu0 %v3845
        %v4782 = vpop.f32.mrf.mxu0
        %v4783 = vadd.f32 %v4744, %v4782
        %v4784 = vpop.f32.mrf.mxu0
        %v4785 = vadd.f32 %v4746, %v4784
        %4786 = vmatmul.bf16.gmra.mxu0 %v3849
        %v4787 = vpop.f32.mrf.mxu0
        %v4788 = vadd.f32 %v4749, %v4787
        %v4789 = vpop.f32.mrf.mxu0
        %v4790 = vadd.f32 %v4751, %v4789
        %4791 = vmatmul.bf16.gmra.mxu0 %v3853
        %v4792 = vpop.f32.mrf.mxu0
        %v4793 = vadd.f32 %v4754, %v4792
        %v4794 = vpop.f32.mrf.mxu0
        %v4795 = vadd.f32 %v4756, %v4794
        %4796 = vmatmul.bf16.gmra.mxu0 %v3857
        %v4797 = vpop.f32.mrf.mxu0
        %v4798 = vadd.f32 %v4759, %v4797
        %v4799 = vpop.f32.mrf.mxu0
        %v4800 = vadd.f32 %v4761, %v4799
        %4801 = vmatmul.bf16.gmra.mxu0 %v3866
        %v4802 = vpop.f32.mrf.mxu0
        %v4803 = vadd.f32 %v4764, %v4802
        %v4804 = vpop.f32.mrf.mxu0
        %v4805 = vadd.f32 %v4766, %v4804
        %4806 = vdwg.mxu0
        %4807 = vmatpush.bf16.msra.mxu0 %v4515
        %4808 = vmatpush.bf16.msra.mxu0 %v4514
        %4809 = vmatpush.bf16.msra.mxu0 %v4513
        %4810 = vmatpush.bf16.msra.mxu0 %v4512
        %4811 = vmatpush.bf16.msra.mxu0 %v4511
        %4812 = vmatpush.bf16.msra.mxu0 %v4510
        %4813 = vmatpush.bf16.msra.mxu0 %v4509
        %4814 = vmatpush.bf16.msra.mxu0 %v4508
        %4815 = vmatmul.bf16.gmra.mxu0 %v3873
        %v4816 = vpop.f32.mrf.mxu0
        %v4817 = vadd.f32 %v4778, %v4816
        %v4818 = vpop.f32.mrf.mxu0
        %v4819 = vadd.f32 %v4780, %v4818
        %4820 = vmatmul.bf16.gmra.mxu0 %v3874
        %v4821 = vpop.f32.mrf.mxu0
        %v4822 = vadd.f32 %v4783, %v4821
        %v4823 = vpop.f32.mrf.mxu0
        %v4824 = vadd.f32 %v4785, %v4823
        %4825 = vmatmul.bf16.gmra.mxu0 %v3875
        %v4826 = vpop.f32.mrf.mxu0
        %v4827 = vadd.f32 %v4788, %v4826
        %v4828 = vpop.f32.mrf.mxu0
        %v4829 = vadd.f32 %v4790, %v4828
        %4830 = vmatmul.bf16.gmra.mxu0 %v3876
        %v4831 = vpop.f32.mrf.mxu0
        %v4832 = vadd.f32 %v4793, %v4831
        %v4833 = vpop.f32.mrf.mxu0
        %v4834 = vadd.f32 %v4795, %v4833
        %4835 = vmatmul.bf16.gmra.mxu0 %v3877
        %v4836 = vpop.f32.mrf.mxu0
        %v4837 = vadd.f32 %v4798, %v4836
        %v4838 = vpop.f32.mrf.mxu0
        %v4839 = vadd.f32 %v4800, %v4838
        %4840 = vmatmul.bf16.gmra.mxu0 %v3878
        %v4841 = vpop.f32.mrf.mxu0
        %v4842 = vadd.f32 %v4803, %v4841
        %v4843 = vpop.f32.mrf.mxu0
        %v4844 = vadd.f32 %v4805, %v4843
        %4845 = vdwg.mxu0
        %4846 = vmatpush.bf16.msra.mxu0 %v4523
        %4847 = vmatpush.bf16.msra.mxu0 %v4522
        %4848 = vmatpush.bf16.msra.mxu0 %v4521
        %4849 = vmatpush.bf16.msra.mxu0 %v4520
        %4850 = vmatpush.bf16.msra.mxu0 %v4519
        %4851 = vmatpush.bf16.msra.mxu0 %v4518
        %4852 = vmatpush.bf16.msra.mxu0 %v4517
        %4853 = vmatpush.bf16.msra.mxu0 %v4516
        %4854 = vmatmul.bf16.gmra.mxu0 %v3920
        %v4855 = vpop.f32.mrf.mxu0
        %v4856 = vadd.f32 %v4817, %v4855
        %v4857 = vpop.f32.mrf.mxu0
        %v4858 = vadd.f32 %v4819, %v4857
        %4859 = vmatmul.bf16.gmra.mxu0 %v3922
        %v4860 = vpop.f32.mrf.mxu0
        %v4861 = vadd.f32 %v4822, %v4860
        %v4862 = vpop.f32.mrf.mxu0
        %v4863 = vadd.f32 %v4824, %v4862
        %4864 = vmatmul.bf16.gmra.mxu0 %v3924
        %v4865 = vpop.f32.mrf.mxu0
        %v4866 = vadd.f32 %v4827, %v4865
        %v4867 = vpop.f32.mrf.mxu0
        %v4868 = vadd.f32 %v4829, %v4867
        %4869 = vmatmul.bf16.gmra.mxu0 %v3926
        %v4870 = vpop.f32.mrf.mxu0
        %v4871 = vadd.f32 %v4832, %v4870
        %v4872 = vpop.f32.mrf.mxu0
        %v4873 = vadd.f32 %v4834, %v4872
        %4874 = vmatmul.bf16.gmra.mxu0 %v3928
        %v4875 = vpop.f32.mrf.mxu0
        %v4876 = vadd.f32 %v4837, %v4875
        %v4877 = vpop.f32.mrf.mxu0
        %v4878 = vadd.f32 %v4839, %v4877
        %4879 = vmatmul.bf16.gmra.mxu0 %v3930
        %v4880 = vpop.f32.mrf.mxu0
        %v4881 = vadd.f32 %v4842, %v4880
        %v4882 = vpop.f32.mrf.mxu0
        %v4883 = vadd.f32 %v4844, %v4882
        %4884 = vdwg.mxu0
        %4885 = vmatpush.bf16.msra.mxu0 %v4531
        %4886 = vmatpush.bf16.msra.mxu0 %v4530
        %4887 = vmatpush.bf16.msra.mxu0 %v4529
        %4888 = vmatpush.bf16.msra.mxu0 %v4528
        %4889 = vmatpush.bf16.msra.mxu0 %v4527
        %4890 = vmatpush.bf16.msra.mxu0 %v4526
        %4891 = vmatpush.bf16.msra.mxu0 %v4525
        %4892 = vmatpush.bf16.msra.mxu0 %v4524
        %4893 = vmatmul.bf16.gmra.mxu0 %v3956
        %v4894 = vpop.f32.mrf.mxu0
        %v4895 = vadd.f32 %v4856, %v4894
        %v4896 = vpop.f32.mrf.mxu0
        %v4897 = vadd.f32 %v4858, %v4896
        %4898 = vmatmul.bf16.gmra.mxu0 %v3965
        %v4899 = vpop.f32.mrf.mxu0
        %v4900 = vadd.f32 %v4861, %v4899
        %v4901 = vpop.f32.mrf.mxu0
        %v4902 = vadd.f32 %v4863, %v4901
        %4903 = vmatmul.bf16.gmra.mxu0 %v3974
        %v4904 = vpop.f32.mrf.mxu0
        %v4905 = vadd.f32 %v4866, %v4904
        %v4906 = vpop.f32.mrf.mxu0
        %v4907 = vadd.f32 %v4868, %v4906
        %4908 = vmatmul.bf16.gmra.mxu0 %v3983
        %v4909 = vpop.f32.mrf.mxu0
        %v4910 = vadd.f32 %v4871, %v4909
        %v4911 = vpop.f32.mrf.mxu0
        %v4912 = vadd.f32 %v4873, %v4911
        %4913 = vmatmul.bf16.gmra.mxu0 %v3992
        %v4914 = vpop.f32.mrf.mxu0
        %v4915 = vadd.f32 %v4876, %v4914
        %v4916 = vpop.f32.mrf.mxu0
        %v4917 = vadd.f32 %v4878, %v4916
        %4918 = vmatmul.bf16.gmra.mxu0 %v4001
        %v4919 = vpop.f32.mrf.mxu0
        %v4920 = vadd.f32 %v4881, %v4919
        %v4921 = vpop.f32.mrf.mxu0
        %v4922 = vadd.f32 %v4883, %v4921
        %4923 = vdwg.mxu0
        %4924 = vmatpush.bf16.msra.mxu0 %v4539
        %4925 = vmatpush.bf16.msra.mxu0 %v4538
        %4926 = vmatpush.bf16.msra.mxu0 %v4537
        %4927 = vmatpush.bf16.msra.mxu0 %v4536
        %4928 = vmatpush.bf16.msra.mxu0 %v4535
        %4929 = vmatpush.bf16.msra.mxu0 %v4534
        %4930 = vmatpush.bf16.msra.mxu0 %v4533
        %4931 = vmatpush.bf16.msra.mxu0 %v4532
        %4932 = vmatmul.bf16.gmra.mxu0 %v4013
        %v4933 = vpop.f32.mrf.mxu0
        %v4934 = vadd.f32 %v4895, %v4933
        %v4935 = vpop.f32.mrf.mxu0
        %v4936 = vadd.f32 %v4897, %v4935
        %4937 = vmatmul.bf16.gmra.mxu0 %v4015
        %v4938 = vpop.f32.mrf.mxu0
        %v4939 = vadd.f32 %v4900, %v4938
        %v4940 = vpop.f32.mrf.mxu0
        %v4941 = vadd.f32 %v4902, %v4940
        %4942 = vmatmul.bf16.gmra.mxu0 %v4017
        %v4943 = vpop.f32.mrf.mxu0
        %v4944 = vadd.f32 %v4905, %v4943
        %v4945 = vpop.f32.mrf.mxu0
        %v4946 = vadd.f32 %v4907, %v4945
        %4947 = vmatmul.bf16.gmra.mxu0 %v4019
        %v4948 = vpop.f32.mrf.mxu0
        %v4949 = vadd.f32 %v4910, %v4948
        %v4950 = vpop.f32.mrf.mxu0
        %v4951 = vadd.f32 %v4912, %v4950
        %4952 = vmatmul.bf16.gmra.mxu0 %v4021
        %v4953 = vpop.f32.mrf.mxu0
        %v4954 = vadd.f32 %v4915, %v4953
        %v4955 = vpop.f32.mrf.mxu0
        %v4956 = vadd.f32 %v4917, %v4955
        %4957 = vmatmul.bf16.gmra.mxu0 %v4023
        %v4958 = vpop.f32.mrf.mxu0
        %v4959 = vadd.f32 %v4920, %v4958
        %v4960 = vpop.f32.mrf.mxu0
        %v4961 = vadd.f32 %v4922, %v4960
        %4962 = vdwg.mxu0
        %v4963 = vsel %vm1980, %v4934, 0.0
        %v4964 = vsel %vm1981, %v4936, 0.0
        %v4965 = vsel %vm1982, %v4939, 0.0
        %v4966 = vsel %vm1983, %v4941, 0.0
        %v4967 = vsel %vm1984, %v4944, 0.0
        %v4968 = vsel %vm1985, %v4946, 0.0
        %v4969 = vsel %vm1986, %v4949, 0.0
        %v4970 = vsel %vm1987, %v4951, 0.0
        %v4971 = vsel %vm1988, %v4954, 0.0
        %v4972 = vsel %vm1989, %v4956, 0.0
        %v4973 = vsel %vm1990, %v4959, 0.0
        %v4974 = vsel %vm1991, %v4961, 0.0
        %v4975 = vpack.c.bf16 %v4963, %v4963
        %v4976 = vpack.c.bf16 %v4964, %v4964
        %v4977 = vpack.c.bf16 %v4965, %v4965
        %v4978 = vpack.c.bf16 %v4966, %v4966
        %v4979 = vpack.c.bf16 %v4967, %v4967
        %v4980 = vpack.c.bf16 %v4968, %v4968
        %v4981 = vpack.c.bf16 %v4969, %v4969
        %v4982 = vpack.c.bf16 %v4970, %v4970
        %v4983 = vpack.c.bf16 %v4971, %v4971
        %v4984 = vpack.c.bf16 %v4972, %v4972
        %v4985 = vpack.c.bf16 %v4973, %v4973
        %v4986 = vpack.c.bf16 %v4974, %v4974
        %v4988 = vshll.u32 %v4975, 16
        %v4990 = vrot.slane %v4988, 5
        %v4991 = vshrl.u32 %v4975, 16
        %v4993 = vrot.slane %v4991, 4
        %v4994 = vor.u32 %v4993, %v4990
        %v4995 = vrot.slane %v4994, 4
        %v4997 = vshll.u32 %v4976, 16
        %v4999 = vrot.slane %v4997, 5
        %v5000 = vsel %vm2017, %v4995, %v4999
        %v5001 = vshrl.u32 %v4976, 16
        %v5003 = vrot.slane %v5001, 4
        %v5004 = vor.u32 %v5003, %v4999
        %v5005 = vrot.slane %v5004, 4
        %v5007 = vshll.u32 %v4977, 16
        %v5009 = vrot.slane %v5007, 5
        %v5010 = vsel %vm2017, %v5005, %v5009
        %v5011 = vshrl.u32 %v4977, 16
        %v5013 = vrot.slane %v5011, 4
        %v5014 = vor.u32 %v5013, %v5009
        %v5015 = vrot.slane %v5014, 4
        %v5017 = vshll.u32 %v4978, 16
        %v5019 = vrot.slane %v5017, 5
        %v5020 = vsel %vm2017, %v5015, %v5019
        %v5021 = vshrl.u32 %v4978, 16
        %v5023 = vrot.slane %v5021, 4
        %v5024 = vor.u32 %v5023, %v5019
        %v5025 = vrot.slane %v5024, 4
        %v5027 = vshll.u32 %v4979, 16
        %v5029 = vrot.slane %v5027, 5
        %v5030 = vsel %vm2017, %v5025, %v5029
        %v5031 = vshrl.u32 %v4979, 16
        %v5033 = vrot.slane %v5031, 4
        %v5034 = vor.u32 %v5033, %v5029
        %v5035 = vrot.slane %v5034, 4
        %v5037 = vshll.u32 %v4980, 16
        %v5039 = vrot.slane %v5037, 5
        %v5040 = vsel %vm2017, %v5035, %v5039
        %v5041 = vshrl.u32 %v4980, 16
        %v5043 = vrot.slane %v5041, 4
        %v5044 = vor.u32 %v5043, %v5039
        %v5045 = vrot.slane %v5044, 4
        %v5047 = vshll.u32 %v4981, 16
        %v5049 = vrot.slane %v5047, 5
        %v5050 = vsel %vm2017, %v5045, %v5049
        %v5051 = vshrl.u32 %v4981, 16
        %v5053 = vrot.slane %v5051, 4
        %v5054 = vor.u32 %v5053, %v5049
        %v5055 = vrot.slane %v5054, 4
        %v5057 = vshll.u32 %v4982, 16
        %v5059 = vrot.slane %v5057, 5
        %v5060 = vsel %vm2017, %v5055, %v5059
        %v5061 = vshrl.u32 %v4982, 16
        %v5063 = vrot.slane %v5061, 4
        %v5064 = vor.u32 %v5063, %v5059
        %v5065 = vrot.slane %v5064, 4
        %v5067 = vshll.u32 %v4983, 16
        %v5069 = vrot.slane %v5067, 5
        %v5070 = vsel %vm2017, %v5065, %v5069
        %v5071 = vshrl.u32 %v4983, 16
        %v5073 = vrot.slane %v5071, 4
        %v5074 = vor.u32 %v5073, %v5069
        %v5075 = vrot.slane %v5074, 4
        %v5077 = vshll.u32 %v4984, 16
        %v5079 = vrot.slane %v5077, 5
        %v5080 = vsel %vm2017, %v5075, %v5079
        %v5081 = vshrl.u32 %v4984, 16
        %v5083 = vrot.slane %v5081, 4
        %v5084 = vor.u32 %v5083, %v5079
        %v5085 = vrot.slane %v5084, 4
        %v5087 = vshll.u32 %v4985, 16
        %v5089 = vrot.slane %v5087, 5
        %v5090 = vsel %vm2017, %v5085, %v5089
        %v5091 = vshrl.u32 %v4985, 16
        %v5093 = vrot.slane %v5091, 4
        %v5094 = vor.u32 %v5093, %v5089
        %v5095 = vrot.slane %v5094, 4
        %v5097 = vshll.u32 %v4986, 16
        %v5099 = vrot.slane %v5097, 5
        %v5100 = vsel %vm2017, %v5095, %v5099
        %v5101 = vshrl.u32 %v4986, 16
        %v5103 = vrot.slane %v5101, 4
        %v5104 = vor.u32 %v5103, %v5099
        %v5105 = vrot.slane %v5104, 4
        %v5119 = vsel %vm647, %v4990, %v3665
        %5120 = vst [vmem:[#allocation2] sm:$0x8] %v5119
        %5121 = vst [vmem:[#allocation2 + $0x4] sm:$0xf] %v5000
        %5122 = vst [vmem:[#allocation2 + $0x8] sm:$0xf] %v5010
        %5123 = vst [vmem:[#allocation2 + $0xc] sm:$0xf] %v5020
        %5124 = vst [vmem:[#allocation2 + $0x10] sm:$0xf] %v5030
        %5125 = vst [vmem:[#allocation2 + $0x14] sm:$0xf] %v5040
        %5126 = vst [vmem:[#allocation2 + $0x18] sm:$0xf] %v5050
        %5127 = vst [vmem:[#allocation2 + $0x1c] sm:$0xf] %v5060
        %5128 = vst [vmem:[#allocation2 + $0x20] sm:$0xf] %v5070
        %5129 = vst [vmem:[#allocation2 + $0x24] sm:$0xf] %v5080
        %5130 = vst [vmem:[#allocation2 + $0x28] sm:$0xf] %v5090
        %5131 = vst [vmem:[#allocation2 + $0x2c] sm:$0xf] %v5100
        %v5132 = vld [vmem:[#allocation2 + $0x30] sm:$0xf]
        %v5133 = vsel %vm641, %v5105, %v5132
        %5134 = vst [vmem:[#allocation2 + $0x30] sm:$0xf] %v5133
        %v5135 = vld [vmem:[#allocation2] sm:$0xf]
        %v5136 = vld [vmem:[#allocation2 + $0x4] sm:$0xf]
        %v5137 = vld [vmem:[#allocation2 + $0x8] sm:$0xf]
        %v5138 = vld [vmem:[#allocation2 + $0xc] sm:$0xf]
        %v5139 = vld [vmem:[#allocation2 + $0x10] sm:$0xf]
        %v5140 = vld [vmem:[#allocation2 + $0x14] sm:$0xf]
        %v5141 = vld [vmem:[#allocation2 + $0x18] sm:$0xf]
        %v5142 = vld [vmem:[#allocation2 + $0x1c] sm:$0xf]
        %v5143 = vld [vmem:[#allocation2 + $0x20] sm:$0xf]
        %v5144 = vld [vmem:[#allocation2 + $0x24] sm:$0xf]
        %v5145 = vld [vmem:[#allocation2 + $0x28] sm:$0xf]
        %v5146 = vld [vmem:[#allocation2 + $0x2c] sm:$0xf]
        %v5147 = vld [vmem:[#allocation2 + $0x30] sm:$0x1]
        %v5148 = vld [vmem:[#allocation2] sm:$0xe]
        %v5149 = vld [vmem:[#allocation2] sm:$0x8]
        %v5150 = vld [vmem:[#allocation2 + $0x30] sm:$0x7]
        %v5151 = vld [vmem:[#allocation2 + $0x30] sm:$0xf]
        %v5152 = vld [vmem:[#allocation2 + $0x4] sm:$0xc]
        %v5153 = vld [vmem:[#allocation2 + $0x8] sm:$0xf]
        %v5154 = vld [vmem:[#allocation2 + $0xc] sm:$0xf]
        %v5155 = vld [vmem:[#allocation2 + $0x10] sm:$0xf]
        %v5156 = vld [vmem:[#allocation2 + $0x14] sm:$0xf]
        %v5157 = vld [vmem:[#allocation2 + $0x18] sm:$0xf]
        %v5158 = vld [vmem:[#allocation2 + $0x1c] sm:$0xf]
        %v5159 = vld [vmem:[#allocation2 + $0x20] sm:$0xf]
        %v5160 = vld [vmem:[#allocation2 + $0x24] sm:$0xf]
        %v5161 = vld [vmem:[#allocation2 + $0x28] sm:$0xf]
        %v5162 = vld [vmem:[#allocation2 + $0x2c] sm:$0xf]
        %v5163 = vld [vmem:[#allocation2 + $0x30] sm:$0xf]
        %v5164 = vld [vmem:[#allocation2 + $0x34] sm:$0x3]
        %v5165 = vld [vmem:[#allocation2 + $0x34] sm:$0x7]
        %v5166 = vld [vmem:[#allocation2 + $0x4] sm:$0x8]
        %v5179 = vunpack.c.l.b16 %v5135
        %v5180 = vunpack.c.l.b16 %v5136
        %v5181 = vunpack.c.l.b16 %v5137
        %v5182 = vunpack.c.l.b16 %v5138
        %v5183 = vunpack.c.l.b16 %v5139
        %v5184 = vunpack.c.l.b16 %v5140
        %v5185 = vunpack.c.l.b16 %v5141
        %v5186 = vunpack.c.l.b16 %v5142
        %v5187 = vunpack.c.l.b16 %v5143
        %v5188 = vunpack.c.l.b16 %v5144
        %v5189 = vunpack.c.l.b16 %v5145
        %v5190 = vunpack.c.l.b16 %v5146
        %v5191 = vpack.c.b16 %v5180, %v5179
        %v5192 = vpack.c.b16 %v5182, %v5181
        %v5193 = vpack.c.b16 %v5184, %v5183
        %v5194 = vpack.c.b16 %v5186, %v5185
        %v5195 = vpack.c.b16 %v5188, %v5187
        %v5196 = vpack.c.b16 %v5190, %v5189
        %v5204 = vunpack.c.l.b16 %v5147
        %v5205 = vpack.c.b16 %v5204, %v5204
        %v5207 = vshrl.u32 %v5191, 16
        %v5209 = vshll.u32 %v5191, 16
        %v5211 = vrot.slane %v5209, 1
        %v5212 = vor.u32 %v5207, %v5211
        %v5214 = vshll.u32 %v5192, 16
        %v5216 = vrot.slane %v5214, 1
        %v5217 = vsel %vm723, %v5212, %v5216
        %v5218 = vshrl.u32 %v5192, 16
        %v5220 = vor.u32 %v5218, %v5216
        %v5222 = vshll.u32 %v5193, 16
        %v5224 = vrot.slane %v5222, 1
        %v5225 = vsel %vm723, %v5220, %v5224
        %v5226 = vshrl.u32 %v5193, 16
        %v5228 = vor.u32 %v5226, %v5224
        %v5230 = vshll.u32 %v5194, 16
        %v5232 = vrot.slane %v5230, 1
        %v5233 = vsel %vm723, %v5228, %v5232
        %v5234 = vshrl.u32 %v5194, 16
        %v5236 = vor.u32 %v5234, %v5232
        %v5238 = vshll.u32 %v5195, 16
        %v5240 = vrot.slane %v5238, 1
        %v5241 = vsel %vm723, %v5236, %v5240
        %v5242 = vshrl.u32 %v5195, 16
        %v5244 = vor.u32 %v5242, %v5240
        %v5246 = vshll.u32 %v5196, 16
        %v5248 = vrot.slane %v5246, 1
        %v5249 = vsel %vm723, %v5244, %v5248
        %v5250 = vshrl.u32 %v5196, 16
        %v5252 = vor.u32 %v5250, %v5248
        %v5254 = vshll.u32 %v5205, 16
        %v5256 = vrot.slane %v5254, 1
        %v5257 = vsel %vm723, %v5252, %v5256
        %v5265 = vunpack.c.l.b16 %v5148
        %v5266 = vpack.c.b16 %v5180, %v5265
        %v5267 = vrot.slane %v5266, 1
        %v5268 = vrot.slane %v5192, 1
        %v5269 = vsel %vm785, %v5267, %v5268
        %v5270 = vrot.slane %v5193, 1
        %v5271 = vsel %vm785, %v5268, %v5270
        %v5272 = vrot.slane %v5194, 1
        %v5273 = vsel %vm785, %v5270, %v5272
        %v5274 = vrot.slane %v5195, 1
        %v5275 = vsel %vm785, %v5272, %v5274
        %v5276 = vrot.slane %v5196, 1
        %v5277 = vsel %vm785, %v5274, %v5276
        %v5278 = vrot.slane %v5205, 1
        %v5279 = vsel %vm785, %v5276, %v5278
        %v5288 = vunpack.c.l.b16 %v5149
        %v5289 = vunpack.c.l.b16 %v5150
        %v5290 = vpack.c.b16 %v5180, %v5288
        %v5291 = vpack.c.b16 %v5289, %v5289
        %v5292 = vrot.slane %v5290, 3
        %v5293 = vrot.slane %v5192, 3
        %v5294 = vsel %vm811, %v5292, %v5293
        %v5295 = vrot.slane %v5193, 3
        %v5296 = vsel %vm811, %v5293, %v5295
        %v5297 = vrot.slane %v5194, 3
        %v5298 = vsel %vm811, %v5295, %v5297
        %v5299 = vrot.slane %v5195, 3
        %v5300 = vsel %vm811, %v5297, %v5299
        %v5301 = vrot.slane %v5196, 3
        %v5302 = vsel %vm811, %v5299, %v5301
        %v5303 = vrot.slane %v5291, 3
        %v5304 = vsel %vm811, %v5301, %v5303
        %v5312 = vunpack.c.l.b16 %v5151
        %v5313 = vpack.c.b16 %v5312, %v5312
        %v5315 = vshrl.u32 %v5290, 16
        %v5317 = vrot.slane %v5315, 3
        %v5318 = vshll.u32 %v5290, 16
        %v5320 = vrot.slane %v5318, 4
        %v5321 = vor.u32 %v5317, %v5320
        %v5322 = vrot.slane %v5218, 3
        %v5323 = vrot.slane %v5214, 4
        %v5324 = vor.u32 %v5322, %v5323
        %v5325 = vsel %vm834, %v5321, %v5324
        %v5326 = vrot.slane %v5226, 3
        %v5327 = vrot.slane %v5222, 4
        %v5328 = vor.u32 %v5326, %v5327
        %v5329 = vsel %vm834, %v5324, %v5328
        %v5330 = vrot.slane %v5234, 3
        %v5331 = vrot.slane %v5230, 4
        %v5332 = vor.u32 %v5330, %v5331
        %v5333 = vsel %vm834, %v5328, %v5332
        %v5334 = vrot.slane %v5242, 3
        %v5335 = vrot.slane %v5238, 4
        %v5336 = vor.u32 %v5334, %v5335
        %v5337 = vsel %vm834, %v5332, %v5336
        %v5338 = vrot.slane %v5250, 3
        %v5339 = vrot.slane %v5246, 4
        %v5340 = vor.u32 %v5338, %v5339
        %v5341 = vsel %vm834, %v5336, %v5340
        %v5343 = vshrl.u32 %v5313, 16
        %v5345 = vrot.slane %v5343, 3
        %v5346 = vshll.u32 %v5313, 16
        %v5348 = vrot.slane %v5346, 4
        %v5349 = vor.u32 %v5345, %v5348
        %v5350 = vsel %vm834, %v5340, %v5349
        %v5357 = vpack.c.b16 %v5181, %v5180
        %v5358 = vpack.c.b16 %v5183, %v5182
        %v5359 = vpack.c.b16 %v5185, %v5184
        %v5360 = vpack.c.b16 %v5187, %v5186
        %v5361 = vpack.c.b16 %v5189, %v5188
        %v5362 = vpack.c.b16 %v5312, %v5190
        %v5382 = vunpack.c.l.b16 %v5152
        %v5383 = vunpack.c.l.b16 %v5153
        %v5384 = vunpack.c.l.b16 %v5154
        %v5385 = vunpack.c.l.b16 %v5155
        %v5386 = vunpack.c.l.b16 %v5156
        %v5387 = vunpack.c.l.b16 %v5157
        %v5388 = vunpack.c.l.b16 %v5158
        %v5389 = vunpack.c.l.b16 %v5159
        %v5390 = vunpack.c.l.b16 %v5160
        %v5391 = vunpack.c.l.b16 %v5161
        %v5392 = vunpack.c.l.b16 %v5162
        %v5393 = vunpack.c.l.b16 %v5163
        %v5394 = vunpack.c.l.b16 %v5164
        %v5395 = vpack.c.b16 %v5383, %v5382
        %v5396 = vpack.c.b16 %v5385, %v5384
        %v5397 = vpack.c.b16 %v5387, %v5386
        %v5398 = vpack.c.b16 %v5389, %v5388
        %v5399 = vpack.c.b16 %v5391, %v5390
        %v5400 = vpack.c.b16 %v5393, %v5392
        %v5401 = vpack.c.b16 %v5394, %v5394
        %v5402 = vrot.slane %v5395, 2
        %v5403 = vrot.slane %v5396, 2
        %v5404 = vsel %vm923, %v5402, %v5403
        %v5405 = vrot.slane %v5397, 2
        %v5406 = vsel %vm923, %v5403, %v5405
        %v5407 = vrot.slane %v5398, 2
        %v5408 = vsel %vm923, %v5405, %v5407
        %v5409 = vrot.slane %v5399, 2
        %v5410 = vsel %vm923, %v5407, %v5409
        %v5411 = vrot.slane %v5400, 2
        %v5412 = vsel %vm923, %v5409, %v5411
        %v5413 = vrot.slane %v5401, 2
        %v5414 = vsel %vm923, %v5411, %v5413
        %v5422 = vunpack.c.l.b16 %v5165
        %v5423 = vpack.c.b16 %v5422, %v5422
        %v5425 = vshrl.u32 %v5395, 16
        %v5427 = vrot.slane %v5425, 2
        %v5428 = vshll.u32 %v5395, 16
        %v5430 = vrot.slane %v5428, 3
        %v5431 = vor.u32 %v5427, %v5430
        %v5433 = vshrl.u32 %v5396, 16
        %v5435 = vrot.slane %v5433, 2
        %v5436 = vshll.u32 %v5396, 16
        %v5438 = vrot.slane %v5436, 3
        %v5439 = vor.u32 %v5435, %v5438
        %v5440 = vsel %vm946, %v5431, %v5439
        %v5442 = vshrl.u32 %v5397, 16
        %v5444 = vrot.slane %v5442, 2
        %v5445 = vshll.u32 %v5397, 16
        %v5447 = vrot.slane %v5445, 3
        %v5448 = vor.u32 %v5444, %v5447
        %v5449 = vsel %vm946, %v5439, %v5448
        %v5451 = vshrl.u32 %v5398, 16
        %v5453 = vrot.slane %v5451, 2
        %v5454 = vshll.u32 %v5398, 16
        %v5456 = vrot.slane %v5454, 3
        %v5457 = vor.u32 %v5453, %v5456
        %v5458 = vsel %vm946, %v5448, %v5457
        %v5460 = vshrl.u32 %v5399, 16
        %v5462 = vrot.slane %v5460, 2
        %v5463 = vshll.u32 %v5399, 16
        %v5465 = vrot.slane %v5463, 3
        %v5466 = vor.u32 %v5462, %v5465
        %v5467 = vsel %vm946, %v5457, %v5466
        %v5469 = vshrl.u32 %v5400, 16
        %v5471 = vrot.slane %v5469, 2
        %v5472 = vshll.u32 %v5400, 16
        %v5474 = vrot.slane %v5472, 3
        %v5475 = vor.u32 %v5471, %v5474
        %v5476 = vsel %vm946, %v5466, %v5475
        %v5478 = vshrl.u32 %v5423, 16
        %v5480 = vrot.slane %v5478, 2
        %v5481 = vshll.u32 %v5423, 16
        %v5483 = vrot.slane %v5481, 3
        %v5484 = vor.u32 %v5480, %v5483
        %v5485 = vsel %vm946, %v5475, %v5484
        %v5493 = vunpack.c.l.b16 %v5166
        %v5494 = vpack.c.b16 %v5383, %v5493
        %v5495 = vrot.slane %v5494, 3
        %v5496 = vrot.slane %v5396, 3
        %v5497 = vsel %vm811, %v5495, %v5496
        %v5498 = vrot.slane %v5397, 3
        %v5499 = vsel %vm811, %v5496, %v5498
        %v5500 = vrot.slane %v5398, 3
        %v5501 = vsel %vm811, %v5498, %v5500
        %v5502 = vrot.slane %v5399, 3
        %v5503 = vsel %vm811, %v5500, %v5502
        %v5504 = vrot.slane %v5400, 3
        %v5505 = vsel %vm811, %v5502, %v5504
        %v5506 = vrot.slane %v5423, 3
        %v5507 = vsel %vm811, %v5504, %v5506
        %s5514 = scalar_lea.vmem [#allocation3], 1728
        %v5515 = vld [vmem:[%s5514] sm:$0xf]
        %v5516 = vld [vmem:[%s5514 + $0x4] sm:$0xf]
        %v5517 = vld [vmem:[%s5514 + $0x8] sm:$0xf]
        %v5518 = vld [vmem:[%s5514 + $0xc] sm:$0xf]
        %v5519 = vld [vmem:[%s5514 + $0x10] sm:$0xf]
        %v5520 = vld [vmem:[%s5514 + $0x14] sm:$0xf]
        %v5521 = vld [vmem:[%s5514 + $0x18] sm:$0xf]
        %v5522 = vld [vmem:[%s5514 + $0x1c] sm:$0xf]
        %v5523 = vld [vmem:[%s5514 + $0x20] sm:$0xf]
        %v5524 = vld [vmem:[%s5514 + $0x24] sm:$0xf]
        %v5525 = vld [vmem:[%s5514 + $0x28] sm:$0xf]
        %v5526 = vld [vmem:[%s5514 + $0x2c] sm:$0xf]
        %v5527 = vld [vmem:[%s5514 + $0x30] sm:$0xf]
        %v5528 = vld [vmem:[%s5514 + $0x34] sm:$0xf]
        %v5529 = vld [vmem:[%s5514 + $0x38] sm:$0xf]
        %v5530 = vld [vmem:[%s5514 + $0x3c] sm:$0xf]
        %v5531 = vld [vmem:[%s5514 + $0x40] sm:$0xf]
        %v5532 = vld [vmem:[%s5514 + $0x44] sm:$0xf]
        %v5533 = vld [vmem:[%s5514 + $0x48] sm:$0xf]
        %v5534 = vld [vmem:[%s5514 + $0x4c] sm:$0xf]
        %v5535 = vld [vmem:[%s5514 + $0x50] sm:$0xf]
        %v5536 = vld [vmem:[%s5514 + $0x54] sm:$0xf]
        %v5537 = vld [vmem:[%s5514 + $0x58] sm:$0xf]
        %v5538 = vld [vmem:[%s5514 + $0x5c] sm:$0xf]
        %v5539 = vld [vmem:[%s5514 + $0x60] sm:$0xf]
        %v5540 = vld [vmem:[%s5514 + $0x64] sm:$0xf]
        %v5541 = vld [vmem:[%s5514 + $0x68] sm:$0xf]
        %v5542 = vld [vmem:[%s5514 + $0x6c] sm:$0xf]
        %v5543 = vld [vmem:[%s5514 + $0x70] sm:$0xf]
        %v5544 = vld [vmem:[%s5514 + $0x74] sm:$0xf]
        %v5545 = vld [vmem:[%s5514 + $0x78] sm:$0xf]
        %v5546 = vld [vmem:[%s5514 + $0x7c] sm:$0xf]
        %v5547 = vld [vmem:[%s5514 + $0x80] sm:$0xf]
        %v5548 = vld [vmem:[%s5514 + $0x84] sm:$0xf]
        %v5549 = vld [vmem:[%s5514 + $0x88] sm:$0xf]
        %v5550 = vld [vmem:[%s5514 + $0x8c] sm:$0xf]
        %v5551 = vld [vmem:[%s5514 + $0x90] sm:$0xf]
        %v5552 = vld [vmem:[%s5514 + $0x94] sm:$0xf]
        %v5553 = vld [vmem:[%s5514 + $0x98] sm:$0xf]
        %v5554 = vld [vmem:[%s5514 + $0x9c] sm:$0xf]
        %v5555 = vld [vmem:[%s5514 + $0xa0] sm:$0xf]
        %v5556 = vld [vmem:[%s5514 + $0xa4] sm:$0xf]
        %v5557 = vld [vmem:[%s5514 + $0xa8] sm:$0xf]
        %v5558 = vld [vmem:[%s5514 + $0xac] sm:$0xf]
        %v5559 = vld [vmem:[%s5514 + $0xb0] sm:$0xf]
        %v5560 = vld [vmem:[%s5514 + $0xb4] sm:$0xf]
        %v5561 = vld [vmem:[%s5514 + $0xb8] sm:$0xf]
        %v5562 = vld [vmem:[%s5514 + $0xbc] sm:$0xf]
        %v5563 = vld [vmem:[%s5514 + $0xc0] sm:$0xf]
        %v5564 = vld [vmem:[%s5514 + $0xc4] sm:$0xf]
        %v5565 = vld [vmem:[%s5514 + $0xc8] sm:$0xf]
        %v5566 = vld [vmem:[%s5514 + $0xcc] sm:$0xf]
        %v5567 = vld [vmem:[%s5514 + $0xd0] sm:$0xf]
        %v5568 = vld [vmem:[%s5514 + $0xd4] sm:$0xf]
        %v5569 = vld [vmem:[%s5514 + $0xd8] sm:$0xf]
        %v5570 = vld [vmem:[%s5514 + $0xdc] sm:$0xf]
        %v5571 = vld [vmem:[%s5514 + $0xe0] sm:$0xf]
        %v5572 = vld [vmem:[%s5514 + $0xe4] sm:$0xf]
        %v5573 = vld [vmem:[%s5514 + $0xe8] sm:$0xf]
        %v5574 = vld [vmem:[%s5514 + $0xec] sm:$0xf]
        %v5575 = vld [vmem:[%s5514 + $0xf0] sm:$0xf]
        %v5576 = vld [vmem:[%s5514 + $0xf4] sm:$0xf]
        %v5577 = vld [vmem:[%s5514 + $0xf8] sm:$0xf]
        %v5578 = vld [vmem:[%s5514 + $0xfc] sm:$0xf]
        %v5579 = vld [vmem:[%s5514 + $0x100] sm:$0xf]
        %v5580 = vld [vmem:[%s5514 + $0x104] sm:$0xf]
        %v5581 = vld [vmem:[%s5514 + $0x108] sm:$0xf]
        %v5582 = vld [vmem:[%s5514 + $0x10c] sm:$0xf]
        %v5583 = vld [vmem:[%s5514 + $0x110] sm:$0xf]
        %v5584 = vld [vmem:[%s5514 + $0x114] sm:$0xf]
        %v5585 = vld [vmem:[%s5514 + $0x118] sm:$0xf]
        %v5586 = vld [vmem:[%s5514 + $0x11c] sm:$0xf]
        %v5587 = vld [vmem:[%s5514 + $0x120] sm:$0xf]
        %v5588 = vld [vmem:[%s5514 + $0x124] sm:$0xf]
        %v5589 = vld [vmem:[%s5514 + $0x128] sm:$0xf]
        %v5590 = vld [vmem:[%s5514 + $0x12c] sm:$0xf]
        %v5591 = vld [vmem:[%s5514 + $0x130] sm:$0xf]
        %v5592 = vld [vmem:[%s5514 + $0x134] sm:$0xf]
        %v5593 = vld [vmem:[%s5514 + $0x138] sm:$0xf]
        %v5594 = vld [vmem:[%s5514 + $0x13c] sm:$0xf]
        %v5595 = vld [vmem:[%s5514 + $0x140] sm:$0xf]
        %v5596 = vld [vmem:[%s5514 + $0x144] sm:$0xf]
        %v5597 = vld [vmem:[%s5514 + $0x148] sm:$0xf]
        %v5598 = vld [vmem:[%s5514 + $0x14c] sm:$0xf]
        %v5599 = vld [vmem:[%s5514 + $0x150] sm:$0xf]
        %v5600 = vld [vmem:[%s5514 + $0x154] sm:$0xf]
        %v5601 = vld [vmem:[%s5514 + $0x158] sm:$0xf]
        %v5602 = vld [vmem:[%s5514 + $0x15c] sm:$0xf]
        %v5603 = vld [vmem:[%s5514 + $0x160] sm:$0xf]
        %v5604 = vld [vmem:[%s5514 + $0x164] sm:$0xf]
        %v5605 = vld [vmem:[%s5514 + $0x168] sm:$0xf]
        %v5606 = vld [vmem:[%s5514 + $0x16c] sm:$0xf]
        %v5607 = vld [vmem:[%s5514 + $0x170] sm:$0xf]
        %v5608 = vld [vmem:[%s5514 + $0x174] sm:$0xf]
        %v5609 = vld [vmem:[%s5514 + $0x178] sm:$0xf]
        %v5610 = vld [vmem:[%s5514 + $0x17c] sm:$0xf]
        %v5611 = vld [vmem:[%s5514 + $0x180] sm:$0xf]
        %v5612 = vld [vmem:[%s5514 + $0x184] sm:$0xf]
        %v5613 = vld [vmem:[%s5514 + $0x188] sm:$0xf]
        %v5614 = vld [vmem:[%s5514 + $0x18c] sm:$0xf]
        %v5615 = vld [vmem:[%s5514 + $0x190] sm:$0xf]
        %v5616 = vld [vmem:[%s5514 + $0x194] sm:$0xf]
        %v5617 = vld [vmem:[%s5514 + $0x198] sm:$0xf]
        %v5618 = vld [vmem:[%s5514 + $0x19c] sm:$0xf]
        %v5619 = vld [vmem:[%s5514 + $0x1a0] sm:$0xf]
        %v5620 = vld [vmem:[%s5514 + $0x1a4] sm:$0xf]
        %v5621 = vld [vmem:[%s5514 + $0x1a8] sm:$0xf]
        %v5622 = vld [vmem:[%s5514 + $0x1ac] sm:$0xf]
        %v5623 = vld [vmem:[%s5514 + $0x1b0] sm:$0xf]
        %v5624 = vld [vmem:[%s5514 + $0x1b4] sm:$0xf]
        %v5625 = vld [vmem:[%s5514 + $0x1b8] sm:$0xf]
        %v5626 = vld [vmem:[%s5514 + $0x1bc] sm:$0xf]
        %v5627 = vld [vmem:[%s5514 + $0x1c0] sm:$0xf]
        %v5628 = vld [vmem:[%s5514 + $0x1c4] sm:$0xf]
        %v5629 = vld [vmem:[%s5514 + $0x1c8] sm:$0xf]
        %v5630 = vld [vmem:[%s5514 + $0x1cc] sm:$0xf]
        %v5631 = vld [vmem:[%s5514 + $0x1d0] sm:$0xf]
        %v5632 = vld [vmem:[%s5514 + $0x1d4] sm:$0xf]
        %v5633 = vld [vmem:[%s5514 + $0x1d8] sm:$0xf]
        %v5634 = vld [vmem:[%s5514 + $0x1dc] sm:$0xf]
        %v5635 = vld [vmem:[%s5514 + $0x1e0] sm:$0xf]
        %v5636 = vld [vmem:[%s5514 + $0x1e4] sm:$0xf]
        %v5637 = vld [vmem:[%s5514 + $0x1e8] sm:$0xf]
        %v5638 = vld [vmem:[%s5514 + $0x1ec] sm:$0xf]
        %v5639 = vld [vmem:[%s5514 + $0x1f0] sm:$0xf]
        %v5640 = vld [vmem:[%s5514 + $0x1f4] sm:$0xf]
        %v5641 = vld [vmem:[%s5514 + $0x1f8] sm:$0xf]
        %v5642 = vld [vmem:[%s5514 + $0x1fc] sm:$0xf]
        %v5643 = vld [vmem:[%s5514 + $0x200] sm:$0xf]
        %v5644 = vld [vmem:[%s5514 + $0x204] sm:$0xf]
        %v5645 = vld [vmem:[%s5514 + $0x208] sm:$0xf]
        %v5646 = vld [vmem:[%s5514 + $0x20c] sm:$0xf]
        %v5647 = vld [vmem:[%s5514 + $0x210] sm:$0xf]
        %v5648 = vld [vmem:[%s5514 + $0x214] sm:$0xf]
        %v5649 = vld [vmem:[%s5514 + $0x218] sm:$0xf]
        %v5650 = vld [vmem:[%s5514 + $0x21c] sm:$0xf]
        %v5651 = vld [vmem:[%s5514 + $0x220] sm:$0xf]
        %v5652 = vld [vmem:[%s5514 + $0x224] sm:$0xf]
        %v5653 = vld [vmem:[%s5514 + $0x228] sm:$0xf]
        %v5654 = vld [vmem:[%s5514 + $0x22c] sm:$0xf]
        %v5655 = vld [vmem:[%s5514 + $0x230] sm:$0xf]
        %v5656 = vld [vmem:[%s5514 + $0x234] sm:$0xf]
        %v5657 = vld [vmem:[%s5514 + $0x238] sm:$0xf]
        %v5658 = vld [vmem:[%s5514 + $0x23c] sm:$0xf]
        %s5659 = scalar_lea.vmem [#allocation5], 3
        %v5660 = vld [vmem:[%s5659] sm:$0x1]
        %v5662 = vperm.slane %v5660, 0
        %v5808 = vunpack.c.l.b16 %v5515
        %v5809 = vunpack.c.l.b16 %v5516
        %v5810 = vunpack.c.l.b16 %v5517
        %v5811 = vunpack.c.l.b16 %v5518
        %v5812 = vunpack.c.l.b16 %v5519
        %v5813 = vunpack.c.l.b16 %v5520
        %v5814 = vunpack.c.l.b16 %v5521
        %v5815 = vunpack.c.l.b16 %v5522
        %v5816 = vunpack.c.l.b16 %v5523
        %v5817 = vunpack.c.l.b16 %v5524
        %v5818 = vunpack.c.l.b16 %v5525
        %v5819 = vunpack.c.l.b16 %v5526
        %v5820 = vunpack.c.l.b16 %v5527
        %v5821 = vunpack.c.l.b16 %v5528
        %v5822 = vunpack.c.l.b16 %v5529
        %v5823 = vunpack.c.l.b16 %v5530
        %v5824 = vunpack.c.l.b16 %v5531
        %v5825 = vunpack.c.l.b16 %v5532
        %v5826 = vunpack.c.l.b16 %v5533
        %v5827 = vunpack.c.l.b16 %v5534
        %v5828 = vunpack.c.l.b16 %v5535
        %v5829 = vunpack.c.l.b16 %v5536
        %v5830 = vunpack.c.l.b16 %v5537
        %v5831 = vunpack.c.l.b16 %v5538
        %v5832 = vunpack.c.l.b16 %v5539
        %v5833 = vunpack.c.l.b16 %v5540
        %v5834 = vunpack.c.l.b16 %v5541
        %v5835 = vunpack.c.l.b16 %v5542
        %v5836 = vunpack.c.l.b16 %v5543
        %v5837 = vunpack.c.l.b16 %v5544
        %v5838 = vunpack.c.l.b16 %v5545
        %v5839 = vunpack.c.l.b16 %v5546
        %v5840 = vunpack.c.l.b16 %v5547
        %v5841 = vunpack.c.l.b16 %v5548
        %v5842 = vunpack.c.l.b16 %v5549
        %v5843 = vunpack.c.l.b16 %v5550
        %v5844 = vunpack.c.l.b16 %v5551
        %v5845 = vunpack.c.l.b16 %v5552
        %v5846 = vunpack.c.l.b16 %v5553
        %v5847 = vunpack.c.l.b16 %v5554
        %v5848 = vunpack.c.l.b16 %v5555
        %v5849 = vunpack.c.l.b16 %v5556
        %v5850 = vunpack.c.l.b16 %v5557
        %v5851 = vunpack.c.l.b16 %v5558
        %v5852 = vunpack.c.l.b16 %v5559
        %v5853 = vunpack.c.l.b16 %v5560
        %v5854 = vunpack.c.l.b16 %v5561
        %v5855 = vunpack.c.l.b16 %v5562
        %v5856 = vunpack.c.l.b16 %v5563
        %v5857 = vunpack.c.l.b16 %v5564
        %v5858 = vunpack.c.l.b16 %v5565
        %v5859 = vunpack.c.l.b16 %v5566
        %v5860 = vunpack.c.l.b16 %v5567
        %v5861 = vunpack.c.l.b16 %v5568
        %v5862 = vunpack.c.l.b16 %v5569
        %v5863 = vunpack.c.l.b16 %v5570
        %v5864 = vunpack.c.l.b16 %v5571
        %v5865 = vunpack.c.l.b16 %v5572
        %v5866 = vunpack.c.l.b16 %v5573
        %v5867 = vunpack.c.l.b16 %v5574
        %v5868 = vunpack.c.l.b16 %v5575
        %v5869 = vunpack.c.l.b16 %v5576
        %v5870 = vunpack.c.l.b16 %v5577
        %v5871 = vunpack.c.l.b16 %v5578
        %v5872 = vunpack.c.l.b16 %v5579
        %v5873 = vunpack.c.l.b16 %v5580
        %v5874 = vunpack.c.l.b16 %v5581
        %v5875 = vunpack.c.l.b16 %v5582
        %v5876 = vunpack.c.l.b16 %v5583
        %v5877 = vunpack.c.l.b16 %v5584
        %v5878 = vunpack.c.l.b16 %v5585
        %v5879 = vunpack.c.l.b16 %v5586
        %v5880 = vunpack.c.l.b16 %v5587
        %v5881 = vunpack.c.l.b16 %v5588
        %v5882 = vunpack.c.l.b16 %v5589
        %v5883 = vunpack.c.l.b16 %v5590
        %v5884 = vunpack.c.l.b16 %v5591
        %v5885 = vunpack.c.l.b16 %v5592
        %v5886 = vunpack.c.l.b16 %v5593
        %v5887 = vunpack.c.l.b16 %v5594
        %v5888 = vunpack.c.l.b16 %v5595
        %v5889 = vunpack.c.l.b16 %v5596
        %v5890 = vunpack.c.l.b16 %v5597
        %v5891 = vunpack.c.l.b16 %v5598
        %v5892 = vunpack.c.l.b16 %v5599
        %v5893 = vunpack.c.l.b16 %v5600
        %v5894 = vunpack.c.l.b16 %v5601
        %v5895 = vunpack.c.l.b16 %v5602
        %v5896 = vunpack.c.l.b16 %v5603
        %v5897 = vunpack.c.l.b16 %v5604
        %v5898 = vunpack.c.l.b16 %v5605
        %v5899 = vunpack.c.l.b16 %v5606
        %v5900 = vunpack.c.l.b16 %v5607
        %v5901 = vunpack.c.l.b16 %v5608
        %v5902 = vunpack.c.l.b16 %v5609
        %v5903 = vunpack.c.l.b16 %v5610
        %v5904 = vunpack.c.l.b16 %v5611
        %v5905 = vunpack.c.l.b16 %v5612
        %v5906 = vunpack.c.l.b16 %v5613
        %v5907 = vunpack.c.l.b16 %v5614
        %v5908 = vunpack.c.l.b16 %v5615
        %v5909 = vunpack.c.l.b16 %v5616
        %v5910 = vunpack.c.l.b16 %v5617
        %v5911 = vunpack.c.l.b16 %v5618
        %v5912 = vunpack.c.l.b16 %v5619
        %v5913 = vunpack.c.l.b16 %v5620
        %v5914 = vunpack.c.l.b16 %v5621
        %v5915 = vunpack.c.l.b16 %v5622
        %v5916 = vunpack.c.l.b16 %v5623
        %v5917 = vunpack.c.l.b16 %v5624
        %v5918 = vunpack.c.l.b16 %v5625
        %v5919 = vunpack.c.l.b16 %v5626
        %v5920 = vunpack.c.l.b16 %v5627
        %v5921 = vunpack.c.l.b16 %v5628
        %v5922 = vunpack.c.l.b16 %v5629
        %v5923 = vunpack.c.l.b16 %v5630
        %v5924 = vunpack.c.l.b16 %v5631
        %v5925 = vunpack.c.l.b16 %v5632
        %v5926 = vunpack.c.l.b16 %v5633
        %v5927 = vunpack.c.l.b16 %v5634
        %v5928 = vunpack.c.l.b16 %v5635
        %v5929 = vunpack.c.l.b16 %v5636
        %v5930 = vunpack.c.l.b16 %v5637
        %v5931 = vunpack.c.l.b16 %v5638
        %v5932 = vunpack.c.l.b16 %v5639
        %v5933 = vunpack.c.l.b16 %v5640
        %v5934 = vunpack.c.l.b16 %v5641
        %v5935 = vunpack.c.l.b16 %v5642
        %v5936 = vunpack.c.l.b16 %v5643
        %v5937 = vunpack.c.l.b16 %v5644
        %v5938 = vunpack.c.l.b16 %v5645
        %v5939 = vunpack.c.l.b16 %v5646
        %v5940 = vunpack.c.l.b16 %v5647
        %v5941 = vunpack.c.l.b16 %v5648
        %v5942 = vunpack.c.l.b16 %v5649
        %v5943 = vunpack.c.l.b16 %v5650
        %v5944 = vunpack.c.l.b16 %v5651
        %v5945 = vunpack.c.l.b16 %v5652
        %v5946 = vunpack.c.l.b16 %v5653
        %v5947 = vunpack.c.l.b16 %v5654
        %v5948 = vunpack.c.l.b16 %v5655
        %v5949 = vunpack.c.l.b16 %v5656
        %v5950 = vunpack.c.l.b16 %v5657
        %v5951 = vunpack.c.l.b16 %v5658
        %v5952 = vpack.c.b16 %v5809, %v5808
        %v5953 = vpack.c.b16 %v5811, %v5810
        %v5954 = vpack.c.b16 %v5813, %v5812
        %v5955 = vpack.c.b16 %v5815, %v5814
        %v5956 = vpack.c.b16 %v5817, %v5816
        %v5957 = vpack.c.b16 %v5819, %v5818
        %v5958 = vpack.c.b16 %v5821, %v5820
        %v5959 = vpack.c.b16 %v5823, %v5822
        %v5960 = vpack.c.b16 %v5825, %v5824
        %v5961 = vpack.c.b16 %v5827, %v5826
        %v5962 = vpack.c.b16 %v5829, %v5828
        %v5963 = vpack.c.b16 %v5831, %v5830
        %v5964 = vpack.c.b16 %v5833, %v5832
        %v5965 = vpack.c.b16 %v5835, %v5834
        %v5966 = vpack.c.b16 %v5837, %v5836
        %v5967 = vpack.c.b16 %v5839, %v5838
        %v5968 = vpack.c.b16 %v5841, %v5840
        %v5969 = vpack.c.b16 %v5843, %v5842
        %v5970 = vpack.c.b16 %v5845, %v5844
        %v5971 = vpack.c.b16 %v5847, %v5846
        %v5972 = vpack.c.b16 %v5849, %v5848
        %v5973 = vpack.c.b16 %v5851, %v5850
        %v5974 = vpack.c.b16 %v5853, %v5852
        %v5975 = vpack.c.b16 %v5855, %v5854
        %v5976 = vpack.c.b16 %v5857, %v5856
        %v5977 = vpack.c.b16 %v5859, %v5858
        %v5978 = vpack.c.b16 %v5861, %v5860
        %v5979 = vpack.c.b16 %v5863, %v5862
        %v5980 = vpack.c.b16 %v5865, %v5864
        %v5981 = vpack.c.b16 %v5867, %v5866
        %v5982 = vpack.c.b16 %v5869, %v5868
        %v5983 = vpack.c.b16 %v5871, %v5870
        %v5984 = vpack.c.b16 %v5873, %v5872
        %v5985 = vpack.c.b16 %v5875, %v5874
        %v5986 = vpack.c.b16 %v5877, %v5876
        %v5987 = vpack.c.b16 %v5879, %v5878
        %v5988 = vpack.c.b16 %v5881, %v5880
        %v5989 = vpack.c.b16 %v5883, %v5882
        %v5990 = vpack.c.b16 %v5885, %v5884
        %v5991 = vpack.c.b16 %v5887, %v5886
        %v5992 = vpack.c.b16 %v5889, %v5888
        %v5993 = vpack.c.b16 %v5891, %v5890
        %v5994 = vpack.c.b16 %v5893, %v5892
        %v5995 = vpack.c.b16 %v5895, %v5894
        %v5996 = vpack.c.b16 %v5897, %v5896
        %v5997 = vpack.c.b16 %v5899, %v5898
        %v5998 = vpack.c.b16 %v5901, %v5900
        %v5999 = vpack.c.b16 %v5903, %v5902
        %v6000 = vpack.c.b16 %v5905, %v5904
        %v6001 = vpack.c.b16 %v5907, %v5906
        %v6002 = vpack.c.b16 %v5909, %v5908
        %v6003 = vpack.c.b16 %v5911, %v5910
        %v6004 = vpack.c.b16 %v5913, %v5912
        %v6005 = vpack.c.b16 %v5915, %v5914
        %v6006 = vpack.c.b16 %v5917, %v5916
        %v6007 = vpack.c.b16 %v5919, %v5918
        %v6008 = vpack.c.b16 %v5921, %v5920
        %v6009 = vpack.c.b16 %v5923, %v5922
        %v6010 = vpack.c.b16 %v5925, %v5924
        %v6011 = vpack.c.b16 %v5927, %v5926
        %v6012 = vpack.c.b16 %v5929, %v5928
        %v6013 = vpack.c.b16 %v5931, %v5930
        %v6014 = vpack.c.b16 %v5933, %v5932
        %v6015 = vpack.c.b16 %v5935, %v5934
        %v6016 = vpack.c.b16 %v5937, %v5936
        %v6017 = vpack.c.b16 %v5939, %v5938
        %v6018 = vpack.c.b16 %v5941, %v5940
        %v6019 = vpack.c.b16 %v5943, %v5942
        %v6020 = vpack.c.b16 %v5945, %v5944
        %v6021 = vpack.c.b16 %v5947, %v5946
        %v6022 = vpack.c.b16 %v5949, %v5948
        %v6023 = vpack.c.b16 %v5951, %v5950
        %6096 = vmatpush.bf16.msra.mxu0 %v5959
        %6097 = vmatpush.bf16.msra.mxu0 %v5958
        %6098 = vmatpush.bf16.msra.mxu0 %v5957
        %6099 = vmatpush.bf16.msra.mxu0 %v5956
        %6100 = vmatpush.bf16.msra.mxu0 %v5955
        %6101 = vmatpush.bf16.msra.mxu0 %v5954
        %6102 = vmatpush.bf16.msra.mxu0 %v5953
        %6103 = vmatpush.bf16.msra.mxu0 %v5952
        %6104 = vmatmul.bf16.gmra.mxu0 %v5191
        %v6105 = vpop.f32.mrf.mxu0
        %v6106 = vadd.f32 %v5662, %v6105
        %v6107 = vpop.f32.mrf.mxu0
        %v6108 = vadd.f32 %v5662, %v6107
        %6109 = vmatmul.bf16.gmra.mxu0 %v5192
        %v6110 = vpop.f32.mrf.mxu0
        %v6111 = vadd.f32 %v5662, %v6110
        %v6112 = vpop.f32.mrf.mxu0
        %v6113 = vadd.f32 %v5662, %v6112
        %6114 = vmatmul.bf16.gmra.mxu0 %v5193
        %v6115 = vpop.f32.mrf.mxu0
        %v6116 = vadd.f32 %v5662, %v6115
        %v6117 = vpop.f32.mrf.mxu0
        %v6118 = vadd.f32 %v5662, %v6117
        %6119 = vmatmul.bf16.gmra.mxu0 %v5194
        %v6120 = vpop.f32.mrf.mxu0
        %v6121 = vadd.f32 %v5662, %v6120
        %v6122 = vpop.f32.mrf.mxu0
        %v6123 = vadd.f32 %v5662, %v6122
        %6124 = vmatmul.bf16.gmra.mxu0 %v5195
        %v6125 = vpop.f32.mrf.mxu0
        %v6126 = vadd.f32 %v5662, %v6125
        %v6127 = vpop.f32.mrf.mxu0
        %v6128 = vadd.f32 %v5662, %v6127
        %6129 = vmatmul.bf16.gmra.mxu0 %v5196
        %v6130 = vpop.f32.mrf.mxu0
        %v6131 = vadd.f32 %v5662, %v6130
        %v6132 = vpop.f32.mrf.mxu0
        %v6133 = vadd.f32 %v5662, %v6132
        %6134 = vdwg.mxu0
        %6135 = vmatpush.bf16.msra.mxu0 %v5967
        %6136 = vmatpush.bf16.msra.mxu0 %v5966
        %6137 = vmatpush.bf16.msra.mxu0 %v5965
        %6138 = vmatpush.bf16.msra.mxu0 %v5964
        %6139 = vmatpush.bf16.msra.mxu0 %v5963
        %6140 = vmatpush.bf16.msra.mxu0 %v5962
        %6141 = vmatpush.bf16.msra.mxu0 %v5961
        %6142 = vmatpush.bf16.msra.mxu0 %v5960
        %6143 = vmatmul.bf16.gmra.mxu0 %v5217
        %v6144 = vpop.f32.mrf.mxu0
        %v6145 = vadd.f32 %v6106, %v6144
        %v6146 = vpop.f32.mrf.mxu0
        %v6147 = vadd.f32 %v6108, %v6146
        %6148 = vmatmul.bf16.gmra.mxu0 %v5225
        %v6149 = vpop.f32.mrf.mxu0
        %v6150 = vadd.f32 %v6111, %v6149
        %v6151 = vpop.f32.mrf.mxu0
        %v6152 = vadd.f32 %v6113, %v6151
        %6153 = vmatmul.bf16.gmra.mxu0 %v5233
        %v6154 = vpop.f32.mrf.mxu0
        %v6155 = vadd.f32 %v6116, %v6154
        %v6156 = vpop.f32.mrf.mxu0
        %v6157 = vadd.f32 %v6118, %v6156
        %6158 = vmatmul.bf16.gmra.mxu0 %v5241
        %v6159 = vpop.f32.mrf.mxu0
        %v6160 = vadd.f32 %v6121, %v6159
        %v6161 = vpop.f32.mrf.mxu0
        %v6162 = vadd.f32 %v6123, %v6161
        %6163 = vmatmul.bf16.gmra.mxu0 %v5249
        %v6164 = vpop.f32.mrf.mxu0
        %v6165 = vadd.f32 %v6126, %v6164
        %v6166 = vpop.f32.mrf.mxu0
        %v6167 = vadd.f32 %v6128, %v6166
        %6168 = vmatmul.bf16.gmra.mxu0 %v5257
        %v6169 = vpop.f32.mrf.mxu0
        %v6170 = vadd.f32 %v6131, %v6169
        %v6171 = vpop.f32.mrf.mxu0
        %v6172 = vadd.f32 %v6133, %v6171
        %6173 = vdwg.mxu0
        %6174 = vmatpush.bf16.msra.mxu0 %v5975
        %6175 = vmatpush.bf16.msra.mxu0 %v5974
        %6176 = vmatpush.bf16.msra.mxu0 %v5973
        %6177 = vmatpush.bf16.msra.mxu0 %v5972
        %6178 = vmatpush.bf16.msra.mxu0 %v5971
        %6179 = vmatpush.bf16.msra.mxu0 %v5970
        %6180 = vmatpush.bf16.msra.mxu0 %v5969
        %6181 = vmatpush.bf16.msra.mxu0 %v5968
        %6182 = vmatmul.bf16.gmra.mxu0 %v5269
        %v6183 = vpop.f32.mrf.mxu0
        %v6184 = vadd.f32 %v6145, %v6183
        %v6185 = vpop.f32.mrf.mxu0
        %v6186 = vadd.f32 %v6147, %v6185
        %6187 = vmatmul.bf16.gmra.mxu0 %v5271
        %v6188 = vpop.f32.mrf.mxu0
        %v6189 = vadd.f32 %v6150, %v6188
        %v6190 = vpop.f32.mrf.mxu0
        %v6191 = vadd.f32 %v6152, %v6190
        %6192 = vmatmul.bf16.gmra.mxu0 %v5273
        %v6193 = vpop.f32.mrf.mxu0
        %v6194 = vadd.f32 %v6155, %v6193
        %v6195 = vpop.f32.mrf.mxu0
        %v6196 = vadd.f32 %v6157, %v6195
        %6197 = vmatmul.bf16.gmra.mxu0 %v5275
        %v6198 = vpop.f32.mrf.mxu0
        %v6199 = vadd.f32 %v6160, %v6198
        %v6200 = vpop.f32.mrf.mxu0
        %v6201 = vadd.f32 %v6162, %v6200
        %6202 = vmatmul.bf16.gmra.mxu0 %v5277
        %v6203 = vpop.f32.mrf.mxu0
        %v6204 = vadd.f32 %v6165, %v6203
        %v6205 = vpop.f32.mrf.mxu0
        %v6206 = vadd.f32 %v6167, %v6205
        %6207 = vmatmul.bf16.gmra.mxu0 %v5279
        %v6208 = vpop.f32.mrf.mxu0
        %v6209 = vadd.f32 %v6170, %v6208
        %v6210 = vpop.f32.mrf.mxu0
        %v6211 = vadd.f32 %v6172, %v6210
        %6212 = vdwg.mxu0
        %6213 = vmatpush.bf16.msra.mxu0 %v5983
        %6214 = vmatpush.bf16.msra.mxu0 %v5982
        %6215 = vmatpush.bf16.msra.mxu0 %v5981
        %6216 = vmatpush.bf16.msra.mxu0 %v5980
        %6217 = vmatpush.bf16.msra.mxu0 %v5979
        %6218 = vmatpush.bf16.msra.mxu0 %v5978
        %6219 = vmatpush.bf16.msra.mxu0 %v5977
        %6220 = vmatpush.bf16.msra.mxu0 %v5976
        %6221 = vmatmul.bf16.gmra.mxu0 %v5294
        %v6222 = vpop.f32.mrf.mxu0
        %v6223 = vadd.f32 %v6184, %v6222
        %v6224 = vpop.f32.mrf.mxu0
        %v6225 = vadd.f32 %v6186, %v6224
        %6226 = vmatmul.bf16.gmra.mxu0 %v5296
        %v6227 = vpop.f32.mrf.mxu0
        %v6228 = vadd.f32 %v6189, %v6227
        %v6229 = vpop.f32.mrf.mxu0
        %v6230 = vadd.f32 %v6191, %v6229
        %6231 = vmatmul.bf16.gmra.mxu0 %v5298
        %v6232 = vpop.f32.mrf.mxu0
        %v6233 = vadd.f32 %v6194, %v6232
        %v6234 = vpop.f32.mrf.mxu0
        %v6235 = vadd.f32 %v6196, %v6234
        %6236 = vmatmul.bf16.gmra.mxu0 %v5300
        %v6237 = vpop.f32.mrf.mxu0
        %v6238 = vadd.f32 %v6199, %v6237
        %v6239 = vpop.f32.mrf.mxu0
        %v6240 = vadd.f32 %v6201, %v6239
        %6241 = vmatmul.bf16.gmra.mxu0 %v5302
        %v6242 = vpop.f32.mrf.mxu0
        %v6243 = vadd.f32 %v6204, %v6242
        %v6244 = vpop.f32.mrf.mxu0
        %v6245 = vadd.f32 %v6206, %v6244
        %6246 = vmatmul.bf16.gmra.mxu0 %v5304
        %v6247 = vpop.f32.mrf.mxu0
        %v6248 = vadd.f32 %v6209, %v6247
        %v6249 = vpop.f32.mrf.mxu0
        %v6250 = vadd.f32 %v6211, %v6249
        %6251 = vdwg.mxu0
        %6252 = vmatpush.bf16.msra.mxu0 %v5991
        %6253 = vmatpush.bf16.msra.mxu0 %v5990
        %6254 = vmatpush.bf16.msra.mxu0 %v5989
        %6255 = vmatpush.bf16.msra.mxu0 %v5988
        %6256 = vmatpush.bf16.msra.mxu0 %v5987
        %6257 = vmatpush.bf16.msra.mxu0 %v5986
        %6258 = vmatpush.bf16.msra.mxu0 %v5985
        %6259 = vmatpush.bf16.msra.mxu0 %v5984
        %6260 = vmatmul.bf16.gmra.mxu0 %v5325
        %v6261 = vpop.f32.mrf.mxu0
        %v6262 = vadd.f32 %v6223, %v6261
        %v6263 = vpop.f32.mrf.mxu0
        %v6264 = vadd.f32 %v6225, %v6263
        %6265 = vmatmul.bf16.gmra.mxu0 %v5329
        %v6266 = vpop.f32.mrf.mxu0
        %v6267 = vadd.f32 %v6228, %v6266
        %v6268 = vpop.f32.mrf.mxu0
        %v6269 = vadd.f32 %v6230, %v6268
        %6270 = vmatmul.bf16.gmra.mxu0 %v5333
        %v6271 = vpop.f32.mrf.mxu0
        %v6272 = vadd.f32 %v6233, %v6271
        %v6273 = vpop.f32.mrf.mxu0
        %v6274 = vadd.f32 %v6235, %v6273
        %6275 = vmatmul.bf16.gmra.mxu0 %v5337
        %v6276 = vpop.f32.mrf.mxu0
        %v6277 = vadd.f32 %v6238, %v6276
        %v6278 = vpop.f32.mrf.mxu0
        %v6279 = vadd.f32 %v6240, %v6278
        %6280 = vmatmul.bf16.gmra.mxu0 %v5341
        %v6281 = vpop.f32.mrf.mxu0
        %v6282 = vadd.f32 %v6243, %v6281
        %v6283 = vpop.f32.mrf.mxu0
        %v6284 = vadd.f32 %v6245, %v6283
        %6285 = vmatmul.bf16.gmra.mxu0 %v5350
        %v6286 = vpop.f32.mrf.mxu0
        %v6287 = vadd.f32 %v6248, %v6286
        %v6288 = vpop.f32.mrf.mxu0
        %v6289 = vadd.f32 %v6250, %v6288
        %6290 = vdwg.mxu0
        %6291 = vmatpush.bf16.msra.mxu0 %v5999
        %6292 = vmatpush.bf16.msra.mxu0 %v5998
        %6293 = vmatpush.bf16.msra.mxu0 %v5997
        %6294 = vmatpush.bf16.msra.mxu0 %v5996
        %6295 = vmatpush.bf16.msra.mxu0 %v5995
        %6296 = vmatpush.bf16.msra.mxu0 %v5994
        %6297 = vmatpush.bf16.msra.mxu0 %v5993
        %6298 = vmatpush.bf16.msra.mxu0 %v5992
        %6299 = vmatmul.bf16.gmra.mxu0 %v5357
        %v6300 = vpop.f32.mrf.mxu0
        %v6301 = vadd.f32 %v6262, %v6300
        %v6302 = vpop.f32.mrf.mxu0
        %v6303 = vadd.f32 %v6264, %v6302
        %6304 = vmatmul.bf16.gmra.mxu0 %v5358
        %v6305 = vpop.f32.mrf.mxu0
        %v6306 = vadd.f32 %v6267, %v6305
        %v6307 = vpop.f32.mrf.mxu0
        %v6308 = vadd.f32 %v6269, %v6307
        %6309 = vmatmul.bf16.gmra.mxu0 %v5359
        %v6310 = vpop.f32.mrf.mxu0
        %v6311 = vadd.f32 %v6272, %v6310
        %v6312 = vpop.f32.mrf.mxu0
        %v6313 = vadd.f32 %v6274, %v6312
        %6314 = vmatmul.bf16.gmra.mxu0 %v5360
        %v6315 = vpop.f32.mrf.mxu0
        %v6316 = vadd.f32 %v6277, %v6315
        %v6317 = vpop.f32.mrf.mxu0
        %v6318 = vadd.f32 %v6279, %v6317
        %6319 = vmatmul.bf16.gmra.mxu0 %v5361
        %v6320 = vpop.f32.mrf.mxu0
        %v6321 = vadd.f32 %v6282, %v6320
        %v6322 = vpop.f32.mrf.mxu0
        %v6323 = vadd.f32 %v6284, %v6322
        %6324 = vmatmul.bf16.gmra.mxu0 %v5362
        %v6325 = vpop.f32.mrf.mxu0
        %v6326 = vadd.f32 %v6287, %v6325
        %v6327 = vpop.f32.mrf.mxu0
        %v6328 = vadd.f32 %v6289, %v6327
        %6329 = vdwg.mxu0
        %6330 = vmatpush.bf16.msra.mxu0 %v6007
        %6331 = vmatpush.bf16.msra.mxu0 %v6006
        %6332 = vmatpush.bf16.msra.mxu0 %v6005
        %6333 = vmatpush.bf16.msra.mxu0 %v6004
        %6334 = vmatpush.bf16.msra.mxu0 %v6003
        %6335 = vmatpush.bf16.msra.mxu0 %v6002
        %6336 = vmatpush.bf16.msra.mxu0 %v6001
        %6337 = vmatpush.bf16.msra.mxu0 %v6000
        %6338 = vmatmul.bf16.gmra.mxu0 %v5404
        %v6339 = vpop.f32.mrf.mxu0
        %v6340 = vadd.f32 %v6301, %v6339
        %v6341 = vpop.f32.mrf.mxu0
        %v6342 = vadd.f32 %v6303, %v6341
        %6343 = vmatmul.bf16.gmra.mxu0 %v5406
        %v6344 = vpop.f32.mrf.mxu0
        %v6345 = vadd.f32 %v6306, %v6344
        %v6346 = vpop.f32.mrf.mxu0
        %v6347 = vadd.f32 %v6308, %v6346
        %6348 = vmatmul.bf16.gmra.mxu0 %v5408
        %v6349 = vpop.f32.mrf.mxu0
        %v6350 = vadd.f32 %v6311, %v6349
        %v6351 = vpop.f32.mrf.mxu0
        %v6352 = vadd.f32 %v6313, %v6351
        %6353 = vmatmul.bf16.gmra.mxu0 %v5410
        %v6354 = vpop.f32.mrf.mxu0
        %v6355 = vadd.f32 %v6316, %v6354
        %v6356 = vpop.f32.mrf.mxu0
        %v6357 = vadd.f32 %v6318, %v6356
        %6358 = vmatmul.bf16.gmra.mxu0 %v5412
        %v6359 = vpop.f32.mrf.mxu0
        %v6360 = vadd.f32 %v6321, %v6359
        %v6361 = vpop.f32.mrf.mxu0
        %v6362 = vadd.f32 %v6323, %v6361
        %6363 = vmatmul.bf16.gmra.mxu0 %v5414
        %v6364 = vpop.f32.mrf.mxu0
        %v6365 = vadd.f32 %v6326, %v6364
        %v6366 = vpop.f32.mrf.mxu0
        %v6367 = vadd.f32 %v6328, %v6366
        %6368 = vdwg.mxu0
        %6369 = vmatpush.bf16.msra.mxu0 %v6015
        %6370 = vmatpush.bf16.msra.mxu0 %v6014
        %6371 = vmatpush.bf16.msra.mxu0 %v6013
        %6372 = vmatpush.bf16.msra.mxu0 %v6012
        %6373 = vmatpush.bf16.msra.mxu0 %v6011
        %6374 = vmatpush.bf16.msra.mxu0 %v6010
        %6375 = vmatpush.bf16.msra.mxu0 %v6009
        %6376 = vmatpush.bf16.msra.mxu0 %v6008
        %6377 = vmatmul.bf16.gmra.mxu0 %v5440
        %v6378 = vpop.f32.mrf.mxu0
        %v6379 = vadd.f32 %v6340, %v6378
        %v6380 = vpop.f32.mrf.mxu0
        %v6381 = vadd.f32 %v6342, %v6380
        %6382 = vmatmul.bf16.gmra.mxu0 %v5449
        %v6383 = vpop.f32.mrf.mxu0
        %v6384 = vadd.f32 %v6345, %v6383
        %v6385 = vpop.f32.mrf.mxu0
        %v6386 = vadd.f32 %v6347, %v6385
        %6387 = vmatmul.bf16.gmra.mxu0 %v5458
        %v6388 = vpop.f32.mrf.mxu0
        %v6389 = vadd.f32 %v6350, %v6388
        %v6390 = vpop.f32.mrf.mxu0
        %v6391 = vadd.f32 %v6352, %v6390
        %6392 = vmatmul.bf16.gmra.mxu0 %v5467
        %v6393 = vpop.f32.mrf.mxu0
        %v6394 = vadd.f32 %v6355, %v6393
        %v6395 = vpop.f32.mrf.mxu0
        %v6396 = vadd.f32 %v6357, %v6395
        %6397 = vmatmul.bf16.gmra.mxu0 %v5476
        %v6398 = vpop.f32.mrf.mxu0
        %v6399 = vadd.f32 %v6360, %v6398
        %v6400 = vpop.f32.mrf.mxu0
        %v6401 = vadd.f32 %v6362, %v6400
        %6402 = vmatmul.bf16.gmra.mxu0 %v5485
        %v6403 = vpop.f32.mrf.mxu0
        %v6404 = vadd.f32 %v6365, %v6403
        %v6405 = vpop.f32.mrf.mxu0
        %v6406 = vadd.f32 %v6367, %v6405
        %6407 = vdwg.mxu0
        %6408 = vmatpush.bf16.msra.mxu0 %v6023
        %6409 = vmatpush.bf16.msra.mxu0 %v6022
        %6410 = vmatpush.bf16.msra.mxu0 %v6021
        %6411 = vmatpush.bf16.msra.mxu0 %v6020
        %6412 = vmatpush.bf16.msra.mxu0 %v6019
        %6413 = vmatpush.bf16.msra.mxu0 %v6018
        %6414 = vmatpush.bf16.msra.mxu0 %v6017
        %6415 = vmatpush.bf16.msra.mxu0 %v6016
        %6416 = vmatmul.bf16.gmra.mxu0 %v5497
        %v6417 = vpop.f32.mrf.mxu0
        %v6418 = vadd.f32 %v6379, %v6417
        %v6419 = vpop.f32.mrf.mxu0
        %v6420 = vadd.f32 %v6381, %v6419
        %6421 = vmatmul.bf16.gmra.mxu0 %v5499
        %v6422 = vpop.f32.mrf.mxu0
        %v6423 = vadd.f32 %v6384, %v6422
        %v6424 = vpop.f32.mrf.mxu0
        %v6425 = vadd.f32 %v6386, %v6424
        %6426 = vmatmul.bf16.gmra.mxu0 %v5501
        %v6427 = vpop.f32.mrf.mxu0
        %v6428 = vadd.f32 %v6389, %v6427
        %v6429 = vpop.f32.mrf.mxu0
        %v6430 = vadd.f32 %v6391, %v6429
        %6431 = vmatmul.bf16.gmra.mxu0 %v5503
        %v6432 = vpop.f32.mrf.mxu0
        %v6433 = vadd.f32 %v6394, %v6432
        %v6434 = vpop.f32.mrf.mxu0
        %v6435 = vadd.f32 %v6396, %v6434
        %6436 = vmatmul.bf16.gmra.mxu0 %v5505
        %v6437 = vpop.f32.mrf.mxu0
        %v6438 = vadd.f32 %v6399, %v6437
        %v6439 = vpop.f32.mrf.mxu0
        %v6440 = vadd.f32 %v6401, %v6439
        %6441 = vmatmul.bf16.gmra.mxu0 %v5507
        %v6442 = vpop.f32.mrf.mxu0
        %v6443 = vadd.f32 %v6404, %v6442
        %v6444 = vpop.f32.mrf.mxu0
        %v6445 = vadd.f32 %v6406, %v6444
        %6446 = vdwg.mxu0
        %v6447 = vpack.c.bf16 %v6418, %v6418
        %v6448 = vpack.c.bf16 %v6420, %v6420
        %v6449 = vpack.c.bf16 %v6423, %v6423
        %v6450 = vpack.c.bf16 %v6425, %v6425
        %v6451 = vpack.c.bf16 %v6428, %v6428
        %v6452 = vpack.c.bf16 %v6430, %v6430
        %v6453 = vpack.c.bf16 %v6433, %v6433
        %v6454 = vpack.c.bf16 %v6435, %v6435
        %v6455 = vpack.c.bf16 %v6438, %v6438
        %v6456 = vpack.c.bf16 %v6440, %v6440
        %v6457 = vpack.c.bf16 %v6443, %v6443
        %v6458 = vpack.c.bf16 %v6445, %v6445
        %6459 = vst [vmem:[%s204] sm:$0xf] %v6447
        %6460 = vst [vmem:[%s204 + $0x4] sm:$0xf] %v6448
        %6461 = vst [vmem:[%s204 + $0x8] sm:$0xf] %v6449
        %6462 = vst [vmem:[%s204 + $0xc] sm:$0xf] %v6450
        %6463 = vst [vmem:[%s204 + $0x10] sm:$0xf] %v6451
        %6464 = vst [vmem:[%s204 + $0x14] sm:$0xf] %v6452
        %6465 = vst [vmem:[%s204 + $0x18] sm:$0xf] %v6453
        %6466 = vst [vmem:[%s204 + $0x1c] sm:$0xf] %v6454
        %6467 = vst [vmem:[%s204 + $0x20] sm:$0xf] %v6455
        %6468 = vst [vmem:[%s204 + $0x24] sm:$0xf] %v6456
        %6469 = vst [vmem:[%s204 + $0x28] sm:$0xf] %v6457
        %6470 = vst [vmem:[%s204 + $0x2c] sm:$0xf] %v6458
        %p6471 = scmp.lt.s32.totalorder %s16, 1
        %s6472 = scalar_select %p6471, %s16, 1
        %s6473 = smul.addr %s6472, 12
        %s6474 = smul.addr %s6473, 4
        %s6475 = scalar_lea.vmem %s3, %s6474
        // Predicated region
        $region41: #{fused_conv_chain.1} parent=31 // pred_check
          %p6476 = pneg %p102
        $region42: #{fused_conv_chain.1} parent=31 // pred_check_branch
          %6478 = sbr.rel (%p6476) target = $region44
        $region43: #{fused_conv_chain.1} parent=31 // pred_region
          _
        $region44: #{fused_conv_chain.1} parent=31 // pred_fallthru
          _
      $region32: #{fused_conv_chain.1} parent=5 // pred_fallthru
        _
      %p6479 = scmp.le.s32.totalorder 2, %s11
      // Predicated region
      $region45: #{fused_conv_chain.1} parent=5 // pred_check
        %p6480 = pneg %p6479
      $region46: #{fused_conv_chain.1} parent=5 // pred_check_branch
        %6482 = sbr.rel (%p6480) target = $region48
      $region47: #{fused_conv_chain.1} parent=5 // pred_region
        %s6483 = ssub.s32 %s11, 2
        // Predicated region
        $region49: #{fused_conv_chain.1} parent=47 // pred_check
          %p6484 = pneg %p108
        $region50: #{fused_conv_chain.1} parent=47 // pred_check_branch
          %6486 = sbr.rel (%p6484) target = $region52
        $region51: #{fused_conv_chain.1} parent=47 // pred_region
          %p6487 = scmp.lt.s32.totalorder %s17, 1
          %s6488 = scalar_select %p6487, %s17, 1
          %s6489 = smul.addr %s6488, 12
          %s6490 = smul.addr %s6489, 4
          %s6491 = scalar_lea.vmem %s3, %s6490
        $region52: #{fused_conv_chain.1} parent=47 // pred_fallthru
          _
      $region48: #{fused_conv_chain.1} parent=5 // pred_fallthru
        _
    $region6: #{fused_conv_chain.1} parent=1 // loop_footer
      %s15 = sadd.s32 1, %s11
    $region7: #{fused_conv_chain.1} parent=1 // loop_footer_branch
      %10 = sbr.rel target = $region3
    $region8: #{fused_conv_chain.1} parent=1 // loop_exit
      _
    %6492 = vsyncpa [#allocation4], 1
    %s6493 = scalar_lea.sflag [#allocation4], 1
    %6494 = vsyncpa %s6493, 1
    %6495 = vsyncpa [#allocation6], 1

</llo_original>
